<compile_context>
chip_gen: v5e
topology: v5e:2x2
jax: 0.10.0
libtpu: 0.0.40
codegen_flags: <defaults>
</compile_context>

<pallas_src>
import functools

import jax
import jax.numpy as jnp
from jax import lax
from jax.experimental import pallas as pl
from jax.experimental.pallas import tpu as pltpu


# ------------------------------ Pallas kernel ------------------------------ #
def _periodic_conv_kernel(x_ref, w_ref, o_ref, col_ref, *,
                          KH, KW, stride, H_out, W_out, C, NB, O):
    """One batch-block (NB images) per grid step.

    x_ref:   (NB, Hp, Wp, C)      circularly padded, channels-last images
    w_ref:   (O, KH*KW*C)         weights, column order (kh, kw, c)
    o_ref:   (NB*O, H_out*W_out)  lane-dense output rows (maps directly to NCHW)
    col_ref: (H_out*W_out, KH*KW*C) VMEM scratch holding the im2col block
    """
    m = H_out * W_out
    for i in range(NB):
        # --- assemble the im2col block for image i in VMEM scratch ---------- #
        for kh in range(KH):
            for kw in range(KW):
                if stride == 1:
                    patch = x_ref[i, kh:kh + H_out, kw:kw + W_out, :]
                else:
                    # Exact-size strided window straight from the ref.
                    # TODO(synk): for large images, de-interleave the stride in
                    # the wrapper (space-to-batch) so taps are contiguous.
                    patch = x_ref[i,
                                  pl.ds(kh, H_out, stride),
                                  pl.ds(kw, W_out, stride), :]
                j = kh * KW + kw
                col_ref[:, j * C:(j + 1) * C] = patch.reshape(m, C)

        # --- single K = KH*KW*C contraction: (O, Kc) x (m, Kc)^T -> (O, m) -- #
        out_i = lax.dot_general(
            w_ref[...], col_ref[...],
            dimension_numbers=(((1,), (1,)), ((), ())),
            preferred_element_type=jnp.float32,
        )
        o_ref[i * O:(i + 1) * O, :] = out_i.astype(o_ref.dtype)


# ------------------------------- Module glue ------------------------------- #
def periodic_conv2d(x, weight, *, stride=1, padding=0, batch_block=8):
    """x: (N, C, H, W) f32, weight: (O, C, KH, KW) f32 -> (N, O, H_out, W_out)."""
    N, C, H, W = x.shape
    O, _, KH, KW = weight.shape
    # Same restriction as PyTorch's circular-style wrap-around concatenation.
    assert padding <= H and padding <= W, "circular padding must be <= spatial dims"

    # Channels-last for the kernel; this only moves the small raw input.
    xt = jnp.transpose(x, (0, 2, 3, 1))  # (N, H, W, C)
    if padding > 0:
        xt = jnp.concatenate([xt[:, -padding:], xt, xt[:, :padding]], axis=1)
        xt = jnp.concatenate([xt[:, :, -padding:], xt, xt[:, :, :padding]], axis=2)
    Hp, Wp = xt.shape[1], xt.shape[2]
    H_out = (Hp - KH) // stride + 1
    W_out = (Wp - KW) // stride + 1
    m = H_out * W_out
    Kc = KH * KW * C

    # (O, C, KH, KW) -> (O, KH, KW, C) -> (O, KH*KW*C); columns ordered
    # (kh, kw, c) to match the in-kernel im2col assembly.  No O padding.
    w2 = jnp.transpose(weight, (0, 2, 3, 1)).reshape(O, Kc)

    # Batch blocking: largest divisor of N that is <= batch_block.
    NB = 1
    for d in range(min(N, batch_block), 0, -1):
        if N % d == 0:
            NB = d
            break
    G = N // NB

    kernel = functools.partial(
        _periodic_conv_kernel,
        KH=KH, KW=KW, stride=stride, H_out=H_out, W_out=W_out, C=C, NB=NB, O=O,
    )

    out_flat = pl.pallas_call(
        kernel,
        out_shape=jax.ShapeDtypeStruct((N * O, m), x.dtype),
        grid_spec=pltpu.PrefetchScalarGridSpec(
            num_scalar_prefetch=0,
            grid=(G,),
            in_specs=[
                # NB padded images per grid step.
                pl.BlockSpec((NB, Hp, Wp, C), lambda g: (g, 0, 0, 0)),
                # Grid-invariant weights (tiny: O x KH*KW*C f32).
                pl.BlockSpec((O, Kc), lambda g: (0, 0)),
            ],
            out_specs=pl.BlockSpec((NB * O, m), lambda g: (g, 0)),
            scratch_shapes=[pltpu.VMEM((m, Kc), jnp.float32)],
        ),
        compiler_params=pltpu.CompilerParams(
            dimension_semantics=("parallel",),
        ),
    )(xt, w2)

    # Rows are already ordered (n, o); columns are (h_out, w_out): a pure
    # reshape yields NCHW — no output transpose pass.
    return out_flat.reshape(N, O, H_out, W_out)


# ---------------------------------- Main ----------------------------------- #
if __name__ == "__main__":
    # Deterministic setup consistent with the module:
    # batch=2, in_channels=4, out_channels=8, spatial=16, kernel=3, padding=1.
    key = jax.random.PRNGKey(0)
    kx, kw = jax.random.split(key)

    N, C, H, W = 2, 4, 16, 16
    O, K = 8, 3
    stride, padding = 1, 1

    x = jax.random.normal(kx, (N, C, H, W), dtype=jnp.float32)
    # nn.Conv2d default init: uniform(-b, b), b = 1/sqrt(C*K*K)
    bound = 1.0 / jnp.sqrt(jnp.float32(C * K * K))
    weight = jax.random.uniform(
        kw, (O, C, K, K), dtype=jnp.float32, minval=-bound, maxval=bound
    )

    fn = jax.jit(functools.partial(periodic_conv2d, stride=stride, padding=padding))
    out = jax.block_until_ready(fn(x, weight))

    # Reference: XLA conv on the same circularly padded input.
    x_pad = jnp.concatenate([x[:, :, -padding:, :], x, x[:, :, :padding, :]], axis=2)
    x_pad = jnp.concatenate(
        [x_pad[:, :, :, -padding:], x_pad, x_pad[:, :, :, :padding]], axis=3
    )
    ref = jax.lax.conv_general_dilated(
        x_pad, weight, window_strides=(stride, stride), padding="VALID",
        dimension_numbers=("NCHW", "OIHW", "NCHW"),
    )
    assert out.shape == ref.shape, (out.shape, ref.shape)
    err = float(jnp.max(jnp.abs(out - ref)))
    assert err < 1e-4, err
    print("KERNEL_OK")
</pallas_src>

<mosaic_0001>
module attributes {stable_mosaic.version = 11 : i64} {
  func.func @_periodic_conv_kernel(%arg0: i32, %arg1: memref<2x18x18x4xf32, #tpu.memory_space<vmem>>, %arg2: memref<8x36xf32, #tpu.memory_space<vmem>>, %arg3: memref<16x256xf32, #tpu.memory_space<vmem>>, %arg4: memref<256x36xf32, #tpu.memory_space<vmem>>) attributes {dimension_semantics = [#tpu.dimension_semantics<parallel>], iteration_bounds = array<i64: 1>, scalar_prefetch = 0 : i64, scratch_operands = 1 : i64, tpu.core_type = #tpu.core_type<tc>, window_params = [{transform_indices = @transform_0, window_bounds = array<i64: 2, 18, 18, 4>}, {pipeline_mode = #tpu.pipeline_mode<synchronous>, transform_indices = @transform_1, window_bounds = array<i64: 8, 36>}, {transform_indices = @transform_2, window_bounds = array<i64: 16, 256>}]} {
    %c0 = arith.constant 0 : index
    %c0_0 = arith.constant 0 : index
    %c0_1 = arith.constant 0 : index
    %c0_2 = arith.constant 0 : index
    %0 = vector.load %arg1[%c0, %c0_0, %c0_1, %c0_2] : memref<2x18x18x4xf32, #tpu.memory_space<vmem>>, vector<1x16x16x4xf32>
    %1 = vector.shape_cast %0 : vector<1x16x16x4xf32> to vector<16x16x4xf32>
    %2 = vector.shape_cast %1 : vector<16x16x4xf32> to vector<256x4xf32>
    %c0_3 = arith.constant 0 : index
    %c0_4 = arith.constant 0 : index
    %3 = vector.load %arg4[%c0_3, %c0_4] : memref<256x36xf32, #tpu.memory_space<vmem>>, vector<256x4xf32>
    tpu.vector_store %arg4[%c0_3, %c0_4], %2 {strides = array<i32>} : memref<256x36xf32, #tpu.memory_space<vmem>>, vector<256x4xf32>,
    %c0_5 = arith.constant 0 : index
    %c0_6 = arith.constant 0 : index
    %c1 = arith.constant 1 : index
    %c0_7 = arith.constant 0 : index
    %4 = vector.load %arg1[%c0_5, %c0_6, %c1, %c0_7] : memref<2x18x18x4xf32, #tpu.memory_space<vmem>>, vector<1x16x16x4xf32>
    %5 = vector.shape_cast %4 : vector<1x16x16x4xf32> to vector<16x16x4xf32>
    %6 = vector.shape_cast %5 : vector<16x16x4xf32> to vector<256x4xf32>
    %c0_8 = arith.constant 0 : index
    %c4 = arith.constant 4 : index
    %7 = vector.load %arg4[%c0_8, %c4] : memref<256x36xf32, #tpu.memory_space<vmem>>, vector<256x4xf32>
    tpu.vector_store %arg4[%c0_8, %c4], %6 {strides = array<i32>} : memref<256x36xf32, #tpu.memory_space<vmem>>, vector<256x4xf32>,
    %c0_9 = arith.constant 0 : index
    %c0_10 = arith.constant 0 : index
    %c2 = arith.constant 2 : index
    %c0_11 = arith.constant 0 : index
    %8 = vector.load %arg1[%c0_9, %c0_10, %c2, %c0_11] : memref<2x18x18x4xf32, #tpu.memory_space<vmem>>, vector<1x16x16x4xf32>
    %9 = vector.shape_cast %8 : vector<1x16x16x4xf32> to vector<16x16x4xf32>
    %10 = vector.shape_cast %9 : vector<16x16x4xf32> to vector<256x4xf32>
    %c0_12 = arith.constant 0 : index
    %c8 = arith.constant 8 : index
    %11 = vector.load %arg4[%c0_12, %c8] : memref<256x36xf32, #tpu.memory_space<vmem>>, vector<256x4xf32>
    tpu.vector_store %arg4[%c0_12, %c8], %10 {strides = array<i32>} : memref<256x36xf32, #tpu.memory_space<vmem>>, vector<256x4xf32>,
    %c0_13 = arith.constant 0 : index
    %c1_14 = arith.constant 1 : index
    %c0_15 = arith.constant 0 : index
    %c0_16 = arith.constant 0 : index
    %12 = vector.load %arg1[%c0_13, %c1_14, %c0_15, %c0_16] : memref<2x18x18x4xf32, #tpu.memory_space<vmem>>, vector<1x16x16x4xf32>
    %13 = vector.shape_cast %12 : vector<1x16x16x4xf32> to vector<16x16x4xf32>
    %14 = vector.shape_cast %13 : vector<16x16x4xf32> to vector<256x4xf32>
    %c0_17 = arith.constant 0 : index
    %c12 = arith.constant 12 : index
    %15 = vector.load %arg4[%c0_17, %c12] : memref<256x36xf32, #tpu.memory_space<vmem>>, vector<256x4xf32>
    tpu.vector_store %arg4[%c0_17, %c12], %14 {strides = array<i32>} : memref<256x36xf32, #tpu.memory_space<vmem>>, vector<256x4xf32>,
    %c0_18 = arith.constant 0 : index
    %c1_19 = arith.constant 1 : index
    %c1_20 = arith.constant 1 : index
    %c0_21 = arith.constant 0 : index
    %16 = vector.load %arg1[%c0_18, %c1_19, %c1_20, %c0_21] : memref<2x18x18x4xf32, #tpu.memory_space<vmem>>, vector<1x16x16x4xf32>
    %17 = vector.shape_cast %16 : vector<1x16x16x4xf32> to vector<16x16x4xf32>
    %18 = vector.shape_cast %17 : vector<16x16x4xf32> to vector<256x4xf32>
    %c0_22 = arith.constant 0 : index
    %c16 = arith.constant 16 : index
    %19 = vector.load %arg4[%c0_22, %c16] : memref<256x36xf32, #tpu.memory_space<vmem>>, vector<256x4xf32>
    tpu.vector_store %arg4[%c0_22, %c16], %18 {strides = array<i32>} : memref<256x36xf32, #tpu.memory_space<vmem>>, vector<256x4xf32>,
    %c0_23 = arith.constant 0 : index
    %c1_24 = arith.constant 1 : index
    %c2_25 = arith.constant 2 : index
    %c0_26 = arith.constant 0 : index
    %20 = vector.load %arg1[%c0_23, %c1_24, %c2_25, %c0_26] : memref<2x18x18x4xf32, #tpu.memory_space<vmem>>, vector<1x16x16x4xf32>
    %21 = vector.shape_cast %20 : vector<1x16x16x4xf32> to vector<16x16x4xf32>
    %22 = vector.shape_cast %21 : vector<16x16x4xf32> to vector<256x4xf32>
    %c0_27 = arith.constant 0 : index
    %c20 = arith.constant 20 : index
    %23 = vector.load %arg4[%c0_27, %c20] : memref<256x36xf32, #tpu.memory_space<vmem>>, vector<256x4xf32>
    tpu.vector_store %arg4[%c0_27, %c20], %22 {strides = array<i32>} : memref<256x36xf32, #tpu.memory_space<vmem>>, vector<256x4xf32>,
    %c0_28 = arith.constant 0 : index
    %c2_29 = arith.constant 2 : index
    %c0_30 = arith.constant 0 : index
    %c0_31 = arith.constant 0 : index
    %24 = vector.load %arg1[%c0_28, %c2_29, %c0_30, %c0_31] : memref<2x18x18x4xf32, #tpu.memory_space<vmem>>, vector<1x16x16x4xf32>
    %25 = vector.shape_cast %24 : vector<1x16x16x4xf32> to vector<16x16x4xf32>
    %26 = vector.shape_cast %25 : vector<16x16x4xf32> to vector<256x4xf32>
    %c0_32 = arith.constant 0 : index
    %c24 = arith.constant 24 : index
    %27 = vector.load %arg4[%c0_32, %c24] : memref<256x36xf32, #tpu.memory_space<vmem>>, vector<256x4xf32>
    tpu.vector_store %arg4[%c0_32, %c24], %26 {strides = array<i32>} : memref<256x36xf32, #tpu.memory_space<vmem>>, vector<256x4xf32>,
    %c0_33 = arith.constant 0 : index
    %c2_34 = arith.constant 2 : index
    %c1_35 = arith.constant 1 : index
    %c0_36 = arith.constant 0 : index
    %28 = vector.load %arg1[%c0_33, %c2_34, %c1_35, %c0_36] : memref<2x18x18x4xf32, #tpu.memory_space<vmem>>, vector<1x16x16x4xf32>
    %29 = vector.shape_cast %28 : vector<1x16x16x4xf32> to vector<16x16x4xf32>
    %30 = vector.shape_cast %29 : vector<16x16x4xf32> to vector<256x4xf32>
    %c0_37 = arith.constant 0 : index
    %c28 = arith.constant 28 : index
    %31 = vector.load %arg4[%c0_37, %c28] : memref<256x36xf32, #tpu.memory_space<vmem>>, vector<256x4xf32>
    tpu.vector_store %arg4[%c0_37, %c28], %30 {strides = array<i32>} : memref<256x36xf32, #tpu.memory_space<vmem>>, vector<256x4xf32>,
    %c0_38 = arith.constant 0 : index
    %c2_39 = arith.constant 2 : index
    %c2_40 = arith.constant 2 : index
    %c0_41 = arith.constant 0 : index
    %32 = vector.load %arg1[%c0_38, %c2_39, %c2_40, %c0_41] : memref<2x18x18x4xf32, #tpu.memory_space<vmem>>, vector<1x16x16x4xf32>
    %33 = vector.shape_cast %32 : vector<1x16x16x4xf32> to vector<16x16x4xf32>
    %34 = vector.shape_cast %33 : vector<16x16x4xf32> to vector<256x4xf32>
    %c0_42 = arith.constant 0 : index
    %c32 = arith.constant 32 : index
    %35 = vector.load %arg4[%c0_42, %c32] : memref<256x36xf32, #tpu.memory_space<vmem>>, vector<256x4xf32>
    tpu.vector_store %arg4[%c0_42, %c32], %34 {strides = array<i32>} : memref<256x36xf32, #tpu.memory_space<vmem>>, vector<256x4xf32>,
    %c0_43 = arith.constant 0 : index
    %c0_44 = arith.constant 0 : index
    %36 = vector.load %arg2[%c0_43, %c0_44] : memref<8x36xf32, #tpu.memory_space<vmem>>, vector<8x36xf32>
    %c0_45 = arith.constant 0 : index
    %c0_46 = arith.constant 0 : index
    %37 = vector.load %arg4[%c0_45, %c0_46] : memref<256x36xf32, #tpu.memory_space<vmem>>, vector<256x36xf32>
    %cst = arith.constant dense<0.000000e+00> : vector<8x256xf32>
    %38 = tpu.matmul %36, %37, %cst {dimension_numbers = #tpu.dot_dimension_numbers<[1], [1], [0], [0], [0, 0, 1, 0], [], []>} : vector<8x36xf32>, vector<256x36xf32>, vector<8x256xf32> -> vector<8x256xf32>
    %c0_47 = arith.constant 0 : index
    %c0_48 = arith.constant 0 : index
    %39 = vector.load %arg3[%c0_47, %c0_48] : memref<16x256xf32, #tpu.memory_space<vmem>>, vector<8x256xf32>
    tpu.vector_store %arg3[%c0_47, %c0_48], %38 {strides = array<i32>} : memref<16x256xf32, #tpu.memory_space<vmem>>, vector<8x256xf32>,
    %c1_49 = arith.constant 1 : index
    %c0_50 = arith.constant 0 : index
    %c0_51 = arith.constant 0 : index
    %c0_52 = arith.constant 0 : index
    %40 = vector.load %arg1[%c1_49, %c0_50, %c0_51, %c0_52] : memref<2x18x18x4xf32, #tpu.memory_space<vmem>>, vector<1x16x16x4xf32>
    %41 = vector.shape_cast %40 : vector<1x16x16x4xf32> to vector<16x16x4xf32>
    %42 = vector.shape_cast %41 : vector<16x16x4xf32> to vector<256x4xf32>
    %c0_53 = arith.constant 0 : index
    %c0_54 = arith.constant 0 : index
    %43 = vector.load %arg4[%c0_53, %c0_54] : memref<256x36xf32, #tpu.memory_space<vmem>>, vector<256x4xf32>
    tpu.vector_store %arg4[%c0_53, %c0_54], %42 {strides = array<i32>} : memref<256x36xf32, #tpu.memory_space<vmem>>, vector<256x4xf32>,
    %c1_55 = arith.constant 1 : index
    %c0_56 = arith.constant 0 : index
    %c1_57 = arith.constant 1 : index
    %c0_58 = arith.constant 0 : index
    %44 = vector.load %arg1[%c1_55, %c0_56, %c1_57, %c0_58] : memref<2x18x18x4xf32, #tpu.memory_space<vmem>>, vector<1x16x16x4xf32>
    %45 = vector.shape_cast %44 : vector<1x16x16x4xf32> to vector<16x16x4xf32>
    %46 = vector.shape_cast %45 : vector<16x16x4xf32> to vector<256x4xf32>
    %c0_59 = arith.constant 0 : index
    %c4_60 = arith.constant 4 : index
    %47 = vector.load %arg4[%c0_59, %c4_60] : memref<256x36xf32, #tpu.memory_space<vmem>>, vector<256x4xf32>
    tpu.vector_store %arg4[%c0_59, %c4_60], %46 {strides = array<i32>} : memref<256x36xf32, #tpu.memory_space<vmem>>, vector<256x4xf32>,
    %c1_61 = arith.constant 1 : index
    %c0_62 = arith.constant 0 : index
    %c2_63 = arith.constant 2 : index
    %c0_64 = arith.constant 0 : index
    %48 = vector.load %arg1[%c1_61, %c0_62, %c2_63, %c0_64] : memref<2x18x18x4xf32, #tpu.memory_space<vmem>>, vector<1x16x16x4xf32>
    %49 = vector.shape_cast %48 : vector<1x16x16x4xf32> to vector<16x16x4xf32>
    %50 = vector.shape_cast %49 : vector<16x16x4xf32> to vector<256x4xf32>
    %c0_65 = arith.constant 0 : index
    %c8_66 = arith.constant 8 : index
    %51 = vector.load %arg4[%c0_65, %c8_66] : memref<256x36xf32, #tpu.memory_space<vmem>>, vector<256x4xf32>
    tpu.vector_store %arg4[%c0_65, %c8_66], %50 {strides = array<i32>} : memref<256x36xf32, #tpu.memory_space<vmem>>, vector<256x4xf32>,
    %c1_67 = arith.constant 1 : index
    %c1_68 = arith.constant 1 : index
    %c0_69 = arith.constant 0 : index
    %c0_70 = arith.constant 0 : index
    %52 = vector.load %arg1[%c1_67, %c1_68, %c0_69, %c0_70] : memref<2x18x18x4xf32, #tpu.memory_space<vmem>>, vector<1x16x16x4xf32>
    %53 = vector.shape_cast %52 : vector<1x16x16x4xf32> to vector<16x16x4xf32>
    %54 = vector.shape_cast %53 : vector<16x16x4xf32> to vector<256x4xf32>
    %c0_71 = arith.constant 0 : index
    %c12_72 = arith.constant 12 : index
    %55 = vector.load %arg4[%c0_71, %c12_72] : memref<256x36xf32, #tpu.memory_space<vmem>>, vector<256x4xf32>
    tpu.vector_store %arg4[%c0_71, %c12_72], %54 {strides = array<i32>} : memref<256x36xf32, #tpu.memory_space<vmem>>, vector<256x4xf32>,
    %c1_73 = arith.constant 1 : index
    %c1_74 = arith.constant 1 : index
    %c1_75 = arith.constant 1 : index
    %c0_76 = arith.constant 0 : index
    %56 = vector.load %arg1[%c1_73, %c1_74, %c1_75, %c0_76] : memref<2x18x18x4xf32, #tpu.memory_space<vmem>>, vector<1x16x16x4xf32>
    %57 = vector.shape_cast %56 : vector<1x16x16x4xf32> to vector<16x16x4xf32>
    %58 = vector.shape_cast %57 : vector<16x16x4xf32> to vector<256x4xf32>
    %c0_77 = arith.constant 0 : index
    %c16_78 = arith.constant 16 : index
    %59 = vector.load %arg4[%c0_77, %c16_78] : memref<256x36xf32, #tpu.memory_space<vmem>>, vector<256x4xf32>
    tpu.vector_store %arg4[%c0_77, %c16_78], %58 {strides = array<i32>} : memref<256x36xf32, #tpu.memory_space<vmem>>, vector<256x4xf32>,
    %c1_79 = arith.constant 1 : index
    %c1_80 = arith.constant 1 : index
    %c2_81 = arith.constant 2 : index
    %c0_82 = arith.constant 0 : index
    %60 = vector.load %arg1[%c1_79, %c1_80, %c2_81, %c0_82] : memref<2x18x18x4xf32, #tpu.memory_space<vmem>>, vector<1x16x16x4xf32>
    %61 = vector.shape_cast %60 : vector<1x16x16x4xf32> to vector<16x16x4xf32>
    %62 = vector.shape_cast %61 : vector<16x16x4xf32> to vector<256x4xf32>
    %c0_83 = arith.constant 0 : index
    %c20_84 = arith.constant 20 : index
    %63 = vector.load %arg4[%c0_83, %c20_84] : memref<256x36xf32, #tpu.memory_space<vmem>>, vector<256x4xf32>
    tpu.vector_store %arg4[%c0_83, %c20_84], %62 {strides = array<i32>} : memref<256x36xf32, #tpu.memory_space<vmem>>, vector<256x4xf32>,
    %c1_85 = arith.constant 1 : index
    %c2_86 = arith.constant 2 : index
    %c0_87 = arith.constant 0 : index
    %c0_88 = arith.constant 0 : index
    %64 = vector.load %arg1[%c1_85, %c2_86, %c0_87, %c0_88] : memref<2x18x18x4xf32, #tpu.memory_space<vmem>>, vector<1x16x16x4xf32>
    %65 = vector.shape_cast %64 : vector<1x16x16x4xf32> to vector<16x16x4xf32>
    %66 = vector.shape_cast %65 : vector<16x16x4xf32> to vector<256x4xf32>
    %c0_89 = arith.constant 0 : index
    %c24_90 = arith.constant 24 : index
    %67 = vector.load %arg4[%c0_89, %c24_90] : memref<256x36xf32, #tpu.memory_space<vmem>>, vector<256x4xf32>
    tpu.vector_store %arg4[%c0_89, %c24_90], %66 {strides = array<i32>} : memref<256x36xf32, #tpu.memory_space<vmem>>, vector<256x4xf32>,
    %c1_91 = arith.constant 1 : index
    %c2_92 = arith.constant 2 : index
    %c1_93 = arith.constant 1 : index
    %c0_94 = arith.constant 0 : index
    %68 = vector.load %arg1[%c1_91, %c2_92, %c1_93, %c0_94] : memref<2x18x18x4xf32, #tpu.memory_space<vmem>>, vector<1x16x16x4xf32>
    %69 = vector.shape_cast %68 : vector<1x16x16x4xf32> to vector<16x16x4xf32>
    %70 = vector.shape_cast %69 : vector<16x16x4xf32> to vector<256x4xf32>
    %c0_95 = arith.constant 0 : index
    %c28_96 = arith.constant 28 : index
    %71 = vector.load %arg4[%c0_95, %c28_96] : memref<256x36xf32, #tpu.memory_space<vmem>>, vector<256x4xf32>
    tpu.vector_store %arg4[%c0_95, %c28_96], %70 {strides = array<i32>} : memref<256x36xf32, #tpu.memory_space<vmem>>, vector<256x4xf32>,
    %c1_97 = arith.constant 1 : index
    %c2_98 = arith.constant 2 : index
    %c2_99 = arith.constant 2 : index
    %c0_100 = arith.constant 0 : index
    %72 = vector.load %arg1[%c1_97, %c2_98, %c2_99, %c0_100] : memref<2x18x18x4xf32, #tpu.memory_space<vmem>>, vector<1x16x16x4xf32>
    %73 = vector.shape_cast %72 : vector<1x16x16x4xf32> to vector<16x16x4xf32>
    %74 = vector.shape_cast %73 : vector<16x16x4xf32> to vector<256x4xf32>
    %c0_101 = arith.constant 0 : index
    %c32_102 = arith.constant 32 : index
    %75 = vector.load %arg4[%c0_101, %c32_102] : memref<256x36xf32, #tpu.memory_space<vmem>>, vector<256x4xf32>
    tpu.vector_store %arg4[%c0_101, %c32_102], %74 {strides = array<i32>} : memref<256x36xf32, #tpu.memory_space<vmem>>, vector<256x4xf32>,
    %c0_103 = arith.constant 0 : index
    %c0_104 = arith.constant 0 : index
    %76 = vector.load %arg2[%c0_103, %c0_104] : memref<8x36xf32, #tpu.memory_space<vmem>>, vector<8x36xf32>
    %c0_105 = arith.constant 0 : index
    %c0_106 = arith.constant 0 : index
    %77 = vector.load %arg4[%c0_105, %c0_106] : memref<256x36xf32, #tpu.memory_space<vmem>>, vector<256x36xf32>
    %cst_107 = arith.constant dense<0.000000e+00> : vector<8x256xf32>
    %78 = tpu.matmul %76, %77, %cst_107 {dimension_numbers = #tpu.dot_dimension_numbers<[1], [1], [0], [0], [0, 0, 1, 0], [], []>} : vector<8x36xf32>, vector<256x36xf32>, vector<8x256xf32> -> vector<8x256xf32>
    %c8_108 = arith.constant 8 : index
    %c0_109 = arith.constant 0 : index
    %79 = vector.load %arg3[%c8_108, %c0_109] : memref<16x256xf32, #tpu.memory_space<vmem>>, vector<8x256xf32>
    tpu.vector_store %arg3[%c8_108, %c0_109], %78 {strides = array<i32>} : memref<16x256xf32, #tpu.memory_space<vmem>>, vector<8x256xf32>,
    return
  }
  func.func @transform_0(%arg0: i32) -> (i32, i32, i32, i32) {
    %c0_i32 = arith.constant 0 : i32
    %c0_i32_0 = arith.constant 0 : i32
    %c0_i32_1 = arith.constant 0 : i32
    %c0_i32_2 = arith.constant 0 : i32
    return %arg0, %c0_i32, %c0_i32_0, %c0_i32_1 : i32, i32, i32, i32
  }
  func.func @transform_1(%arg0: i32) -> (i32, i32) {
    %c0_i32 = arith.constant 0 : i32
    %c0_i32_0 = arith.constant 0 : i32
    %c0_i32_1 = arith.constant 0 : i32
    return %c0_i32, %c0_i32_0 : i32, i32
  }
  func.func @transform_2(%arg0: i32) -> (i32, i32) {
    %c0_i32 = arith.constant 0 : i32
    %c0_i32_0 = arith.constant 0 : i32
    return %arg0, %c0_i32 : i32, i32
  }
}

</mosaic_0001>

<llo_original>
// kernel: periodic_conv2d.1
$region0: #{periodic_conv2d.1}
  #allocation0 [shape = 'u32[]', space=smem, size = 0x4, offset = 0x4, fixed_abs, tag = 'smem constant byte address 0x4 - core index']
  #allocation1 [shape = 'u32[72,128]{1,0:T(1,128)}', space=vmem, size = 0x9000, scoped, tag = 'internal scratch']
  #allocation2 [shape = 'f32[256,36]{1,0:T(8,128)}', space=vmem, size = 0x20000, scoped, tag = 'scratch operand']
  %s0 = inlined_call_operand.vmem [shape: f32[2,18,18,4], index: 0, kind: input, shape index: {}]
  %s1 = inlined_call_operand.vmem [shape: f32[8,36], index: 1, kind: input, shape index: {}]
  %s2 = inlined_call_operand.vmem [shape: f32[16,256], index: 2, kind: output, shape index: {}]
  %s3 = sld [smem:[#allocation0]]
  $region18: #{periodic_conv2d.1} parent=0
    _
  %s5 = ssub.s32 1, %s3
  %s6 = scalar_select 0, %s5, %s3
  // Predicated region
  $region2: #{periodic_conv2d.1} parent=0 // pred_check
    _
  $region3: #{periodic_conv2d.1} parent=0 // pred_check_branch
    %8 = sbr.rel (0) target = $region5
  $region4: #{periodic_conv2d.1} parent=0 // pred_region
    _
  $region5: #{periodic_conv2d.1} parent=0 // pred_fallthru
    _
  // Predicated region
  $region6: #{periodic_conv2d.1} parent=0 // pred_check
    _
  $region7: #{periodic_conv2d.1} parent=0 // pred_check_branch
    %10 = sbr.rel (0) target = $region9
  $region8: #{periodic_conv2d.1} parent=0 // pred_region
    _
  $region9: #{periodic_conv2d.1} parent=0 // pred_fallthru
    _
  %v11 = vld [vmem:[%s0] sm:$0xff]
  %v12 = vld [vmem:[%s0 + $0x8] sm:$0xff]
  %v13 = vld [vmem:[%s0 + $0x18] sm:$0xff]
  %v14 = vld [vmem:[%s0 + $0x20] sm:$0xff]
  %v15 = vld [vmem:[%s0 + $0x30] sm:$0xff]
  %v16 = vld [vmem:[%s0 + $0x38] sm:$0xff]
  %v17 = vld [vmem:[%s0 + $0x48] sm:$0xff]
  %v18 = vld [vmem:[%s0 + $0x50] sm:$0xff]
  %v19 = vld [vmem:[%s0 + $0x60] sm:$0xff]
  %v20 = vld [vmem:[%s0 + $0x68] sm:$0xff]
  %v21 = vld [vmem:[%s0 + $0x78] sm:$0xff]
  %v22 = vld [vmem:[%s0 + $0x80] sm:$0xff]
  %v23 = vld [vmem:[%s0 + $0x90] sm:$0xff]
  %v24 = vld [vmem:[%s0 + $0x98] sm:$0xff]
  %v25 = vld [vmem:[%s0 + $0xa8] sm:$0xff]
  %v26 = vld [vmem:[%s0 + $0xb0] sm:$0xff]
  %v27 = vld [vmem:[%s0 + $0xc0] sm:$0xff]
  %v28 = vld [vmem:[%s0 + $0xc8] sm:$0xff]
  %v29 = vld [vmem:[%s0 + $0xd8] sm:$0xff]
  %v30 = vld [vmem:[%s0 + $0xe0] sm:$0xff]
  %v31 = vld [vmem:[%s0 + $0xf0] sm:$0xff]
  %v32 = vld [vmem:[%s0 + $0xf8] sm:$0xff]
  %v33 = vld [vmem:[%s0 + $0x108] sm:$0xff]
  %v34 = vld [vmem:[%s0 + $0x110] sm:$0xff]
  %v35 = vld [vmem:[%s0 + $0x120] sm:$0xff]
  %v36 = vld [vmem:[%s0 + $0x128] sm:$0xff]
  %v37 = vld [vmem:[%s0 + $0x138] sm:$0xff]
  %v38 = vld [vmem:[%s0 + $0x140] sm:$0xff]
  %v39 = vld [vmem:[%s0 + $0x150] sm:$0xff]
  %v40 = vld [vmem:[%s0 + $0x158] sm:$0xff]
  %v41 = vld [vmem:[%s0 + $0x168] sm:$0xff]
  %v42 = vld [vmem:[%s0 + $0x170] sm:$0xff]
  %vm43 = vcmask 31744
  %44 = vst.msk [vmem:[#allocation2] sm:$0xff] %vm43, %v11
  %45 = vst.msk [vmem:[#allocation2 + $0x8] sm:$0xff] %vm43, %v12
  %46 = vst.msk [vmem:[#allocation2 + $0x10] sm:$0xff] %vm43, %v13
  %47 = vst.msk [vmem:[#allocation2 + $0x18] sm:$0xff] %vm43, %v14
  %48 = vst.msk [vmem:[#allocation2 + $0x20] sm:$0xff] %vm43, %v15
  %49 = vst.msk [vmem:[#allocation2 + $0x28] sm:$0xff] %vm43, %v16
  %50 = vst.msk [vmem:[#allocation2 + $0x30] sm:$0xff] %vm43, %v17
  %51 = vst.msk [vmem:[#allocation2 + $0x38] sm:$0xff] %vm43, %v18
  %52 = vst.msk [vmem:[#allocation2 + $0x40] sm:$0xff] %vm43, %v19
  %53 = vst.msk [vmem:[#allocation2 + $0x48] sm:$0xff] %vm43, %v20
  %54 = vst.msk [vmem:[#allocation2 + $0x50] sm:$0xff] %vm43, %v21
  %55 = vst.msk [vmem:[#allocation2 + $0x58] sm:$0xff] %vm43, %v22
  %56 = vst.msk [vmem:[#allocation2 + $0x60] sm:$0xff] %vm43, %v23
  %57 = vst.msk [vmem:[#allocation2 + $0x68] sm:$0xff] %vm43, %v24
  %58 = vst.msk [vmem:[#allocation2 + $0x70] sm:$0xff] %vm43, %v25
  %59 = vst.msk [vmem:[#allocation2 + $0x78] sm:$0xff] %vm43, %v26
  %60 = vst.msk [vmem:[#allocation2 + $0x80] sm:$0xff] %vm43, %v27
  %61 = vst.msk [vmem:[#allocation2 + $0x88] sm:$0xff] %vm43, %v28
  %62 = vst.msk [vmem:[#allocation2 + $0x90] sm:$0xff] %vm43, %v29
  %63 = vst.msk [vmem:[#allocation2 + $0x98] sm:$0xff] %vm43, %v30
  %64 = vst.msk [vmem:[#allocation2 + $0xa0] sm:$0xff] %vm43, %v31
  %65 = vst.msk [vmem:[#allocation2 + $0xa8] sm:$0xff] %vm43, %v32
  %66 = vst.msk [vmem:[#allocation2 + $0xb0] sm:$0xff] %vm43, %v33
  %67 = vst.msk [vmem:[#allocation2 + $0xb8] sm:$0xff] %vm43, %v34
  %68 = vst.msk [vmem:[#allocation2 + $0xc0] sm:$0xff] %vm43, %v35
  %69 = vst.msk [vmem:[#allocation2 + $0xc8] sm:$0xff] %vm43, %v36
  %70 = vst.msk [vmem:[#allocation2 + $0xd0] sm:$0xff] %vm43, %v37
  %71 = vst.msk [vmem:[#allocation2 + $0xd8] sm:$0xff] %vm43, %v38
  %72 = vst.msk [vmem:[#allocation2 + $0xe0] sm:$0xff] %vm43, %v39
  %73 = vst.msk [vmem:[#allocation2 + $0xe8] sm:$0xff] %vm43, %v40
  %74 = vst.msk [vmem:[#allocation2 + $0xf0] sm:$0xff] %vm43, %v41
  %75 = vst.msk [vmem:[#allocation2 + $0xf8] sm:$0xff] %vm43, %v42
  %v76 = vld [vmem:[%s0 + $0x1] sm:$0xff]
  %v77 = vld [vmem:[%s0 + $0x9] sm:$0xff]
  %v78 = vld [vmem:[%s0 + $0x19] sm:$0xff]
  %v79 = vld [vmem:[%s0 + $0x21] sm:$0xff]
  %v80 = vld [vmem:[%s0 + $0x31] sm:$0xff]
  %v81 = vld [vmem:[%s0 + $0x39] sm:$0xff]
  %v82 = vld [vmem:[%s0 + $0x49] sm:$0xff]
  %v83 = vld [vmem:[%s0 + $0x51] sm:$0xff]
  %v84 = vld [vmem:[%s0 + $0x61] sm:$0xff]
  %v85 = vld [vmem:[%s0 + $0x69] sm:$0xff]
  %v86 = vld [vmem:[%s0 + $0x79] sm:$0xff]
  %v87 = vld [vmem:[%s0 + $0x81] sm:$0xff]
  %v88 = vld [vmem:[%s0 + $0x91] sm:$0xff]
  %v89 = vld [vmem:[%s0 + $0x99] sm:$0xff]
  %v90 = vld [vmem:[%s0 + $0xa9] sm:$0xff]
  %v91 = vld [vmem:[%s0 + $0xb1] sm:$0xff]
  %v92 = vld [vmem:[%s0 + $0xc1] sm:$0xff]
  %v93 = vld [vmem:[%s0 + $0xc9] sm:$0xff]
  %v94 = vld [vmem:[%s0 + $0xd9] sm:$0xff]
  %v95 = vld [vmem:[%s0 + $0xe1] sm:$0xff]
  %v96 = vld [vmem:[%s0 + $0xf1] sm:$0xff]
  %v97 = vld [vmem:[%s0 + $0xf9] sm:$0xff]
  %v98 = vld [vmem:[%s0 + $0x109] sm:$0xff]
  %v99 = vld [vmem:[%s0 + $0x111] sm:$0xff]
  %v100 = vld [vmem:[%s0 + $0x121] sm:$0xff]
  %v101 = vld [vmem:[%s0 + $0x129] sm:$0xff]
  %v102 = vld [vmem:[%s0 + $0x139] sm:$0xff]
  %v103 = vld [vmem:[%s0 + $0x141] sm:$0xff]
  %v104 = vld [vmem:[%s0 + $0x151] sm:$0xff]
  %v105 = vld [vmem:[%s0 + $0x159] sm:$0xff]
  %v106 = vld [vmem:[%s0 + $0x169] sm:$0xff]
  %v107 = vld [vmem:[%s0 + $0x171] sm:$0xff]
  %140 = vrot.lane.b32.xlu0 %v76, 4
  %v141 = vpop.permute.xlu0 %140
  %142 = vrot.lane.b32.xlu0 %v77, 4
  %v143 = vpop.permute.xlu0 %142
  %144 = vrot.lane.b32.xlu0 %v78, 4
  %v145 = vpop.permute.xlu0 %144
  %146 = vrot.lane.b32.xlu0 %v79, 4
  %v147 = vpop.permute.xlu0 %146
  %148 = vrot.lane.b32.xlu0 %v80, 4
  %v149 = vpop.permute.xlu0 %148
  %150 = vrot.lane.b32.xlu0 %v81, 4
  %v151 = vpop.permute.xlu0 %150
  %152 = vrot.lane.b32.xlu0 %v82, 4
  %v153 = vpop.permute.xlu0 %152
  %154 = vrot.lane.b32.xlu0 %v83, 4
  %v155 = vpop.permute.xlu0 %154
  %156 = vrot.lane.b32.xlu0 %v84, 4
  %v157 = vpop.permute.xlu0 %156
  %158 = vrot.lane.b32.xlu0 %v85, 4
  %v159 = vpop.permute.xlu0 %158
  %160 = vrot.lane.b32.xlu0 %v86, 4
  %v161 = vpop.permute.xlu0 %160
  %162 = vrot.lane.b32.xlu0 %v87, 4
  %v163 = vpop.permute.xlu0 %162
  %164 = vrot.lane.b32.xlu0 %v88, 4
  %v165 = vpop.permute.xlu0 %164
  %166 = vrot.lane.b32.xlu0 %v89, 4
  %v167 = vpop.permute.xlu0 %166
  %168 = vrot.lane.b32.xlu0 %v90, 4
  %v169 = vpop.permute.xlu0 %168
  %170 = vrot.lane.b32.xlu0 %v91, 4
  %v171 = vpop.permute.xlu0 %170
  %172 = vrot.lane.b32.xlu0 %v92, 4
  %v173 = vpop.permute.xlu0 %172
  %174 = vrot.lane.b32.xlu0 %v93, 4
  %v175 = vpop.permute.xlu0 %174
  %176 = vrot.lane.b32.xlu0 %v94, 4
  %v177 = vpop.permute.xlu0 %176
  %178 = vrot.lane.b32.xlu0 %v95, 4
  %v179 = vpop.permute.xlu0 %178
  %180 = vrot.lane.b32.xlu0 %v96, 4
  %v181 = vpop.permute.xlu0 %180
  %182 = vrot.lane.b32.xlu0 %v97, 4
  %v183 = vpop.permute.xlu0 %182
  %184 = vrot.lane.b32.xlu0 %v98, 4
  %v185 = vpop.permute.xlu0 %184
  %186 = vrot.lane.b32.xlu0 %v99, 4
  %v187 = vpop.permute.xlu0 %186
  %188 = vrot.lane.b32.xlu0 %v100, 4
  %v189 = vpop.permute.xlu0 %188
  %190 = vrot.lane.b32.xlu0 %v101, 4
  %v191 = vpop.permute.xlu0 %190
  %192 = vrot.lane.b32.xlu0 %v102, 4
  %v193 = vpop.permute.xlu0 %192
  %194 = vrot.lane.b32.xlu0 %v103, 4
  %v195 = vpop.permute.xlu0 %194
  %196 = vrot.lane.b32.xlu0 %v104, 4
  %v197 = vpop.permute.xlu0 %196
  %198 = vrot.lane.b32.xlu0 %v105, 4
  %v199 = vpop.permute.xlu0 %198
  %200 = vrot.lane.b32.xlu0 %v106, 4
  %v201 = vpop.permute.xlu0 %200
  %202 = vrot.lane.b32.xlu0 %v107, 4
  %v203 = vpop.permute.xlu0 %202
  %vm236 = vcmask 64544
  %237 = vst.msk [vmem:[#allocation2] sm:$0xff] %vm236, %v141
  %238 = vst.msk [vmem:[#allocation2 + $0x8] sm:$0xff] %vm236, %v143
  %239 = vst.msk [vmem:[#allocation2 + $0x10] sm:$0xff] %vm236, %v145
  %240 = vst.msk [vmem:[#allocation2 + $0x18] sm:$0xff] %vm236, %v147
  %241 = vst.msk [vmem:[#allocation2 + $0x20] sm:$0xff] %vm236, %v149
  %242 = vst.msk [vmem:[#allocation2 + $0x28] sm:$0xff] %vm236, %v151
  %243 = vst.msk [vmem:[#allocation2 + $0x30] sm:$0xff] %vm236, %v153
  %244 = vst.msk [vmem:[#allocation2 + $0x38] sm:$0xff] %vm236, %v155
  %245 = vst.msk [vmem:[#allocation2 + $0x40] sm:$0xff] %vm236, %v157
  %246 = vst.msk [vmem:[#allocation2 + $0x48] sm:$0xff] %vm236, %v159
  %247 = vst.msk [vmem:[#allocation2 + $0x50] sm:$0xff] %vm236, %v161
  %248 = vst.msk [vmem:[#allocation2 + $0x58] sm:$0xff] %vm236, %v163
  %249 = vst.msk [vmem:[#allocation2 + $0x60] sm:$0xff] %vm236, %v165
  %250 = vst.msk [vmem:[#allocation2 + $0x68] sm:$0xff] %vm236, %v167
  %251 = vst.msk [vmem:[#allocation2 + $0x70] sm:$0xff] %vm236, %v169
  %252 = vst.msk [vmem:[#allocation2 + $0x78] sm:$0xff] %vm236, %v171
  %253 = vst.msk [vmem:[#allocation2 + $0x80] sm:$0xff] %vm236, %v173
  %254 = vst.msk [vmem:[#allocation2 + $0x88] sm:$0xff] %vm236, %v175
  %255 = vst.msk [vmem:[#allocation2 + $0x90] sm:$0xff] %vm236, %v177
  %256 = vst.msk [vmem:[#allocation2 + $0x98] sm:$0xff] %vm236, %v179
  %257 = vst.msk [vmem:[#allocation2 + $0xa0] sm:$0xff] %vm236, %v181
  %258 = vst.msk [vmem:[#allocation2 + $0xa8] sm:$0xff] %vm236, %v183
  %259 = vst.msk [vmem:[#allocation2 + $0xb0] sm:$0xff] %vm236, %v185
  %260 = vst.msk [vmem:[#allocation2 + $0xb8] sm:$0xff] %vm236, %v187
  %261 = vst.msk [vmem:[#allocation2 + $0xc0] sm:$0xff] %vm236, %v189
  %262 = vst.msk [vmem:[#allocation2 + $0xc8] sm:$0xff] %vm236, %v191
  %263 = vst.msk [vmem:[#allocation2 + $0xd0] sm:$0xff] %vm236, %v193
  %264 = vst.msk [vmem:[#allocation2 + $0xd8] sm:$0xff] %vm236, %v195
  %265 = vst.msk [vmem:[#allocation2 + $0xe0] sm:$0xff] %vm236, %v197
  %266 = vst.msk [vmem:[#allocation2 + $0xe8] sm:$0xff] %vm236, %v199
  %267 = vst.msk [vmem:[#allocation2 + $0xf0] sm:$0xff] %vm236, %v201
  %268 = vst.msk [vmem:[#allocation2 + $0xf8] sm:$0xff] %vm236, %v203
  %v269 = vld [vmem:[%s0 + $0x2] sm:$0xff]
  %v270 = vld [vmem:[%s0 + $0xa] sm:$0xff]
  %v271 = vld [vmem:[%s0 + $0x1a] sm:$0xff]
  %v272 = vld [vmem:[%s0 + $0x22] sm:$0xff]
  %v273 = vld [vmem:[%s0 + $0x32] sm:$0xff]
  %v274 = vld [vmem:[%s0 + $0x3a] sm:$0xff]
  %v275 = vld [vmem:[%s0 + $0x4a] sm:$0xff]
  %v276 = vld [vmem:[%s0 + $0x52] sm:$0xff]
  %v277 = vld [vmem:[%s0 + $0x62] sm:$0xff]
  %v278 = vld [vmem:[%s0 + $0x6a] sm:$0xff]
  %v279 = vld [vmem:[%s0 + $0x7a] sm:$0xff]
  %v280 = vld [vmem:[%s0 + $0x82] sm:$0xff]
  %v281 = vld [vmem:[%s0 + $0x92] sm:$0xff]
  %v282 = vld [vmem:[%s0 + $0x9a] sm:$0xff]
  %v283 = vld [vmem:[%s0 + $0xaa] sm:$0xff]
  %v284 = vld [vmem:[%s0 + $0xb2] sm:$0xff]
  %v285 = vld [vmem:[%s0 + $0xc2] sm:$0xff]
  %v286 = vld [vmem:[%s0 + $0xca] sm:$0xff]
  %v287 = vld [vmem:[%s0 + $0xda] sm:$0xff]
  %v288 = vld [vmem:[%s0 + $0xe2] sm:$0xff]
  %v289 = vld [vmem:[%s0 + $0xf2] sm:$0xff]
  %v290 = vld [vmem:[%s0 + $0xfa] sm:$0xff]
  %v291 = vld [vmem:[%s0 + $0x10a] sm:$0xff]
  %v292 = vld [vmem:[%s0 + $0x112] sm:$0xff]
  %v293 = vld [vmem:[%s0 + $0x122] sm:$0xff]
  %v294 = vld [vmem:[%s0 + $0x12a] sm:$0xff]
  %v295 = vld [vmem:[%s0 + $0x13a] sm:$0xff]
  %v296 = vld [vmem:[%s0 + $0x142] sm:$0xff]
  %v297 = vld [vmem:[%s0 + $0x152] sm:$0xff]
  %v298 = vld [vmem:[%s0 + $0x15a] sm:$0xff]
  %v299 = vld [vmem:[%s0 + $0x16a] sm:$0xff]
  %v300 = vld [vmem:[%s0 + $0x172] sm:$0xff]
  %333 = vrot.lane.b32.xlu0 %v269, 8
  %v334 = vpop.permute.xlu0 %333
  %335 = vrot.lane.b32.xlu0 %v270, 8
  %v336 = vpop.permute.xlu0 %335
  %337 = vrot.lane.b32.xlu0 %v271, 8
  %v338 = vpop.permute.xlu0 %337
  %339 = vrot.lane.b32.xlu0 %v272, 8
  %v340 = vpop.permute.xlu0 %339
  %341 = vrot.lane.b32.xlu0 %v273, 8
  %v342 = vpop.permute.xlu0 %341
  %343 = vrot.lane.b32.xlu0 %v274, 8
  %v344 = vpop.permute.xlu0 %343
  %345 = vrot.lane.b32.xlu0 %v275, 8
  %v346 = vpop.permute.xlu0 %345
  %347 = vrot.lane.b32.xlu0 %v276, 8
  %v348 = vpop.permute.xlu0 %347
  %349 = vrot.lane.b32.xlu0 %v277, 8
  %v350 = vpop.permute.xlu0 %349
  %351 = vrot.lane.b32.xlu0 %v278, 8
  %v352 = vpop.permute.xlu0 %351
  %353 = vrot.lane.b32.xlu0 %v279, 8
  %v354 = vpop.permute.xlu0 %353
  %355 = vrot.lane.b32.xlu0 %v280, 8
  %v356 = vpop.permute.xlu0 %355
  %357 = vrot.lane.b32.xlu0 %v281, 8
  %v358 = vpop.permute.xlu0 %357
  %359 = vrot.lane.b32.xlu0 %v282, 8
  %v360 = vpop.permute.xlu0 %359
  %361 = vrot.lane.b32.xlu0 %v283, 8
  %v362 = vpop.permute.xlu0 %361
  %363 = vrot.lane.b32.xlu0 %v284, 8
  %v364 = vpop.permute.xlu0 %363
  %365 = vrot.lane.b32.xlu0 %v285, 8
  %v366 = vpop.permute.xlu0 %365
  %367 = vrot.lane.b32.xlu0 %v286, 8
  %v368 = vpop.permute.xlu0 %367
  %369 = vrot.lane.b32.xlu0 %v287, 8
  %v370 = vpop.permute.xlu0 %369
  %371 = vrot.lane.b32.xlu0 %v288, 8
  %v372 = vpop.permute.xlu0 %371
  %373 = vrot.lane.b32.xlu0 %v289, 8
  %v374 = vpop.permute.xlu0 %373
  %375 = vrot.lane.b32.xlu0 %v290, 8
  %v376 = vpop.permute.xlu0 %375
  %377 = vrot.lane.b32.xlu0 %v291, 8
  %v378 = vpop.permute.xlu0 %377
  %379 = vrot.lane.b32.xlu0 %v292, 8
  %v380 = vpop.permute.xlu0 %379
  %381 = vrot.lane.b32.xlu0 %v293, 8
  %v382 = vpop.permute.xlu0 %381
  %383 = vrot.lane.b32.xlu0 %v294, 8
  %v384 = vpop.permute.xlu0 %383
  %385 = vrot.lane.b32.xlu0 %v295, 8
  %v386 = vpop.permute.xlu0 %385
  %387 = vrot.lane.b32.xlu0 %v296, 8
  %v388 = vpop.permute.xlu0 %387
  %389 = vrot.lane.b32.xlu0 %v297, 8
  %v390 = vpop.permute.xlu0 %389
  %391 = vrot.lane.b32.xlu0 %v298, 8
  %v392 = vpop.permute.xlu0 %391
  %393 = vrot.lane.b32.xlu0 %v299, 8
  %v394 = vpop.permute.xlu0 %393
  %395 = vrot.lane.b32.xlu0 %v300, 8
  %v396 = vpop.permute.xlu0 %395
  %vm429 = vcmask 97344
  %430 = vst.msk [vmem:[#allocation2] sm:$0xff] %vm429, %v334
  %431 = vst.msk [vmem:[#allocation2 + $0x8] sm:$0xff] %vm429, %v336
  %432 = vst.msk [vmem:[#allocation2 + $0x10] sm:$0xff] %vm429, %v338
  %433 = vst.msk [vmem:[#allocation2 + $0x18] sm:$0xff] %vm429, %v340
  %434 = vst.msk [vmem:[#allocation2 + $0x20] sm:$0xff] %vm429, %v342
  %435 = vst.msk [vmem:[#allocation2 + $0x28] sm:$0xff] %vm429, %v344
  %436 = vst.msk [vmem:[#allocation2 + $0x30] sm:$0xff] %vm429, %v346
  %437 = vst.msk [vmem:[#allocation2 + $0x38] sm:$0xff] %vm429, %v348
  %438 = vst.msk [vmem:[#allocation2 + $0x40] sm:$0xff] %vm429, %v350
  %439 = vst.msk [vmem:[#allocation2 + $0x48] sm:$0xff] %vm429, %v352
  %440 = vst.msk [vmem:[#allocation2 + $0x50] sm:$0xff] %vm429, %v354
  %441 = vst.msk [vmem:[#allocation2 + $0x58] sm:$0xff] %vm429, %v356
  %442 = vst.msk [vmem:[#allocation2 + $0x60] sm:$0xff] %vm429, %v358
  %443 = vst.msk [vmem:[#allocation2 + $0x68] sm:$0xff] %vm429, %v360
  %444 = vst.msk [vmem:[#allocation2 + $0x70] sm:$0xff] %vm429, %v362
  %445 = vst.msk [vmem:[#allocation2 + $0x78] sm:$0xff] %vm429, %v364
  %446 = vst.msk [vmem:[#allocation2 + $0x80] sm:$0xff] %vm429, %v366
  %447 = vst.msk [vmem:[#allocation2 + $0x88] sm:$0xff] %vm429, %v368
  %448 = vst.msk [vmem:[#allocation2 + $0x90] sm:$0xff] %vm429, %v370
  %449 = vst.msk [vmem:[#allocation2 + $0x98] sm:$0xff] %vm429, %v372
  %450 = vst.msk [vmem:[#allocation2 + $0xa0] sm:$0xff] %vm429, %v374
  %451 = vst.msk [vmem:[#allocation2 + $0xa8] sm:$0xff] %vm429, %v376
  %452 = vst.msk [vmem:[#allocation2 + $0xb0] sm:$0xff] %vm429, %v378
  %453 = vst.msk [vmem:[#allocation2 + $0xb8] sm:$0xff] %vm429, %v380
  %454 = vst.msk [vmem:[#allocation2 + $0xc0] sm:$0xff] %vm429, %v382
  %455 = vst.msk [vmem:[#allocation2 + $0xc8] sm:$0xff] %vm429, %v384
  %456 = vst.msk [vmem:[#allocation2 + $0xd0] sm:$0xff] %vm429, %v386
  %457 = vst.msk [vmem:[#allocation2 + $0xd8] sm:$0xff] %vm429, %v388
  %458 = vst.msk [vmem:[#allocation2 + $0xe0] sm:$0xff] %vm429, %v390
  %459 = vst.msk [vmem:[#allocation2 + $0xe8] sm:$0xff] %vm429, %v392
  %460 = vst.msk [vmem:[#allocation2 + $0xf0] sm:$0xff] %vm429, %v394
  %461 = vst.msk [vmem:[#allocation2 + $0xf8] sm:$0xff] %vm429, %v396
  %s462 = scalar_lea.vmem %s0, 24
  %v463 = vld [vmem:[%s462] sm:$0xff]
  %v464 = vld [vmem:[%s462 + $0x8] sm:$0xff]
  %v465 = vld [vmem:[%s462 + $0x18] sm:$0xff]
  %v466 = vld [vmem:[%s462 + $0x20] sm:$0xff]
  %v467 = vld [vmem:[%s462 + $0x30] sm:$0xff]
  %v468 = vld [vmem:[%s462 + $0x38] sm:$0xff]
  %v469 = vld [vmem:[%s462 + $0x48] sm:$0xff]
  %v470 = vld [vmem:[%s462 + $0x50] sm:$0xff]
  %v471 = vld [vmem:[%s462 + $0x60] sm:$0xff]
  %v472 = vld [vmem:[%s462 + $0x68] sm:$0xff]
  %v473 = vld [vmem:[%s462 + $0x78] sm:$0xff]
  %v474 = vld [vmem:[%s462 + $0x80] sm:$0xff]
  %v475 = vld [vmem:[%s462 + $0x90] sm:$0xff]
  %v476 = vld [vmem:[%s462 + $0x98] sm:$0xff]
  %v477 = vld [vmem:[%s462 + $0xa8] sm:$0xff]
  %v478 = vld [vmem:[%s462 + $0xb0] sm:$0xff]
  %v479 = vld [vmem:[%s462 + $0xc0] sm:$0xff]
  %v480 = vld [vmem:[%s462 + $0xc8] sm:$0xff]
  %v481 = vld [vmem:[%s462 + $0xd8] sm:$0xff]
  %v482 = vld [vmem:[%s462 + $0xe0] sm:$0xff]
  %v483 = vld [vmem:[%s462 + $0xf0] sm:$0xff]
  %v484 = vld [vmem:[%s462 + $0xf8] sm:$0xff]
  %v485 = vld [vmem:[%s462 + $0x108] sm:$0xff]
  %v486 = vld [vmem:[%s462 + $0x110] sm:$0xff]
  %v487 = vld [vmem:[%s462 + $0x120] sm:$0xff]
  %v488 = vld [vmem:[%s462 + $0x128] sm:$0xff]
  %v489 = vld [vmem:[%s462 + $0x138] sm:$0xff]
  %v490 = vld [vmem:[%s462 + $0x140] sm:$0xff]
  %v491 = vld [vmem:[%s462 + $0x150] sm:$0xff]
  %v492 = vld [vmem:[%s462 + $0x158] sm:$0xff]
  %v493 = vld [vmem:[%s462 + $0x168] sm:$0xff]
  %v494 = vld [vmem:[%s462 + $0x170] sm:$0xff]
  %527 = vrot.lane.b32.xlu0 %v463, 12
  %v528 = vpop.permute.xlu0 %527
  %529 = vrot.lane.b32.xlu0 %v464, 12
  %v530 = vpop.permute.xlu0 %529
  %531 = vrot.lane.b32.xlu0 %v465, 12
  %v532 = vpop.permute.xlu0 %531
  %533 = vrot.lane.b32.xlu0 %v466, 12
  %v534 = vpop.permute.xlu0 %533
  %535 = vrot.lane.b32.xlu0 %v467, 12
  %v536 = vpop.permute.xlu0 %535
  %537 = vrot.lane.b32.xlu0 %v468, 12
  %v538 = vpop.permute.xlu0 %537
  %539 = vrot.lane.b32.xlu0 %v469, 12
  %v540 = vpop.permute.xlu0 %539
  %541 = vrot.lane.b32.xlu0 %v470, 12
  %v542 = vpop.permute.xlu0 %541
  %543 = vrot.lane.b32.xlu0 %v471, 12
  %v544 = vpop.permute.xlu0 %543
  %545 = vrot.lane.b32.xlu0 %v472, 12
  %v546 = vpop.permute.xlu0 %545
  %547 = vrot.lane.b32.xlu0 %v473, 12
  %v548 = vpop.permute.xlu0 %547
  %549 = vrot.lane.b32.xlu0 %v474, 12
  %v550 = vpop.permute.xlu0 %549
  %551 = vrot.lane.b32.xlu0 %v475, 12
  %v552 = vpop.permute.xlu0 %551
  %553 = vrot.lane.b32.xlu0 %v476, 12
  %v554 = vpop.permute.xlu0 %553
  %555 = vrot.lane.b32.xlu0 %v477, 12
  %v556 = vpop.permute.xlu0 %555
  %557 = vrot.lane.b32.xlu0 %v478, 12
  %v558 = vpop.permute.xlu0 %557
  %559 = vrot.lane.b32.xlu0 %v479, 12
  %v560 = vpop.permute.xlu0 %559
  %561 = vrot.lane.b32.xlu0 %v480, 12
  %v562 = vpop.permute.xlu0 %561
  %563 = vrot.lane.b32.xlu0 %v481, 12
  %v564 = vpop.permute.xlu0 %563
  %565 = vrot.lane.b32.xlu0 %v482, 12
  %v566 = vpop.permute.xlu0 %565
  %567 = vrot.lane.b32.xlu0 %v483, 12
  %v568 = vpop.permute.xlu0 %567
  %569 = vrot.lane.b32.xlu0 %v484, 12
  %v570 = vpop.permute.xlu0 %569
  %571 = vrot.lane.b32.xlu0 %v485, 12
  %v572 = vpop.permute.xlu0 %571
  %573 = vrot.lane.b32.xlu0 %v486, 12
  %v574 = vpop.permute.xlu0 %573
  %575 = vrot.lane.b32.xlu0 %v487, 12
  %v576 = vpop.permute.xlu0 %575
  %577 = vrot.lane.b32.xlu0 %v488, 12
  %v578 = vpop.permute.xlu0 %577
  %579 = vrot.lane.b32.xlu0 %v489, 12
  %v580 = vpop.permute.xlu0 %579
  %581 = vrot.lane.b32.xlu0 %v490, 12
  %v582 = vpop.permute.xlu0 %581
  %583 = vrot.lane.b32.xlu0 %v491, 12
  %v584 = vpop.permute.xlu0 %583
  %585 = vrot.lane.b32.xlu0 %v492, 12
  %v586 = vpop.permute.xlu0 %585
  %587 = vrot.lane.b32.xlu0 %v493, 12
  %v588 = vpop.permute.xlu0 %587
  %589 = vrot.lane.b32.xlu0 %v494, 12
  %v590 = vpop.permute.xlu0 %589
  %vm623 = vcmask 130144
  %624 = vst.msk [vmem:[#allocation2] sm:$0xff] %vm623, %v528
  %625 = vst.msk [vmem:[#allocation2 + $0x8] sm:$0xff] %vm623, %v530
  %626 = vst.msk [vmem:[#allocation2 + $0x10] sm:$0xff] %vm623, %v532
  %627 = vst.msk [vmem:[#allocation2 + $0x18] sm:$0xff] %vm623, %v534
  %628 = vst.msk [vmem:[#allocation2 + $0x20] sm:$0xff] %vm623, %v536
  %629 = vst.msk [vmem:[#allocation2 + $0x28] sm:$0xff] %vm623, %v538
  %630 = vst.msk [vmem:[#allocation2 + $0x30] sm:$0xff] %vm623, %v540
  %631 = vst.msk [vmem:[#allocation2 + $0x38] sm:$0xff] %vm623, %v542
  %632 = vst.msk [vmem:[#allocation2 + $0x40] sm:$0xff] %vm623, %v544
  %633 = vst.msk [vmem:[#allocation2 + $0x48] sm:$0xff] %vm623, %v546
  %634 = vst.msk [vmem:[#allocation2 + $0x50] sm:$0xff] %vm623, %v548
  %635 = vst.msk [vmem:[#allocation2 + $0x58] sm:$0xff] %vm623, %v550
  %636 = vst.msk [vmem:[#allocation2 + $0x60] sm:$0xff] %vm623, %v552
  %637 = vst.msk [vmem:[#allocation2 + $0x68] sm:$0xff] %vm623, %v554
  %638 = vst.msk [vmem:[#allocation2 + $0x70] sm:$0xff] %vm623, %v556
  %639 = vst.msk [vmem:[#allocation2 + $0x78] sm:$0xff] %vm623, %v558
  %640 = vst.msk [vmem:[#allocation2 + $0x80] sm:$0xff] %vm623, %v560
  %641 = vst.msk [vmem:[#allocation2 + $0x88] sm:$0xff] %vm623, %v562
  %642 = vst.msk [vmem:[#allocation2 + $0x90] sm:$0xff] %vm623, %v564
  %643 = vst.msk [vmem:[#allocation2 + $0x98] sm:$0xff] %vm623, %v566
  %644 = vst.msk [vmem:[#allocation2 + $0xa0] sm:$0xff] %vm623, %v568
  %645 = vst.msk [vmem:[#allocation2 + $0xa8] sm:$0xff] %vm623, %v570
  %646 = vst.msk [vmem:[#allocation2 + $0xb0] sm:$0xff] %vm623, %v572
  %647 = vst.msk [vmem:[#allocation2 + $0xb8] sm:$0xff] %vm623, %v574
  %648 = vst.msk [vmem:[#allocation2 + $0xc0] sm:$0xff] %vm623, %v576
  %649 = vst.msk [vmem:[#allocation2 + $0xc8] sm:$0xff] %vm623, %v578
  %650 = vst.msk [vmem:[#allocation2 + $0xd0] sm:$0xff] %vm623, %v580
  %651 = vst.msk [vmem:[#allocation2 + $0xd8] sm:$0xff] %vm623, %v582
  %652 = vst.msk [vmem:[#allocation2 + $0xe0] sm:$0xff] %vm623, %v584
  %653 = vst.msk [vmem:[#allocation2 + $0xe8] sm:$0xff] %vm623, %v586
  %654 = vst.msk [vmem:[#allocation2 + $0xf0] sm:$0xff] %vm623, %v588
  %655 = vst.msk [vmem:[#allocation2 + $0xf8] sm:$0xff] %vm623, %v590
  %v656 = vld [vmem:[%s462 + $0x1] sm:$0xff]
  %v657 = vld [vmem:[%s462 + $0x9] sm:$0xff]
  %v658 = vld [vmem:[%s462 + $0x19] sm:$0xff]
  %v659 = vld [vmem:[%s462 + $0x21] sm:$0xff]
  %v660 = vld [vmem:[%s462 + $0x31] sm:$0xff]
  %v661 = vld [vmem:[%s462 + $0x39] sm:$0xff]
  %v662 = vld [vmem:[%s462 + $0x49] sm:$0xff]
  %v663 = vld [vmem:[%s462 + $0x51] sm:$0xff]
  %v664 = vld [vmem:[%s462 + $0x61] sm:$0xff]
  %v665 = vld [vmem:[%s462 + $0x69] sm:$0xff]
  %v666 = vld [vmem:[%s462 + $0x79] sm:$0xff]
  %v667 = vld [vmem:[%s462 + $0x81] sm:$0xff]
  %v668 = vld [vmem:[%s462 + $0x91] sm:$0xff]
  %v669 = vld [vmem:[%s462 + $0x99] sm:$0xff]
  %v670 = vld [vmem:[%s462 + $0xa9] sm:$0xff]
  %v671 = vld [vmem:[%s462 + $0xb1] sm:$0xff]
  %v672 = vld [vmem:[%s462 + $0xc1] sm:$0xff]
  %v673 = vld [vmem:[%s462 + $0xc9] sm:$0xff]
  %v674 = vld [vmem:[%s462 + $0xd9] sm:$0xff]
  %v675 = vld [vmem:[%s462 + $0xe1] sm:$0xff]
  %v676 = vld [vmem:[%s462 + $0xf1] sm:$0xff]
  %v677 = vld [vmem:[%s462 + $0xf9] sm:$0xff]
  %v678 = vld [vmem:[%s462 + $0x109] sm:$0xff]
  %v679 = vld [vmem:[%s462 + $0x111] sm:$0xff]
  %v680 = vld [vmem:[%s462 + $0x121] sm:$0xff]
  %v681 = vld [vmem:[%s462 + $0x129] sm:$0xff]
  %v682 = vld [vmem:[%s462 + $0x139] sm:$0xff]
  %v683 = vld [vmem:[%s462 + $0x141] sm:$0xff]
  %v684 = vld [vmem:[%s462 + $0x151] sm:$0xff]
  %v685 = vld [vmem:[%s462 + $0x159] sm:$0xff]
  %v686 = vld [vmem:[%s462 + $0x169] sm:$0xff]
  %v687 = vld [vmem:[%s462 + $0x171] sm:$0xff]
  %720 = vrot.lane.b32.xlu0 %v656, 16
  %v721 = vpop.permute.xlu0 %720
  %722 = vrot.lane.b32.xlu0 %v657, 16
  %v723 = vpop.permute.xlu0 %722
  %724 = vrot.lane.b32.xlu0 %v658, 16
  %v725 = vpop.permute.xlu0 %724
  %726 = vrot.lane.b32.xlu0 %v659, 16
  %v727 = vpop.permute.xlu0 %726
  %728 = vrot.lane.b32.xlu0 %v660, 16
  %v729 = vpop.permute.xlu0 %728
  %730 = vrot.lane.b32.xlu0 %v661, 16
  %v731 = vpop.permute.xlu0 %730
  %732 = vrot.lane.b32.xlu0 %v662, 16
  %v733 = vpop.permute.xlu0 %732
  %734 = vrot.lane.b32.xlu0 %v663, 16
  %v735 = vpop.permute.xlu0 %734
  %736 = vrot.lane.b32.xlu0 %v664, 16
  %v737 = vpop.permute.xlu0 %736
  %738 = vrot.lane.b32.xlu0 %v665, 16
  %v739 = vpop.permute.xlu0 %738
  %740 = vrot.lane.b32.xlu0 %v666, 16
  %v741 = vpop.permute.xlu0 %740
  %742 = vrot.lane.b32.xlu0 %v667, 16
  %v743 = vpop.permute.xlu0 %742
  %744 = vrot.lane.b32.xlu0 %v668, 16
  %v745 = vpop.permute.xlu0 %744
  %746 = vrot.lane.b32.xlu0 %v669, 16
  %v747 = vpop.permute.xlu0 %746
  %748 = vrot.lane.b32.xlu0 %v670, 16
  %v749 = vpop.permute.xlu0 %748
  %750 = vrot.lane.b32.xlu0 %v671, 16
  %v751 = vpop.permute.xlu0 %750
  %752 = vrot.lane.b32.xlu0 %v672, 16
  %v753 = vpop.permute.xlu0 %752
  %754 = vrot.lane.b32.xlu0 %v673, 16
  %v755 = vpop.permute.xlu0 %754
  %756 = vrot.lane.b32.xlu0 %v674, 16
  %v757 = vpop.permute.xlu0 %756
  %758 = vrot.lane.b32.xlu0 %v675, 16
  %v759 = vpop.permute.xlu0 %758
  %760 = vrot.lane.b32.xlu0 %v676, 16
  %v761 = vpop.permute.xlu0 %760
  %762 = vrot.lane.b32.xlu0 %v677, 16
  %v763 = vpop.permute.xlu0 %762
  %764 = vrot.lane.b32.xlu0 %v678, 16
  %v765 = vpop.permute.xlu0 %764
  %766 = vrot.lane.b32.xlu0 %v679, 16
  %v767 = vpop.permute.xlu0 %766
  %768 = vrot.lane.b32.xlu0 %v680, 16
  %v769 = vpop.permute.xlu0 %768
  %770 = vrot.lane.b32.xlu0 %v681, 16
  %v771 = vpop.permute.xlu0 %770
  %772 = vrot.lane.b32.xlu0 %v682, 16
  %v773 = vpop.permute.xlu0 %772
  %774 = vrot.lane.b32.xlu0 %v683, 16
  %v775 = vpop.permute.xlu0 %774
  %776 = vrot.lane.b32.xlu0 %v684, 16
  %v777 = vpop.permute.xlu0 %776
  %778 = vrot.lane.b32.xlu0 %v685, 16
  %v779 = vpop.permute.xlu0 %778
  %780 = vrot.lane.b32.xlu0 %v686, 16
  %v781 = vpop.permute.xlu0 %780
  %782 = vrot.lane.b32.xlu0 %v687, 16
  %v783 = vpop.permute.xlu0 %782
  %vm816 = vcmask 162944
  %817 = vst.msk [vmem:[#allocation2] sm:$0xff] %vm816, %v721
  %818 = vst.msk [vmem:[#allocation2 + $0x8] sm:$0xff] %vm816, %v723
  %819 = vst.msk [vmem:[#allocation2 + $0x10] sm:$0xff] %vm816, %v725
  %820 = vst.msk [vmem:[#allocation2 + $0x18] sm:$0xff] %vm816, %v727
  %821 = vst.msk [vmem:[#allocation2 + $0x20] sm:$0xff] %vm816, %v729
  %822 = vst.msk [vmem:[#allocation2 + $0x28] sm:$0xff] %vm816, %v731
  %823 = vst.msk [vmem:[#allocation2 + $0x30] sm:$0xff] %vm816, %v733
  %824 = vst.msk [vmem:[#allocation2 + $0x38] sm:$0xff] %vm816, %v735
  %825 = vst.msk [vmem:[#allocation2 + $0x40] sm:$0xff] %vm816, %v737
  %826 = vst.msk [vmem:[#allocation2 + $0x48] sm:$0xff] %vm816, %v739
  %827 = vst.msk [vmem:[#allocation2 + $0x50] sm:$0xff] %vm816, %v741
  %828 = vst.msk [vmem:[#allocation2 + $0x58] sm:$0xff] %vm816, %v743
  %829 = vst.msk [vmem:[#allocation2 + $0x60] sm:$0xff] %vm816, %v745
  %830 = vst.msk [vmem:[#allocation2 + $0x68] sm:$0xff] %vm816, %v747
  %831 = vst.msk [vmem:[#allocation2 + $0x70] sm:$0xff] %vm816, %v749
  %832 = vst.msk [vmem:[#allocation2 + $0x78] sm:$0xff] %vm816, %v751
  %833 = vst.msk [vmem:[#allocation2 + $0x80] sm:$0xff] %vm816, %v753
  %834 = vst.msk [vmem:[#allocation2 + $0x88] sm:$0xff] %vm816, %v755
  %835 = vst.msk [vmem:[#allocation2 + $0x90] sm:$0xff] %vm816, %v757
  %836 = vst.msk [vmem:[#allocation2 + $0x98] sm:$0xff] %vm816, %v759
  %837 = vst.msk [vmem:[#allocation2 + $0xa0] sm:$0xff] %vm816, %v761
  %838 = vst.msk [vmem:[#allocation2 + $0xa8] sm:$0xff] %vm816, %v763
  %839 = vst.msk [vmem:[#allocation2 + $0xb0] sm:$0xff] %vm816, %v765
  %840 = vst.msk [vmem:[#allocation2 + $0xb8] sm:$0xff] %vm816, %v767
  %841 = vst.msk [vmem:[#allocation2 + $0xc0] sm:$0xff] %vm816, %v769
  %842 = vst.msk [vmem:[#allocation2 + $0xc8] sm:$0xff] %vm816, %v771
  %843 = vst.msk [vmem:[#allocation2 + $0xd0] sm:$0xff] %vm816, %v773
  %844 = vst.msk [vmem:[#allocation2 + $0xd8] sm:$0xff] %vm816, %v775
  %845 = vst.msk [vmem:[#allocation2 + $0xe0] sm:$0xff] %vm816, %v777
  %846 = vst.msk [vmem:[#allocation2 + $0xe8] sm:$0xff] %vm816, %v779
  %847 = vst.msk [vmem:[#allocation2 + $0xf0] sm:$0xff] %vm816, %v781
  %848 = vst.msk [vmem:[#allocation2 + $0xf8] sm:$0xff] %vm816, %v783
  %v849 = vld [vmem:[%s462 + $0x2] sm:$0xff]
  %v850 = vld [vmem:[%s462 + $0xa] sm:$0xff]
  %v851 = vld [vmem:[%s462 + $0x1a] sm:$0xff]
  %v852 = vld [vmem:[%s462 + $0x22] sm:$0xff]
  %v853 = vld [vmem:[%s462 + $0x32] sm:$0xff]
  %v854 = vld [vmem:[%s462 + $0x3a] sm:$0xff]
  %v855 = vld [vmem:[%s462 + $0x4a] sm:$0xff]
  %v856 = vld [vmem:[%s462 + $0x52] sm:$0xff]
  %v857 = vld [vmem:[%s462 + $0x62] sm:$0xff]
  %v858 = vld [vmem:[%s462 + $0x6a] sm:$0xff]
  %v859 = vld [vmem:[%s462 + $0x7a] sm:$0xff]
  %v860 = vld [vmem:[%s462 + $0x82] sm:$0xff]
  %v861 = vld [vmem:[%s462 + $0x92] sm:$0xff]
  %v862 = vld [vmem:[%s462 + $0x9a] sm:$0xff]
  %v863 = vld [vmem:[%s462 + $0xaa] sm:$0xff]
  %v864 = vld [vmem:[%s462 + $0xb2] sm:$0xff]
  %v865 = vld [vmem:[%s462 + $0xc2] sm:$0xff]
  %v866 = vld [vmem:[%s462 + $0xca] sm:$0xff]
  %v867 = vld [vmem:[%s462 + $0xda] sm:$0xff]
  %v868 = vld [vmem:[%s462 + $0xe2] sm:$0xff]
  %v869 = vld [vmem:[%s462 + $0xf2] sm:$0xff]
  %v870 = vld [vmem:[%s462 + $0xfa] sm:$0xff]
  %v871 = vld [vmem:[%s462 + $0x10a] sm:$0xff]
  %v872 = vld [vmem:[%s462 + $0x112] sm:$0xff]
  %v873 = vld [vmem:[%s462 + $0x122] sm:$0xff]
  %v874 = vld [vmem:[%s462 + $0x12a] sm:$0xff]
  %v875 = vld [vmem:[%s462 + $0x13a] sm:$0xff]
  %v876 = vld [vmem:[%s462 + $0x142] sm:$0xff]
  %v877 = vld [vmem:[%s462 + $0x152] sm:$0xff]
  %v878 = vld [vmem:[%s462 + $0x15a] sm:$0xff]
  %v879 = vld [vmem:[%s462 + $0x16a] sm:$0xff]
  %v880 = vld [vmem:[%s462 + $0x172] sm:$0xff]
  %913 = vrot.lane.b32.xlu0 %v849, 20
  %v914 = vpop.permute.xlu0 %913
  %915 = vrot.lane.b32.xlu0 %v850, 20
  %v916 = vpop.permute.xlu0 %915
  %917 = vrot.lane.b32.xlu0 %v851, 20
  %v918 = vpop.permute.xlu0 %917
  %919 = vrot.lane.b32.xlu0 %v852, 20
  %v920 = vpop.permute.xlu0 %919
  %921 = vrot.lane.b32.xlu0 %v853, 20
  %v922 = vpop.permute.xlu0 %921
  %923 = vrot.lane.b32.xlu0 %v854, 20
  %v924 = vpop.permute.xlu0 %923
  %925 = vrot.lane.b32.xlu0 %v855, 20
  %v926 = vpop.permute.xlu0 %925
  %927 = vrot.lane.b32.xlu0 %v856, 20
  %v928 = vpop.permute.xlu0 %927
  %929 = vrot.lane.b32.xlu0 %v857, 20
  %v930 = vpop.permute.xlu0 %929
  %931 = vrot.lane.b32.xlu0 %v858, 20
  %v932 = vpop.permute.xlu0 %931
  %933 = vrot.lane.b32.xlu0 %v859, 20
  %v934 = vpop.permute.xlu0 %933
  %935 = vrot.lane.b32.xlu0 %v860, 20
  %v936 = vpop.permute.xlu0 %935
  %937 = vrot.lane.b32.xlu0 %v861, 20
  %v938 = vpop.permute.xlu0 %937
  %939 = vrot.lane.b32.xlu0 %v862, 20
  %v940 = vpop.permute.xlu0 %939
  %941 = vrot.lane.b32.xlu0 %v863, 20
  %v942 = vpop.permute.xlu0 %941
  %943 = vrot.lane.b32.xlu0 %v864, 20
  %v944 = vpop.permute.xlu0 %943
  %945 = vrot.lane.b32.xlu0 %v865, 20
  %v946 = vpop.permute.xlu0 %945
  %947 = vrot.lane.b32.xlu0 %v866, 20
  %v948 = vpop.permute.xlu0 %947
  %949 = vrot.lane.b32.xlu0 %v867, 20
  %v950 = vpop.permute.xlu0 %949
  %951 = vrot.lane.b32.xlu0 %v868, 20
  %v952 = vpop.permute.xlu0 %951
  %953 = vrot.lane.b32.xlu0 %v869, 20
  %v954 = vpop.permute.xlu0 %953
  %955 = vrot.lane.b32.xlu0 %v870, 20
  %v956 = vpop.permute.xlu0 %955
  %957 = vrot.lane.b32.xlu0 %v871, 20
  %v958 = vpop.permute.xlu0 %957
  %959 = vrot.lane.b32.xlu0 %v872, 20
  %v960 = vpop.permute.xlu0 %959
  %961 = vrot.lane.b32.xlu0 %v873, 20
  %v962 = vpop.permute.xlu0 %961
  %963 = vrot.lane.b32.xlu0 %v874, 20
  %v964 = vpop.permute.xlu0 %963
  %965 = vrot.lane.b32.xlu0 %v875, 20
  %v966 = vpop.permute.xlu0 %965
  %967 = vrot.lane.b32.xlu0 %v876, 20
  %v968 = vpop.permute.xlu0 %967
  %969 = vrot.lane.b32.xlu0 %v877, 20
  %v970 = vpop.permute.xlu0 %969
  %971 = vrot.lane.b32.xlu0 %v878, 20
  %v972 = vpop.permute.xlu0 %971
  %973 = vrot.lane.b32.xlu0 %v879, 20
  %v974 = vpop.permute.xlu0 %973
  %975 = vrot.lane.b32.xlu0 %v880, 20
  %v976 = vpop.permute.xlu0 %975
  %vm1009 = vcmask 195744
  %1010 = vst.msk [vmem:[#allocation2] sm:$0xff] %vm1009, %v914
  %1011 = vst.msk [vmem:[#allocation2 + $0x8] sm:$0xff] %vm1009, %v916
  %1012 = vst.msk [vmem:[#allocation2 + $0x10] sm:$0xff] %vm1009, %v918
  %1013 = vst.msk [vmem:[#allocation2 + $0x18] sm:$0xff] %vm1009, %v920
  %1014 = vst.msk [vmem:[#allocation2 + $0x20] sm:$0xff] %vm1009, %v922
  %1015 = vst.msk [vmem:[#allocation2 + $0x28] sm:$0xff] %vm1009, %v924
  %1016 = vst.msk [vmem:[#allocation2 + $0x30] sm:$0xff] %vm1009, %v926
  %1017 = vst.msk [vmem:[#allocation2 + $0x38] sm:$0xff] %vm1009, %v928
  %1018 = vst.msk [vmem:[#allocation2 + $0x40] sm:$0xff] %vm1009, %v930
  %1019 = vst.msk [vmem:[#allocation2 + $0x48] sm:$0xff] %vm1009, %v932
  %1020 = vst.msk [vmem:[#allocation2 + $0x50] sm:$0xff] %vm1009, %v934
  %1021 = vst.msk [vmem:[#allocation2 + $0x58] sm:$0xff] %vm1009, %v936
  %1022 = vst.msk [vmem:[#allocation2 + $0x60] sm:$0xff] %vm1009, %v938
  %1023 = vst.msk [vmem:[#allocation2 + $0x68] sm:$0xff] %vm1009, %v940
  %1024 = vst.msk [vmem:[#allocation2 + $0x70] sm:$0xff] %vm1009, %v942
  %1025 = vst.msk [vmem:[#allocation2 + $0x78] sm:$0xff] %vm1009, %v944
  %1026 = vst.msk [vmem:[#allocation2 + $0x80] sm:$0xff] %vm1009, %v946
  %1027 = vst.msk [vmem:[#allocation2 + $0x88] sm:$0xff] %vm1009, %v948
  %1028 = vst.msk [vmem:[#allocation2 + $0x90] sm:$0xff] %vm1009, %v950
  %1029 = vst.msk [vmem:[#allocation2 + $0x98] sm:$0xff] %vm1009, %v952
  %1030 = vst.msk [vmem:[#allocation2 + $0xa0] sm:$0xff] %vm1009, %v954
  %1031 = vst.msk [vmem:[#allocation2 + $0xa8] sm:$0xff] %vm1009, %v956
  %1032 = vst.msk [vmem:[#allocation2 + $0xb0] sm:$0xff] %vm1009, %v958
  %1033 = vst.msk [vmem:[#allocation2 + $0xb8] sm:$0xff] %vm1009, %v960
  %1034 = vst.msk [vmem:[#allocation2 + $0xc0] sm:$0xff] %vm1009, %v962
  %1035 = vst.msk [vmem:[#allocation2 + $0xc8] sm:$0xff] %vm1009, %v964
  %1036 = vst.msk [vmem:[#allocation2 + $0xd0] sm:$0xff] %vm1009, %v966
  %1037 = vst.msk [vmem:[#allocation2 + $0xd8] sm:$0xff] %vm1009, %v968
  %1038 = vst.msk [vmem:[#allocation2 + $0xe0] sm:$0xff] %vm1009, %v970
  %1039 = vst.msk [vmem:[#allocation2 + $0xe8] sm:$0xff] %vm1009, %v972
  %1040 = vst.msk [vmem:[#allocation2 + $0xf0] sm:$0xff] %vm1009, %v974
  %1041 = vst.msk [vmem:[#allocation2 + $0xf8] sm:$0xff] %vm1009, %v976
  %s1042 = scalar_lea.vmem %s0, 48
  %v1043 = vld [vmem:[%s1042] sm:$0xff]
  %v1044 = vld [vmem:[%s1042 + $0x8] sm:$0xff]
  %v1045 = vld [vmem:[%s1042 + $0x18] sm:$0xff]
  %v1046 = vld [vmem:[%s1042 + $0x20] sm:$0xff]
  %v1047 = vld [vmem:[%s1042 + $0x30] sm:$0xff]
  %v1048 = vld [vmem:[%s1042 + $0x38] sm:$0xff]
  %v1049 = vld [vmem:[%s1042 + $0x48] sm:$0xff]
  %v1050 = vld [vmem:[%s1042 + $0x50] sm:$0xff]
  %v1051 = vld [vmem:[%s1042 + $0x60] sm:$0xff]
  %v1052 = vld [vmem:[%s1042 + $0x68] sm:$0xff]
  %v1053 = vld [vmem:[%s1042 + $0x78] sm:$0xff]
  %v1054 = vld [vmem:[%s1042 + $0x80] sm:$0xff]
  %v1055 = vld [vmem:[%s1042 + $0x90] sm:$0xff]
  %v1056 = vld [vmem:[%s1042 + $0x98] sm:$0xff]
  %v1057 = vld [vmem:[%s1042 + $0xa8] sm:$0xff]
  %v1058 = vld [vmem:[%s1042 + $0xb0] sm:$0xff]
  %v1059 = vld [vmem:[%s1042 + $0xc0] sm:$0xff]
  %v1060 = vld [vmem:[%s1042 + $0xc8] sm:$0xff]
  %v1061 = vld [vmem:[%s1042 + $0xd8] sm:$0xff]
  %v1062 = vld [vmem:[%s1042 + $0xe0] sm:$0xff]
  %v1063 = vld [vmem:[%s1042 + $0xf0] sm:$0xff]
  %v1064 = vld [vmem:[%s1042 + $0xf8] sm:$0xff]
  %v1065 = vld [vmem:[%s1042 + $0x108] sm:$0xff]
  %v1066 = vld [vmem:[%s1042 + $0x110] sm:$0xff]
  %v1067 = vld [vmem:[%s1042 + $0x120] sm:$0xff]
  %v1068 = vld [vmem:[%s1042 + $0x128] sm:$0xff]
  %v1069 = vld [vmem:[%s1042 + $0x138] sm:$0xff]
  %v1070 = vld [vmem:[%s1042 + $0x140] sm:$0xff]
  %v1071 = vld [vmem:[%s1042 + $0x150] sm:$0xff]
  %v1072 = vld [vmem:[%s1042 + $0x158] sm:$0xff]
  %v1073 = vld [vmem:[%s1042 + $0x168] sm:$0xff]
  %v1074 = vld [vmem:[%s1042 + $0x170] sm:$0xff]
  %1107 = vrot.lane.b32.xlu0 %v1043, 24
  %v1108 = vpop.permute.xlu0 %1107
  %1109 = vrot.lane.b32.xlu0 %v1044, 24
  %v1110 = vpop.permute.xlu0 %1109
  %1111 = vrot.lane.b32.xlu0 %v1045, 24
  %v1112 = vpop.permute.xlu0 %1111
  %1113 = vrot.lane.b32.xlu0 %v1046, 24
  %v1114 = vpop.permute.xlu0 %1113
  %1115 = vrot.lane.b32.xlu0 %v1047, 24
  %v1116 = vpop.permute.xlu0 %1115
  %1117 = vrot.lane.b32.xlu0 %v1048, 24
  %v1118 = vpop.permute.xlu0 %1117
  %1119 = vrot.lane.b32.xlu0 %v1049, 24
  %v1120 = vpop.permute.xlu0 %1119
  %1121 = vrot.lane.b32.xlu0 %v1050, 24
  %v1122 = vpop.permute.xlu0 %1121
  %1123 = vrot.lane.b32.xlu0 %v1051, 24
  %v1124 = vpop.permute.xlu0 %1123
  %1125 = vrot.lane.b32.xlu0 %v1052, 24
  %v1126 = vpop.permute.xlu0 %1125
  %1127 = vrot.lane.b32.xlu0 %v1053, 24
  %v1128 = vpop.permute.xlu0 %1127
  %1129 = vrot.lane.b32.xlu0 %v1054, 24
  %v1130 = vpop.permute.xlu0 %1129
  %1131 = vrot.lane.b32.xlu0 %v1055, 24
  %v1132 = vpop.permute.xlu0 %1131
  %1133 = vrot.lane.b32.xlu0 %v1056, 24
  %v1134 = vpop.permute.xlu0 %1133
  %1135 = vrot.lane.b32.xlu0 %v1057, 24
  %v1136 = vpop.permute.xlu0 %1135
  %1137 = vrot.lane.b32.xlu0 %v1058, 24
  %v1138 = vpop.permute.xlu0 %1137
  %1139 = vrot.lane.b32.xlu0 %v1059, 24
  %v1140 = vpop.permute.xlu0 %1139
  %1141 = vrot.lane.b32.xlu0 %v1060, 24
  %v1142 = vpop.permute.xlu0 %1141
  %1143 = vrot.lane.b32.xlu0 %v1061, 24
  %v1144 = vpop.permute.xlu0 %1143
  %1145 = vrot.lane.b32.xlu0 %v1062, 24
  %v1146 = vpop.permute.xlu0 %1145
  %1147 = vrot.lane.b32.xlu0 %v1063, 24
  %v1148 = vpop.permute.xlu0 %1147
  %1149 = vrot.lane.b32.xlu0 %v1064, 24
  %v1150 = vpop.permute.xlu0 %1149
  %1151 = vrot.lane.b32.xlu0 %v1065, 24
  %v1152 = vpop.permute.xlu0 %1151
  %1153 = vrot.lane.b32.xlu0 %v1066, 24
  %v1154 = vpop.permute.xlu0 %1153
  %1155 = vrot.lane.b32.xlu0 %v1067, 24
  %v1156 = vpop.permute.xlu0 %1155
  %1157 = vrot.lane.b32.xlu0 %v1068, 24
  %v1158 = vpop.permute.xlu0 %1157
  %1159 = vrot.lane.b32.xlu0 %v1069, 24
  %v1160 = vpop.permute.xlu0 %1159
  %1161 = vrot.lane.b32.xlu0 %v1070, 24
  %v1162 = vpop.permute.xlu0 %1161
  %1163 = vrot.lane.b32.xlu0 %v1071, 24
  %v1164 = vpop.permute.xlu0 %1163
  %1165 = vrot.lane.b32.xlu0 %v1072, 24
  %v1166 = vpop.permute.xlu0 %1165
  %1167 = vrot.lane.b32.xlu0 %v1073, 24
  %v1168 = vpop.permute.xlu0 %1167
  %1169 = vrot.lane.b32.xlu0 %v1074, 24
  %v1170 = vpop.permute.xlu0 %1169
  %vm1203 = vcmask 228544
  %1204 = vst.msk [vmem:[#allocation2] sm:$0xff] %vm1203, %v1108
  %1205 = vst.msk [vmem:[#allocation2 + $0x8] sm:$0xff] %vm1203, %v1110
  %1206 = vst.msk [vmem:[#allocation2 + $0x10] sm:$0xff] %vm1203, %v1112
  %1207 = vst.msk [vmem:[#allocation2 + $0x18] sm:$0xff] %vm1203, %v1114
  %1208 = vst.msk [vmem:[#allocation2 + $0x20] sm:$0xff] %vm1203, %v1116
  %1209 = vst.msk [vmem:[#allocation2 + $0x28] sm:$0xff] %vm1203, %v1118
  %1210 = vst.msk [vmem:[#allocation2 + $0x30] sm:$0xff] %vm1203, %v1120
  %1211 = vst.msk [vmem:[#allocation2 + $0x38] sm:$0xff] %vm1203, %v1122
  %1212 = vst.msk [vmem:[#allocation2 + $0x40] sm:$0xff] %vm1203, %v1124
  %1213 = vst.msk [vmem:[#allocation2 + $0x48] sm:$0xff] %vm1203, %v1126
  %1214 = vst.msk [vmem:[#allocation2 + $0x50] sm:$0xff] %vm1203, %v1128
  %1215 = vst.msk [vmem:[#allocation2 + $0x58] sm:$0xff] %vm1203, %v1130
  %1216 = vst.msk [vmem:[#allocation2 + $0x60] sm:$0xff] %vm1203, %v1132
  %1217 = vst.msk [vmem:[#allocation2 + $0x68] sm:$0xff] %vm1203, %v1134
  %1218 = vst.msk [vmem:[#allocation2 + $0x70] sm:$0xff] %vm1203, %v1136
  %1219 = vst.msk [vmem:[#allocation2 + $0x78] sm:$0xff] %vm1203, %v1138
  %1220 = vst.msk [vmem:[#allocation2 + $0x80] sm:$0xff] %vm1203, %v1140
  %1221 = vst.msk [vmem:[#allocation2 + $0x88] sm:$0xff] %vm1203, %v1142
  %1222 = vst.msk [vmem:[#allocation2 + $0x90] sm:$0xff] %vm1203, %v1144
  %1223 = vst.msk [vmem:[#allocation2 + $0x98] sm:$0xff] %vm1203, %v1146
  %1224 = vst.msk [vmem:[#allocation2 + $0xa0] sm:$0xff] %vm1203, %v1148
  %1225 = vst.msk [vmem:[#allocation2 + $0xa8] sm:$0xff] %vm1203, %v1150
  %1226 = vst.msk [vmem:[#allocation2 + $0xb0] sm:$0xff] %vm1203, %v1152
  %1227 = vst.msk [vmem:[#allocation2 + $0xb8] sm:$0xff] %vm1203, %v1154
  %1228 = vst.msk [vmem:[#allocation2 + $0xc0] sm:$0xff] %vm1203, %v1156
  %1229 = vst.msk [vmem:[#allocation2 + $0xc8] sm:$0xff] %vm1203, %v1158
  %1230 = vst.msk [vmem:[#allocation2 + $0xd0] sm:$0xff] %vm1203, %v1160
  %1231 = vst.msk [vmem:[#allocation2 + $0xd8] sm:$0xff] %vm1203, %v1162
  %1232 = vst.msk [vmem:[#allocation2 + $0xe0] sm:$0xff] %vm1203, %v1164
  %1233 = vst.msk [vmem:[#allocation2 + $0xe8] sm:$0xff] %vm1203, %v1166
  %1234 = vst.msk [vmem:[#allocation2 + $0xf0] sm:$0xff] %vm1203, %v1168
  %1235 = vst.msk [vmem:[#allocation2 + $0xf8] sm:$0xff] %vm1203, %v1170
  %v1236 = vld [vmem:[%s1042 + $0x1] sm:$0xff]
  %v1237 = vld [vmem:[%s1042 + $0x9] sm:$0xff]
  %v1238 = vld [vmem:[%s1042 + $0x19] sm:$0xff]
  %v1239 = vld [vmem:[%s1042 + $0x21] sm:$0xff]
  %v1240 = vld [vmem:[%s1042 + $0x31] sm:$0xff]
  %v1241 = vld [vmem:[%s1042 + $0x39] sm:$0xff]
  %v1242 = vld [vmem:[%s1042 + $0x49] sm:$0xff]
  %v1243 = vld [vmem:[%s1042 + $0x51] sm:$0xff]
  %v1244 = vld [vmem:[%s1042 + $0x61] sm:$0xff]
  %v1245 = vld [vmem:[%s1042 + $0x69] sm:$0xff]
  %v1246 = vld [vmem:[%s1042 + $0x79] sm:$0xff]
  %v1247 = vld [vmem:[%s1042 + $0x81] sm:$0xff]
  %v1248 = vld [vmem:[%s1042 + $0x91] sm:$0xff]
  %v1249 = vld [vmem:[%s1042 + $0x99] sm:$0xff]
  %v1250 = vld [vmem:[%s1042 + $0xa9] sm:$0xff]
  %v1251 = vld [vmem:[%s1042 + $0xb1] sm:$0xff]
  %v1252 = vld [vmem:[%s1042 + $0xc1] sm:$0xff]
  %v1253 = vld [vmem:[%s1042 + $0xc9] sm:$0xff]
  %v1254 = vld [vmem:[%s1042 + $0xd9] sm:$0xff]
  %v1255 = vld [vmem:[%s1042 + $0xe1] sm:$0xff]
  %v1256 = vld [vmem:[%s1042 + $0xf1] sm:$0xff]
  %v1257 = vld [vmem:[%s1042 + $0xf9] sm:$0xff]
  %v1258 = vld [vmem:[%s1042 + $0x109] sm:$0xff]
  %v1259 = vld [vmem:[%s1042 + $0x111] sm:$0xff]
  %v1260 = vld [vmem:[%s1042 + $0x121] sm:$0xff]
  %v1261 = vld [vmem:[%s1042 + $0x129] sm:$0xff]
  %v1262 = vld [vmem:[%s1042 + $0x139] sm:$0xff]
  %v1263 = vld [vmem:[%s1042 + $0x141] sm:$0xff]
  %v1264 = vld [vmem:[%s1042 + $0x151] sm:$0xff]
  %v1265 = vld [vmem:[%s1042 + $0x159] sm:$0xff]
  %v1266 = vld [vmem:[%s1042 + $0x169] sm:$0xff]
  %v1267 = vld [vmem:[%s1042 + $0x171] sm:$0xff]
  %1300 = vrot.lane.b32.xlu0 %v1236, 28
  %v1301 = vpop.permute.xlu0 %1300
  %1302 = vrot.lane.b32.xlu0 %v1237, 28
  %v1303 = vpop.permute.xlu0 %1302
  %1304 = vrot.lane.b32.xlu0 %v1238, 28
  %v1305 = vpop.permute.xlu0 %1304
  %1306 = vrot.lane.b32.xlu0 %v1239, 28
  %v1307 = vpop.permute.xlu0 %1306
  %1308 = vrot.lane.b32.xlu0 %v1240, 28
  %v1309 = vpop.permute.xlu0 %1308
  %1310 = vrot.lane.b32.xlu0 %v1241, 28
  %v1311 = vpop.permute.xlu0 %1310
  %1312 = vrot.lane.b32.xlu0 %v1242, 28
  %v1313 = vpop.permute.xlu0 %1312
  %1314 = vrot.lane.b32.xlu0 %v1243, 28
  %v1315 = vpop.permute.xlu0 %1314
  %1316 = vrot.lane.b32.xlu0 %v1244, 28
  %v1317 = vpop.permute.xlu0 %1316
  %1318 = vrot.lane.b32.xlu0 %v1245, 28
  %v1319 = vpop.permute.xlu0 %1318
  %1320 = vrot.lane.b32.xlu0 %v1246, 28
  %v1321 = vpop.permute.xlu0 %1320
  %1322 = vrot.lane.b32.xlu0 %v1247, 28
  %v1323 = vpop.permute.xlu0 %1322
  %1324 = vrot.lane.b32.xlu0 %v1248, 28
  %v1325 = vpop.permute.xlu0 %1324
  %1326 = vrot.lane.b32.xlu0 %v1249, 28
  %v1327 = vpop.permute.xlu0 %1326
  %1328 = vrot.lane.b32.xlu0 %v1250, 28
  %v1329 = vpop.permute.xlu0 %1328
  %1330 = vrot.lane.b32.xlu0 %v1251, 28
  %v1331 = vpop.permute.xlu0 %1330
  %1332 = vrot.lane.b32.xlu0 %v1252, 28
  %v1333 = vpop.permute.xlu0 %1332
  %1334 = vrot.lane.b32.xlu0 %v1253, 28
  %v1335 = vpop.permute.xlu0 %1334
  %1336 = vrot.lane.b32.xlu0 %v1254, 28
  %v1337 = vpop.permute.xlu0 %1336
  %1338 = vrot.lane.b32.xlu0 %v1255, 28
  %v1339 = vpop.permute.xlu0 %1338
  %1340 = vrot.lane.b32.xlu0 %v1256, 28
  %v1341 = vpop.permute.xlu0 %1340
  %1342 = vrot.lane.b32.xlu0 %v1257, 28
  %v1343 = vpop.permute.xlu0 %1342
  %1344 = vrot.lane.b32.xlu0 %v1258, 28
  %v1345 = vpop.permute.xlu0 %1344
  %1346 = vrot.lane.b32.xlu0 %v1259, 28
  %v1347 = vpop.permute.xlu0 %1346
  %1348 = vrot.lane.b32.xlu0 %v1260, 28
  %v1349 = vpop.permute.xlu0 %1348
  %1350 = vrot.lane.b32.xlu0 %v1261, 28
  %v1351 = vpop.permute.xlu0 %1350
  %1352 = vrot.lane.b32.xlu0 %v1262, 28
  %v1353 = vpop.permute.xlu0 %1352
  %1354 = vrot.lane.b32.xlu0 %v1263, 28
  %v1355 = vpop.permute.xlu0 %1354
  %1356 = vrot.lane.b32.xlu0 %v1264, 28
  %v1357 = vpop.permute.xlu0 %1356
  %1358 = vrot.lane.b32.xlu0 %v1265, 28
  %v1359 = vpop.permute.xlu0 %1358
  %1360 = vrot.lane.b32.xlu0 %v1266, 28
  %v1361 = vpop.permute.xlu0 %1360
  %1362 = vrot.lane.b32.xlu0 %v1267, 28
  %v1363 = vpop.permute.xlu0 %1362
  %vm1396 = vcmask 261344
  %1397 = vst.msk [vmem:[#allocation2] sm:$0xff] %vm1396, %v1301
  %1398 = vst.msk [vmem:[#allocation2 + $0x8] sm:$0xff] %vm1396, %v1303
  %1399 = vst.msk [vmem:[#allocation2 + $0x10] sm:$0xff] %vm1396, %v1305
  %1400 = vst.msk [vmem:[#allocation2 + $0x18] sm:$0xff] %vm1396, %v1307
  %1401 = vst.msk [vmem:[#allocation2 + $0x20] sm:$0xff] %vm1396, %v1309
  %1402 = vst.msk [vmem:[#allocation2 + $0x28] sm:$0xff] %vm1396, %v1311
  %1403 = vst.msk [vmem:[#allocation2 + $0x30] sm:$0xff] %vm1396, %v1313
  %1404 = vst.msk [vmem:[#allocation2 + $0x38] sm:$0xff] %vm1396, %v1315
  %1405 = vst.msk [vmem:[#allocation2 + $0x40] sm:$0xff] %vm1396, %v1317
  %1406 = vst.msk [vmem:[#allocation2 + $0x48] sm:$0xff] %vm1396, %v1319
  %1407 = vst.msk [vmem:[#allocation2 + $0x50] sm:$0xff] %vm1396, %v1321
  %1408 = vst.msk [vmem:[#allocation2 + $0x58] sm:$0xff] %vm1396, %v1323
  %1409 = vst.msk [vmem:[#allocation2 + $0x60] sm:$0xff] %vm1396, %v1325
  %1410 = vst.msk [vmem:[#allocation2 + $0x68] sm:$0xff] %vm1396, %v1327
  %1411 = vst.msk [vmem:[#allocation2 + $0x70] sm:$0xff] %vm1396, %v1329
  %1412 = vst.msk [vmem:[#allocation2 + $0x78] sm:$0xff] %vm1396, %v1331
  %1413 = vst.msk [vmem:[#allocation2 + $0x80] sm:$0xff] %vm1396, %v1333
  %1414 = vst.msk [vmem:[#allocation2 + $0x88] sm:$0xff] %vm1396, %v1335
  %1415 = vst.msk [vmem:[#allocation2 + $0x90] sm:$0xff] %vm1396, %v1337
  %1416 = vst.msk [vmem:[#allocation2 + $0x98] sm:$0xff] %vm1396, %v1339
  %1417 = vst.msk [vmem:[#allocation2 + $0xa0] sm:$0xff] %vm1396, %v1341
  %1418 = vst.msk [vmem:[#allocation2 + $0xa8] sm:$0xff] %vm1396, %v1343
  %1419 = vst.msk [vmem:[#allocation2 + $0xb0] sm:$0xff] %vm1396, %v1345
  %1420 = vst.msk [vmem:[#allocation2 + $0xb8] sm:$0xff] %vm1396, %v1347
  %1421 = vst.msk [vmem:[#allocation2 + $0xc0] sm:$0xff] %vm1396, %v1349
  %1422 = vst.msk [vmem:[#allocation2 + $0xc8] sm:$0xff] %vm1396, %v1351
  %1423 = vst.msk [vmem:[#allocation2 + $0xd0] sm:$0xff] %vm1396, %v1353
  %1424 = vst.msk [vmem:[#allocation2 + $0xd8] sm:$0xff] %vm1396, %v1355
  %1425 = vst.msk [vmem:[#allocation2 + $0xe0] sm:$0xff] %vm1396, %v1357
  %1426 = vst.msk [vmem:[#allocation2 + $0xe8] sm:$0xff] %vm1396, %v1359
  %1427 = vst.msk [vmem:[#allocation2 + $0xf0] sm:$0xff] %vm1396, %v1361
  %1428 = vst.msk [vmem:[#allocation2 + $0xf8] sm:$0xff] %vm1396, %v1363
  %v1429 = vld [vmem:[%s1042 + $0x2] sm:$0xff]
  %v1430 = vld [vmem:[%s1042 + $0xa] sm:$0xff]
  %v1431 = vld [vmem:[%s1042 + $0x1a] sm:$0xff]
  %v1432 = vld [vmem:[%s1042 + $0x22] sm:$0xff]
  %v1433 = vld [vmem:[%s1042 + $0x32] sm:$0xff]
  %v1434 = vld [vmem:[%s1042 + $0x3a] sm:$0xff]
  %v1435 = vld [vmem:[%s1042 + $0x4a] sm:$0xff]
  %v1436 = vld [vmem:[%s1042 + $0x52] sm:$0xff]
  %v1437 = vld [vmem:[%s1042 + $0x62] sm:$0xff]
  %v1438 = vld [vmem:[%s1042 + $0x6a] sm:$0xff]
  %v1439 = vld [vmem:[%s1042 + $0x7a] sm:$0xff]
  %v1440 = vld [vmem:[%s1042 + $0x82] sm:$0xff]
  %v1441 = vld [vmem:[%s1042 + $0x92] sm:$0xff]
  %v1442 = vld [vmem:[%s1042 + $0x9a] sm:$0xff]
  %v1443 = vld [vmem:[%s1042 + $0xaa] sm:$0xff]
  %v1444 = vld [vmem:[%s1042 + $0xb2] sm:$0xff]
  %v1445 = vld [vmem:[%s1042 + $0xc2] sm:$0xff]
  %v1446 = vld [vmem:[%s1042 + $0xca] sm:$0xff]
  %v1447 = vld [vmem:[%s1042 + $0xda] sm:$0xff]
  %v1448 = vld [vmem:[%s1042 + $0xe2] sm:$0xff]
  %v1449 = vld [vmem:[%s1042 + $0xf2] sm:$0xff]
  %v1450 = vld [vmem:[%s1042 + $0xfa] sm:$0xff]
  %v1451 = vld [vmem:[%s1042 + $0x10a] sm:$0xff]
  %v1452 = vld [vmem:[%s1042 + $0x112] sm:$0xff]
  %v1453 = vld [vmem:[%s1042 + $0x122] sm:$0xff]
  %v1454 = vld [vmem:[%s1042 + $0x12a] sm:$0xff]
  %v1455 = vld [vmem:[%s1042 + $0x13a] sm:$0xff]
  %v1456 = vld [vmem:[%s1042 + $0x142] sm:$0xff]
  %v1457 = vld [vmem:[%s1042 + $0x152] sm:$0xff]
  %v1458 = vld [vmem:[%s1042 + $0x15a] sm:$0xff]
  %v1459 = vld [vmem:[%s1042 + $0x16a] sm:$0xff]
  %v1460 = vld [vmem:[%s1042 + $0x172] sm:$0xff]
  %1493 = vrot.lane.b32.xlu0 %v1429, 32
  %v1494 = vpop.permute.xlu0 %1493
  %1495 = vrot.lane.b32.xlu0 %v1430, 32
  %v1496 = vpop.permute.xlu0 %1495
  %1497 = vrot.lane.b32.xlu0 %v1431, 32
  %v1498 = vpop.permute.xlu0 %1497
  %1499 = vrot.lane.b32.xlu0 %v1432, 32
  %v1500 = vpop.permute.xlu0 %1499
  %1501 = vrot.lane.b32.xlu0 %v1433, 32
  %v1502 = vpop.permute.xlu0 %1501
  %1503 = vrot.lane.b32.xlu0 %v1434, 32
  %v1504 = vpop.permute.xlu0 %1503
  %1505 = vrot.lane.b32.xlu0 %v1435, 32
  %v1506 = vpop.permute.xlu0 %1505
  %1507 = vrot.lane.b32.xlu0 %v1436, 32
  %v1508 = vpop.permute.xlu0 %1507
  %1509 = vrot.lane.b32.xlu0 %v1437, 32
  %v1510 = vpop.permute.xlu0 %1509
  %1511 = vrot.lane.b32.xlu0 %v1438, 32
  %v1512 = vpop.permute.xlu0 %1511
  %1513 = vrot.lane.b32.xlu0 %v1439, 32
  %v1514 = vpop.permute.xlu0 %1513
  %1515 = vrot.lane.b32.xlu0 %v1440, 32
  %v1516 = vpop.permute.xlu0 %1515
  %1517 = vrot.lane.b32.xlu0 %v1441, 32
  %v1518 = vpop.permute.xlu0 %1517
  %1519 = vrot.lane.b32.xlu0 %v1442, 32
  %v1520 = vpop.permute.xlu0 %1519
  %1521 = vrot.lane.b32.xlu0 %v1443, 32
  %v1522 = vpop.permute.xlu0 %1521
  %1523 = vrot.lane.b32.xlu0 %v1444, 32
  %v1524 = vpop.permute.xlu0 %1523
  %1525 = vrot.lane.b32.xlu0 %v1445, 32
  %v1526 = vpop.permute.xlu0 %1525
  %1527 = vrot.lane.b32.xlu0 %v1446, 32
  %v1528 = vpop.permute.xlu0 %1527
  %1529 = vrot.lane.b32.xlu0 %v1447, 32
  %v1530 = vpop.permute.xlu0 %1529
  %1531 = vrot.lane.b32.xlu0 %v1448, 32
  %v1532 = vpop.permute.xlu0 %1531
  %1533 = vrot.lane.b32.xlu0 %v1449, 32
  %v1534 = vpop.permute.xlu0 %1533
  %1535 = vrot.lane.b32.xlu0 %v1450, 32
  %v1536 = vpop.permute.xlu0 %1535
  %1537 = vrot.lane.b32.xlu0 %v1451, 32
  %v1538 = vpop.permute.xlu0 %1537
  %1539 = vrot.lane.b32.xlu0 %v1452, 32
  %v1540 = vpop.permute.xlu0 %1539
  %1541 = vrot.lane.b32.xlu0 %v1453, 32
  %v1542 = vpop.permute.xlu0 %1541
  %1543 = vrot.lane.b32.xlu0 %v1454, 32
  %v1544 = vpop.permute.xlu0 %1543
  %1545 = vrot.lane.b32.xlu0 %v1455, 32
  %v1546 = vpop.permute.xlu0 %1545
  %1547 = vrot.lane.b32.xlu0 %v1456, 32
  %v1548 = vpop.permute.xlu0 %1547
  %1549 = vrot.lane.b32.xlu0 %v1457, 32
  %v1550 = vpop.permute.xlu0 %1549
  %1551 = vrot.lane.b32.xlu0 %v1458, 32
  %v1552 = vpop.permute.xlu0 %1551
  %1553 = vrot.lane.b32.xlu0 %v1459, 32
  %v1554 = vpop.permute.xlu0 %1553
  %1555 = vrot.lane.b32.xlu0 %v1460, 32
  %v1556 = vpop.permute.xlu0 %1555
  %vm1589 = vcmask 294144
  %1590 = vst.msk [vmem:[#allocation2] sm:$0xff] %vm1589, %v1494
  %1591 = vst.msk [vmem:[#allocation2 + $0x8] sm:$0xff] %vm1589, %v1496
  %1592 = vst.msk [vmem:[#allocation2 + $0x10] sm:$0xff] %vm1589, %v1498
  %1593 = vst.msk [vmem:[#allocation2 + $0x18] sm:$0xff] %vm1589, %v1500
  %1594 = vst.msk [vmem:[#allocation2 + $0x20] sm:$0xff] %vm1589, %v1502
  %1595 = vst.msk [vmem:[#allocation2 + $0x28] sm:$0xff] %vm1589, %v1504
  %1596 = vst.msk [vmem:[#allocation2 + $0x30] sm:$0xff] %vm1589, %v1506
  %1597 = vst.msk [vmem:[#allocation2 + $0x38] sm:$0xff] %vm1589, %v1508
  %1598 = vst.msk [vmem:[#allocation2 + $0x40] sm:$0xff] %vm1589, %v1510
  %1599 = vst.msk [vmem:[#allocation2 + $0x48] sm:$0xff] %vm1589, %v1512
  %1600 = vst.msk [vmem:[#allocation2 + $0x50] sm:$0xff] %vm1589, %v1514
  %1601 = vst.msk [vmem:[#allocation2 + $0x58] sm:$0xff] %vm1589, %v1516
  %1602 = vst.msk [vmem:[#allocation2 + $0x60] sm:$0xff] %vm1589, %v1518
  %1603 = vst.msk [vmem:[#allocation2 + $0x68] sm:$0xff] %vm1589, %v1520
  %1604 = vst.msk [vmem:[#allocation2 + $0x70] sm:$0xff] %vm1589, %v1522
  %1605 = vst.msk [vmem:[#allocation2 + $0x78] sm:$0xff] %vm1589, %v1524
  %1606 = vst.msk [vmem:[#allocation2 + $0x80] sm:$0xff] %vm1589, %v1526
  %1607 = vst.msk [vmem:[#allocation2 + $0x88] sm:$0xff] %vm1589, %v1528
  %1608 = vst.msk [vmem:[#allocation2 + $0x90] sm:$0xff] %vm1589, %v1530
  %1609 = vst.msk [vmem:[#allocation2 + $0x98] sm:$0xff] %vm1589, %v1532
  %1610 = vst.msk [vmem:[#allocation2 + $0xa0] sm:$0xff] %vm1589, %v1534
  %1611 = vst.msk [vmem:[#allocation2 + $0xa8] sm:$0xff] %vm1589, %v1536
  %1612 = vst.msk [vmem:[#allocation2 + $0xb0] sm:$0xff] %vm1589, %v1538
  %1613 = vst.msk [vmem:[#allocation2 + $0xb8] sm:$0xff] %vm1589, %v1540
  %1614 = vst.msk [vmem:[#allocation2 + $0xc0] sm:$0xff] %vm1589, %v1542
  %1615 = vst.msk [vmem:[#allocation2 + $0xc8] sm:$0xff] %vm1589, %v1544
  %1616 = vst.msk [vmem:[#allocation2 + $0xd0] sm:$0xff] %vm1589, %v1546
  %1617 = vst.msk [vmem:[#allocation2 + $0xd8] sm:$0xff] %vm1589, %v1548
  %1618 = vst.msk [vmem:[#allocation2 + $0xe0] sm:$0xff] %vm1589, %v1550
  %1619 = vst.msk [vmem:[#allocation2 + $0xe8] sm:$0xff] %vm1589, %v1552
  %1620 = vst.msk [vmem:[#allocation2 + $0xf0] sm:$0xff] %vm1589, %v1554
  %1621 = vst.msk [vmem:[#allocation2 + $0xf8] sm:$0xff] %vm1589, %v1556
  %v1622 = vld [vmem:[%s1] sm:$0xff]
  %v1623 = vld [vmem:[#allocation2] sm:$0xff]
  %v1624 = vld [vmem:[#allocation2 + $0x8] sm:$0xff]
  %v1625 = vld [vmem:[#allocation2 + $0x10] sm:$0xff]
  %v1626 = vld [vmem:[#allocation2 + $0x18] sm:$0xff]
  %v1627 = vld [vmem:[#allocation2 + $0x20] sm:$0xff]
  %v1628 = vld [vmem:[#allocation2 + $0x28] sm:$0xff]
  %v1629 = vld [vmem:[#allocation2 + $0x30] sm:$0xff]
  %v1630 = vld [vmem:[#allocation2 + $0x38] sm:$0xff]
  %v1631 = vld [vmem:[#allocation2 + $0x40] sm:$0xff]
  %v1632 = vld [vmem:[#allocation2 + $0x48] sm:$0xff]
  %v1633 = vld [vmem:[#allocation2 + $0x50] sm:$0xff]
  %v1634 = vld [vmem:[#allocation2 + $0x58] sm:$0xff]
  %v1635 = vld [vmem:[#allocation2 + $0x60] sm:$0xff]
  %v1636 = vld [vmem:[#allocation2 + $0x68] sm:$0xff]
  %v1637 = vld [vmem:[#allocation2 + $0x70] sm:$0xff]
  %v1638 = vld [vmem:[#allocation2 + $0x78] sm:$0xff]
  %v1639 = vld [vmem:[#allocation2 + $0x80] sm:$0xff]
  %v1640 = vld [vmem:[#allocation2 + $0x88] sm:$0xff]
  %v1641 = vld [vmem:[#allocation2 + $0x90] sm:$0xff]
  %v1642 = vld [vmem:[#allocation2 + $0x98] sm:$0xff]
  %v1643 = vld [vmem:[#allocation2 + $0xa0] sm:$0xff]
  %v1644 = vld [vmem:[#allocation2 + $0xa8] sm:$0xff]
  %v1645 = vld [vmem:[#allocation2 + $0xb0] sm:$0xff]
  %v1646 = vld [vmem:[#allocation2 + $0xb8] sm:$0xff]
  %v1647 = vld [vmem:[#allocation2 + $0xc0] sm:$0xff]
  %v1648 = vld [vmem:[#allocation2 + $0xc8] sm:$0xff]
  %v1649 = vld [vmem:[#allocation2 + $0xd0] sm:$0xff]
  %v1650 = vld [vmem:[#allocation2 + $0xd8] sm:$0xff]
  %v1651 = vld [vmem:[#allocation2 + $0xe0] sm:$0xff]
  %v1652 = vld [vmem:[#allocation2 + $0xe8] sm:$0xff]
  %v1653 = vld [vmem:[#allocation2 + $0xf0] sm:$0xff]
  %v1654 = vld [vmem:[#allocation2 + $0xf8] sm:$0xff]
  %vm1655 = vcmask 293888
  %v1657 = vsel %vm1655, %v1622, 0
  %v1660 = vsel %vm1655, %v1623, 0
  %v1663 = vsel %vm1655, %v1624, 0
  %v1666 = vsel %vm1655, %v1625, 0
  %v1669 = vsel %vm1655, %v1626, 0
  %v1672 = vsel %vm1655, %v1627, 0
  %v1675 = vsel %vm1655, %v1628, 0
  %v1678 = vsel %vm1655, %v1629, 0
  %v1681 = vsel %vm1655, %v1630, 0
  %v1684 = vsel %vm1655, %v1631, 0
  %v1687 = vsel %vm1655, %v1632, 0
  %v1690 = vsel %vm1655, %v1633, 0
  %v1693 = vsel %vm1655, %v1634, 0
  %v1696 = vsel %vm1655, %v1635, 0
  %v1699 = vsel %vm1655, %v1636, 0
  %v1702 = vsel %vm1655, %v1637, 0
  %v1705 = vsel %vm1655, %v1638, 0
  %v1708 = vsel %vm1655, %v1639, 0
  %v1711 = vsel %vm1655, %v1640, 0
  %v1714 = vsel %vm1655, %v1641, 0
  %v1717 = vsel %vm1655, %v1642, 0
  %v1720 = vsel %vm1655, %v1643, 0
  %v1723 = vsel %vm1655, %v1644, 0
  %v1726 = vsel %vm1655, %v1645, 0
  %v1729 = vsel %vm1655, %v1646, 0
  %v1732 = vsel %vm1655, %v1647, 0
  %v1735 = vsel %vm1655, %v1648, 0
  %v1738 = vsel %vm1655, %v1649, 0
  %v1741 = vsel %vm1655, %v1650, 0
  %v1744 = vsel %vm1655, %v1651, 0
  %v1747 = vsel %vm1655, %v1652, 0
  %v1750 = vsel %vm1655, %v1653, 0
  %v1753 = vsel %vm1655, %v1654, 0
  %1755 = vmatpush.xpose.msra.mxu0 %v1705
  %1756 = vmatpush.xpose.msra.mxu0 %v1702
  %1757 = vmatpush.xpose.msra.mxu0 %v1699
  %1758 = vmatpush.xpose.msra.mxu0 %v1696
  %1759 = vmatpush.xpose.msra.mxu0 %v1693
  %1760 = vmatpush.xpose.msra.mxu0 %v1690
  %1761 = vmatpush.xpose.msra.mxu0 %v1687
  %1762 = vmatpush.xpose.msra.mxu0 %v1684
  %1763 = vmatpush.xpose.msra.mxu0 %v1681
  %1764 = vmatpush.xpose.msra.mxu0 %v1678
  %1765 = vmatpush.xpose.msra.mxu0 %v1675
  %1766 = vmatpush.xpose.msra.mxu0 %v1672
  %1767 = vmatpush.xpose.msra.mxu0 %v1669
  %1768 = vmatpush.xpose.msra.mxu0 %v1666
  %1769 = vmatpush.xpose.msra.mxu0 %v1663
  %1770 = vmatpush.xpose.msra.mxu0 %v1660
  %1771 = vmatmul.f32.gmra.mxu0 %v1657
  %v1772 = vpop.f32.mrf.mxu0
  %v1773 = vadd.f32 0.0, %v1772
  %1774 = vdwg.mxu0
  %1775 = vmatpush.xpose.msra.mxu0 %v1753
  %1776 = vmatpush.xpose.msra.mxu0 %v1750
  %1777 = vmatpush.xpose.msra.mxu0 %v1747
  %1778 = vmatpush.xpose.msra.mxu0 %v1744
  %1779 = vmatpush.xpose.msra.mxu0 %v1741
  %1780 = vmatpush.xpose.msra.mxu0 %v1738
  %1781 = vmatpush.xpose.msra.mxu0 %v1735
  %1782 = vmatpush.xpose.msra.mxu0 %v1732
  %1783 = vmatpush.xpose.msra.mxu0 %v1729
  %1784 = vmatpush.xpose.msra.mxu0 %v1726
  %1785 = vmatpush.xpose.msra.mxu0 %v1723
  %1786 = vmatpush.xpose.msra.mxu0 %v1720
  %1787 = vmatpush.xpose.msra.mxu0 %v1717
  %1788 = vmatpush.xpose.msra.mxu0 %v1714
  %1789 = vmatpush.xpose.msra.mxu0 %v1711
  %1790 = vmatpush.xpose.msra.mxu0 %v1708
  %1791 = vmatmul.f32.gmra.mxu0 %v1657
  %v1792 = vpop.f32.mrf.mxu0
  %v1793 = vadd.f32 0.0, %v1792
  %1794 = vdwg.mxu0
  %1795 = vst [vmem:[%s2] sm:$0xff] %v1773
  %1796 = vst [vmem:[%s2 + $0x8] sm:$0xff] %v1793
  %s1797 = scalar_lea.vmem %s0, 432
  %v1798 = vld [vmem:[%s1797] sm:$0xff]
  %v1799 = vld [vmem:[%s1797 + $0x8] sm:$0xff]
  %v1800 = vld [vmem:[%s1797 + $0x18] sm:$0xff]
  %v1801 = vld [vmem:[%s1797 + $0x20] sm:$0xff]
  %v1802 = vld [vmem:[%s1797 + $0x30] sm:$0xff]
  %v1803 = vld [vmem:[%s1797 + $0x38] sm:$0xff]
  %v1804 = vld [vmem:[%s1797 + $0x48] sm:$0xff]
  %v1805 = vld [vmem:[%s1797 + $0x50] sm:$0xff]
  %v1806 = vld [vmem:[%s1797 + $0x60] sm:$0xff]
  %v1807 = vld [vmem:[%s1797 + $0x68] sm:$0xff]
  %v1808 = vld [vmem:[%s1797 + $0x78] sm:$0xff]
  %v1809 = vld [vmem:[%s1797 + $0x80] sm:$0xff]
  %v1810 = vld [vmem:[%s1797 + $0x90] sm:$0xff]
  %v1811 = vld [vmem:[%s1797 + $0x98] sm:$0xff]
  %v1812 = vld [vmem:[%s1797 + $0xa8] sm:$0xff]
  %v1813 = vld [vmem:[%s1797 + $0xb0] sm:$0xff]
  %v1814 = vld [vmem:[%s1797 + $0xc0] sm:$0xff]
  %v1815 = vld [vmem:[%s1797 + $0xc8] sm:$0xff]
  %v1816 = vld [vmem:[%s1797 + $0xd8] sm:$0xff]
  %v1817 = vld [vmem:[%s1797 + $0xe0] sm:$0xff]
  %v1818 = vld [vmem:[%s1797 + $0xf0] sm:$0xff]
  %v1819 = vld [vmem:[%s1797 + $0xf8] sm:$0xff]
  %v1820 = vld [vmem:[%s1797 + $0x108] sm:$0xff]
  %v1821 = vld [vmem:[%s1797 + $0x110] sm:$0xff]
  %v1822 = vld [vmem:[%s1797 + $0x120] sm:$0xff]
  %v1823 = vld [vmem:[%s1797 + $0x128] sm:$0xff]
  %v1824 = vld [vmem:[%s1797 + $0x138] sm:$0xff]
  %v1825 = vld [vmem:[%s1797 + $0x140] sm:$0xff]
  %v1826 = vld [vmem:[%s1797 + $0x150] sm:$0xff]
  %v1827 = vld [vmem:[%s1797 + $0x158] sm:$0xff]
  %v1828 = vld [vmem:[%s1797 + $0x168] sm:$0xff]
  %v1829 = vld [vmem:[%s1797 + $0x170] sm:$0xff]
  %1830 = vst.msk [vmem:[#allocation2] sm:$0xff] %vm43, %v1798
  %1831 = vst.msk [vmem:[#allocation2 + $0x8] sm:$0xff] %vm43, %v1799
  %1832 = vst.msk [vmem:[#allocation2 + $0x10] sm:$0xff] %vm43, %v1800
  %1833 = vst.msk [vmem:[#allocation2 + $0x18] sm:$0xff] %vm43, %v1801
  %1834 = vst.msk [vmem:[#allocation2 + $0x20] sm:$0xff] %vm43, %v1802
  %1835 = vst.msk [vmem:[#allocation2 + $0x28] sm:$0xff] %vm43, %v1803
  %1836 = vst.msk [vmem:[#allocation2 + $0x30] sm:$0xff] %vm43, %v1804
  %1837 = vst.msk [vmem:[#allocation2 + $0x38] sm:$0xff] %vm43, %v1805
  %1838 = vst.msk [vmem:[#allocation2 + $0x40] sm:$0xff] %vm43, %v1806
  %1839 = vst.msk [vmem:[#allocation2 + $0x48] sm:$0xff] %vm43, %v1807
  %1840 = vst.msk [vmem:[#allocation2 + $0x50] sm:$0xff] %vm43, %v1808
  %1841 = vst.msk [vmem:[#allocation2 + $0x58] sm:$0xff] %vm43, %v1809
  %1842 = vst.msk [vmem:[#allocation2 + $0x60] sm:$0xff] %vm43, %v1810
  %1843 = vst.msk [vmem:[#allocation2 + $0x68] sm:$0xff] %vm43, %v1811
  %1844 = vst.msk [vmem:[#allocation2 + $0x70] sm:$0xff] %vm43, %v1812
  %1845 = vst.msk [vmem:[#allocation2 + $0x78] sm:$0xff] %vm43, %v1813
  %1846 = vst.msk [vmem:[#allocation2 + $0x80] sm:$0xff] %vm43, %v1814
  %1847 = vst.msk [vmem:[#allocation2 + $0x88] sm:$0xff] %vm43, %v1815
  %1848 = vst.msk [vmem:[#allocation2 + $0x90] sm:$0xff] %vm43, %v1816
  %1849 = vst.msk [vmem:[#allocation2 + $0x98] sm:$0xff] %vm43, %v1817
  %1850 = vst.msk [vmem:[#allocation2 + $0xa0] sm:$0xff] %vm43, %v1818
  %1851 = vst.msk [vmem:[#allocation2 + $0xa8] sm:$0xff] %vm43, %v1819
  %1852 = vst.msk [vmem:[#allocation2 + $0xb0] sm:$0xff] %vm43, %v1820
  %1853 = vst.msk [vmem:[#allocation2 + $0xb8] sm:$0xff] %vm43, %v1821
  %1854 = vst.msk [vmem:[#allocation2 + $0xc0] sm:$0xff] %vm43, %v1822
  %1855 = vst.msk [vmem:[#allocation2 + $0xc8] sm:$0xff] %vm43, %v1823
  %1856 = vst.msk [vmem:[#allocation2 + $0xd0] sm:$0xff] %vm43, %v1824
  %1857 = vst.msk [vmem:[#allocation2 + $0xd8] sm:$0xff] %vm43, %v1825
  %1858 = vst.msk [vmem:[#allocation2 + $0xe0] sm:$0xff] %vm43, %v1826
  %1859 = vst.msk [vmem:[#allocation2 + $0xe8] sm:$0xff] %vm43, %v1827
  %1860 = vst.msk [vmem:[#allocation2 + $0xf0] sm:$0xff] %vm43, %v1828
  %1861 = vst.msk [vmem:[#allocation2 + $0xf8] sm:$0xff] %vm43, %v1829
  %v1862 = vld [vmem:[%s1797 + $0x1] sm:$0xff]
  %v1863 = vld [vmem:[%s1797 + $0x9] sm:$0xff]
  %v1864 = vld [vmem:[%s1797 + $0x19] sm:$0xff]
  %v1865 = vld [vmem:[%s1797 + $0x21] sm:$0xff]
  %v1866 = vld [vmem:[%s1797 + $0x31] sm:$0xff]
  %v1867 = vld [vmem:[%s1797 + $0x39] sm:$0xff]
  %v1868 = vld [vmem:[%s1797 + $0x49] sm:$0xff]
  %v1869 = vld [vmem:[%s1797 + $0x51] sm:$0xff]
  %v1870 = vld [vmem:[%s1797 + $0x61] sm:$0xff]
  %v1871 = vld [vmem:[%s1797 + $0x69] sm:$0xff]
  %v1872 = vld [vmem:[%s1797 + $0x79] sm:$0xff]
  %v1873 = vld [vmem:[%s1797 + $0x81] sm:$0xff]
  %v1874 = vld [vmem:[%s1797 + $0x91] sm:$0xff]
  %v1875 = vld [vmem:[%s1797 + $0x99] sm:$0xff]
  %v1876 = vld [vmem:[%s1797 + $0xa9] sm:$0xff]
  %v1877 = vld [vmem:[%s1797 + $0xb1] sm:$0xff]
  %v1878 = vld [vmem:[%s1797 + $0xc1] sm:$0xff]
  %v1879 = vld [vmem:[%s1797 + $0xc9] sm:$0xff]
  %v1880 = vld [vmem:[%s1797 + $0xd9] sm:$0xff]
  %v1881 = vld [vmem:[%s1797 + $0xe1] sm:$0xff]
  %v1882 = vld [vmem:[%s1797 + $0xf1] sm:$0xff]
  %v1883 = vld [vmem:[%s1797 + $0xf9] sm:$0xff]
  %v1884 = vld [vmem:[%s1797 + $0x109] sm:$0xff]
  %v1885 = vld [vmem:[%s1797 + $0x111] sm:$0xff]
  %v1886 = vld [vmem:[%s1797 + $0x121] sm:$0xff]
  %v1887 = vld [vmem:[%s1797 + $0x129] sm:$0xff]
  %v1888 = vld [vmem:[%s1797 + $0x139] sm:$0xff]
  %v1889 = vld [vmem:[%s1797 + $0x141] sm:$0xff]
  %v1890 = vld [vmem:[%s1797 + $0x151] sm:$0xff]
  %v1891 = vld [vmem:[%s1797 + $0x159] sm:$0xff]
  %v1892 = vld [vmem:[%s1797 + $0x169] sm:$0xff]
  %v1893 = vld [vmem:[%s1797 + $0x171] sm:$0xff]
  %1926 = vrot.lane.b32.xlu0 %v1862, 4
  %v1927 = vpop.permute.xlu0 %1926
  %1928 = vrot.lane.b32.xlu0 %v1863, 4
  %v1929 = vpop.permute.xlu0 %1928
  %1930 = vrot.lane.b32.xlu0 %v1864, 4
  %v1931 = vpop.permute.xlu0 %1930
  %1932 = vrot.lane.b32.xlu0 %v1865, 4
  %v1933 = vpop.permute.xlu0 %1932
  %1934 = vrot.lane.b32.xlu0 %v1866, 4
  %v1935 = vpop.permute.xlu0 %1934
  %1936 = vrot.lane.b32.xlu0 %v1867, 4
  %v1937 = vpop.permute.xlu0 %1936
  %1938 = vrot.lane.b32.xlu0 %v1868, 4
  %v1939 = vpop.permute.xlu0 %1938
  %1940 = vrot.lane.b32.xlu0 %v1869, 4
  %v1941 = vpop.permute.xlu0 %1940
  %1942 = vrot.lane.b32.xlu0 %v1870, 4
  %v1943 = vpop.permute.xlu0 %1942
  %1944 = vrot.lane.b32.xlu0 %v1871, 4
  %v1945 = vpop.permute.xlu0 %1944
  %1946 = vrot.lane.b32.xlu0 %v1872, 4
  %v1947 = vpop.permute.xlu0 %1946
  %1948 = vrot.lane.b32.xlu0 %v1873, 4
  %v1949 = vpop.permute.xlu0 %1948
  %1950 = vrot.lane.b32.xlu0 %v1874, 4
  %v1951 = vpop.permute.xlu0 %1950
  %1952 = vrot.lane.b32.xlu0 %v1875, 4
  %v1953 = vpop.permute.xlu0 %1952
  %1954 = vrot.lane.b32.xlu0 %v1876, 4
  %v1955 = vpop.permute.xlu0 %1954
  %1956 = vrot.lane.b32.xlu0 %v1877, 4
  %v1957 = vpop.permute.xlu0 %1956
  %1958 = vrot.lane.b32.xlu0 %v1878, 4
  %v1959 = vpop.permute.xlu0 %1958
  %1960 = vrot.lane.b32.xlu0 %v1879, 4
  %v1961 = vpop.permute.xlu0 %1960
  %1962 = vrot.lane.b32.xlu0 %v1880, 4
  %v1963 = vpop.permute.xlu0 %1962
  %1964 = vrot.lane.b32.xlu0 %v1881, 4
  %v1965 = vpop.permute.xlu0 %1964
  %1966 = vrot.lane.b32.xlu0 %v1882, 4
  %v1967 = vpop.permute.xlu0 %1966
  %1968 = vrot.lane.b32.xlu0 %v1883, 4
  %v1969 = vpop.permute.xlu0 %1968
  %1970 = vrot.lane.b32.xlu0 %v1884, 4
  %v1971 = vpop.permute.xlu0 %1970
  %1972 = vrot.lane.b32.xlu0 %v1885, 4
  %v1973 = vpop.permute.xlu0 %1972
  %1974 = vrot.lane.b32.xlu0 %v1886, 4
  %v1975 = vpop.permute.xlu0 %1974
  %1976 = vrot.lane.b32.xlu0 %v1887, 4
  %v1977 = vpop.permute.xlu0 %1976
  %1978 = vrot.lane.b32.xlu0 %v1888, 4
  %v1979 = vpop.permute.xlu0 %1978
  %1980 = vrot.lane.b32.xlu0 %v1889, 4
  %v1981 = vpop.permute.xlu0 %1980
  %1982 = vrot.lane.b32.xlu0 %v1890, 4
  %v1983 = vpop.permute.xlu0 %1982
  %1984 = vrot.lane.b32.xlu0 %v1891, 4
  %v1985 = vpop.permute.xlu0 %1984
  %1986 = vrot.lane.b32.xlu0 %v1892, 4
  %v1987 = vpop.permute.xlu0 %1986
  %1988 = vrot.lane.b32.xlu0 %v1893, 4
  %v1989 = vpop.permute.xlu0 %1988
  %2022 = vst.msk [vmem:[#allocation2] sm:$0xff] %vm236, %v1927
  %2023 = vst.msk [vmem:[#allocation2 + $0x8] sm:$0xff] %vm236, %v1929
  %2024 = vst.msk [vmem:[#allocation2 + $0x10] sm:$0xff] %vm236, %v1931
  %2025 = vst.msk [vmem:[#allocation2 + $0x18] sm:$0xff] %vm236, %v1933
  %2026 = vst.msk [vmem:[#allocation2 + $0x20] sm:$0xff] %vm236, %v1935
  %2027 = vst.msk [vmem:[#allocation2 + $0x28] sm:$0xff] %vm236, %v1937
  %2028 = vst.msk [vmem:[#allocation2 + $0x30] sm:$0xff] %vm236, %v1939
  %2029 = vst.msk [vmem:[#allocation2 + $0x38] sm:$0xff] %vm236, %v1941
  %2030 = vst.msk [vmem:[#allocation2 + $0x40] sm:$0xff] %vm236, %v1943
  %2031 = vst.msk [vmem:[#allocation2 + $0x48] sm:$0xff] %vm236, %v1945
  %2032 = vst.msk [vmem:[#allocation2 + $0x50] sm:$0xff] %vm236, %v1947
  %2033 = vst.msk [vmem:[#allocation2 + $0x58] sm:$0xff] %vm236, %v1949
  %2034 = vst.msk [vmem:[#allocation2 + $0x60] sm:$0xff] %vm236, %v1951
  %2035 = vst.msk [vmem:[#allocation2 + $0x68] sm:$0xff] %vm236, %v1953
  %2036 = vst.msk [vmem:[#allocation2 + $0x70] sm:$0xff] %vm236, %v1955
  %2037 = vst.msk [vmem:[#allocation2 + $0x78] sm:$0xff] %vm236, %v1957
  %2038 = vst.msk [vmem:[#allocation2 + $0x80] sm:$0xff] %vm236, %v1959
  %2039 = vst.msk [vmem:[#allocation2 + $0x88] sm:$0xff] %vm236, %v1961
  %2040 = vst.msk [vmem:[#allocation2 + $0x90] sm:$0xff] %vm236, %v1963
  %2041 = vst.msk [vmem:[#allocation2 + $0x98] sm:$0xff] %vm236, %v1965
  %2042 = vst.msk [vmem:[#allocation2 + $0xa0] sm:$0xff] %vm236, %v1967
  %2043 = vst.msk [vmem:[#allocation2 + $0xa8] sm:$0xff] %vm236, %v1969
  %2044 = vst.msk [vmem:[#allocation2 + $0xb0] sm:$0xff] %vm236, %v1971
  %2045 = vst.msk [vmem:[#allocation2 + $0xb8] sm:$0xff] %vm236, %v1973
  %2046 = vst.msk [vmem:[#allocation2 + $0xc0] sm:$0xff] %vm236, %v1975
  %2047 = vst.msk [vmem:[#allocation2 + $0xc8] sm:$0xff] %vm236, %v1977
  %2048 = vst.msk [vmem:[#allocation2 + $0xd0] sm:$0xff] %vm236, %v1979
  %2049 = vst.msk [vmem:[#allocation2 + $0xd8] sm:$0xff] %vm236, %v1981
  %2050 = vst.msk [vmem:[#allocation2 + $0xe0] sm:$0xff] %vm236, %v1983
  %2051 = vst.msk [vmem:[#allocation2 + $0xe8] sm:$0xff] %vm236, %v1985
  %2052 = vst.msk [vmem:[#allocation2 + $0xf0] sm:$0xff] %vm236, %v1987
  %2053 = vst.msk [vmem:[#allocation2 + $0xf8] sm:$0xff] %vm236, %v1989
  %v2054 = vld [vmem:[%s1797 + $0x2] sm:$0xff]
  %v2055 = vld [vmem:[%s1797 + $0xa] sm:$0xff]
  %v2056 = vld [vmem:[%s1797 + $0x1a] sm:$0xff]
  %v2057 = vld [vmem:[%s1797 + $0x22] sm:$0xff]
  %v2058 = vld [vmem:[%s1797 + $0x32] sm:$0xff]
  %v2059 = vld [vmem:[%s1797 + $0x3a] sm:$0xff]
  %v2060 = vld [vmem:[%s1797 + $0x4a] sm:$0xff]
  %v2061 = vld [vmem:[%s1797 + $0x52] sm:$0xff]
  %v2062 = vld [vmem:[%s1797 + $0x62] sm:$0xff]
  %v2063 = vld [vmem:[%s1797 + $0x6a] sm:$0xff]
  %v2064 = vld [vmem:[%s1797 + $0x7a] sm:$0xff]
  %v2065 = vld [vmem:[%s1797 + $0x82] sm:$0xff]
  %v2066 = vld [vmem:[%s1797 + $0x92] sm:$0xff]
  %v2067 = vld [vmem:[%s1797 + $0x9a] sm:$0xff]
  %v2068 = vld [vmem:[%s1797 + $0xaa] sm:$0xff]
  %v2069 = vld [vmem:[%s1797 + $0xb2] sm:$0xff]
  %v2070 = vld [vmem:[%s1797 + $0xc2] sm:$0xff]
  %v2071 = vld [vmem:[%s1797 + $0xca] sm:$0xff]
  %v2072 = vld [vmem:[%s1797 + $0xda] sm:$0xff]
  %v2073 = vld [vmem:[%s1797 + $0xe2] sm:$0xff]
  %v2074 = vld [vmem:[%s1797 + $0xf2] sm:$0xff]
  %v2075 = vld [vmem:[%s1797 + $0xfa] sm:$0xff]
  %v2076 = vld [vmem:[%s1797 + $0x10a] sm:$0xff]
  %v2077 = vld [vmem:[%s1797 + $0x112] sm:$0xff]
  %v2078 = vld [vmem:[%s1797 + $0x122] sm:$0xff]
  %v2079 = vld [vmem:[%s1797 + $0x12a] sm:$0xff]
  %v2080 = vld [vmem:[%s1797 + $0x13a] sm:$0xff]
  %v2081 = vld [vmem:[%s1797 + $0x142] sm:$0xff]
  %v2082 = vld [vmem:[%s1797 + $0x152] sm:$0xff]
  %v2083 = vld [vmem:[%s1797 + $0x15a] sm:$0xff]
  %v2084 = vld [vmem:[%s1797 + $0x16a] sm:$0xff]
  %v2085 = vld [vmem:[%s1797 + $0x172] sm:$0xff]
  %2118 = vrot.lane.b32.xlu0 %v2054, 8
  %v2119 = vpop.permute.xlu0 %2118
  %2120 = vrot.lane.b32.xlu0 %v2055, 8
  %v2121 = vpop.permute.xlu0 %2120
  %2122 = vrot.lane.b32.xlu0 %v2056, 8
  %v2123 = vpop.permute.xlu0 %2122
  %2124 = vrot.lane.b32.xlu0 %v2057, 8
  %v2125 = vpop.permute.xlu0 %2124
  %2126 = vrot.lane.b32.xlu0 %v2058, 8
  %v2127 = vpop.permute.xlu0 %2126
  %2128 = vrot.lane.b32.xlu0 %v2059, 8
  %v2129 = vpop.permute.xlu0 %2128
  %2130 = vrot.lane.b32.xlu0 %v2060, 8
  %v2131 = vpop.permute.xlu0 %2130
  %2132 = vrot.lane.b32.xlu0 %v2061, 8
  %v2133 = vpop.permute.xlu0 %2132
  %2134 = vrot.lane.b32.xlu0 %v2062, 8
  %v2135 = vpop.permute.xlu0 %2134
  %2136 = vrot.lane.b32.xlu0 %v2063, 8
  %v2137 = vpop.permute.xlu0 %2136
  %2138 = vrot.lane.b32.xlu0 %v2064, 8
  %v2139 = vpop.permute.xlu0 %2138
  %2140 = vrot.lane.b32.xlu0 %v2065, 8
  %v2141 = vpop.permute.xlu0 %2140
  %2142 = vrot.lane.b32.xlu0 %v2066, 8
  %v2143 = vpop.permute.xlu0 %2142
  %2144 = vrot.lane.b32.xlu0 %v2067, 8
  %v2145 = vpop.permute.xlu0 %2144
  %2146 = vrot.lane.b32.xlu0 %v2068, 8
  %v2147 = vpop.permute.xlu0 %2146
  %2148 = vrot.lane.b32.xlu0 %v2069, 8
  %v2149 = vpop.permute.xlu0 %2148
  %2150 = vrot.lane.b32.xlu0 %v2070, 8
  %v2151 = vpop.permute.xlu0 %2150
  %2152 = vrot.lane.b32.xlu0 %v2071, 8
  %v2153 = vpop.permute.xlu0 %2152
  %2154 = vrot.lane.b32.xlu0 %v2072, 8
  %v2155 = vpop.permute.xlu0 %2154
  %2156 = vrot.lane.b32.xlu0 %v2073, 8
  %v2157 = vpop.permute.xlu0 %2156
  %2158 = vrot.lane.b32.xlu0 %v2074, 8
  %v2159 = vpop.permute.xlu0 %2158
  %2160 = vrot.lane.b32.xlu0 %v2075, 8
  %v2161 = vpop.permute.xlu0 %2160
  %2162 = vrot.lane.b32.xlu0 %v2076, 8
  %v2163 = vpop.permute.xlu0 %2162
  %2164 = vrot.lane.b32.xlu0 %v2077, 8
  %v2165 = vpop.permute.xlu0 %2164
  %2166 = vrot.lane.b32.xlu0 %v2078, 8
  %v2167 = vpop.permute.xlu0 %2166
  %2168 = vrot.lane.b32.xlu0 %v2079, 8
  %v2169 = vpop.permute.xlu0 %2168
  %2170 = vrot.lane.b32.xlu0 %v2080, 8
  %v2171 = vpop.permute.xlu0 %2170
  %2172 = vrot.lane.b32.xlu0 %v2081, 8
  %v2173 = vpop.permute.xlu0 %2172
  %2174 = vrot.lane.b32.xlu0 %v2082, 8
  %v2175 = vpop.permute.xlu0 %2174
  %2176 = vrot.lane.b32.xlu0 %v2083, 8
  %v2177 = vpop.permute.xlu0 %2176
  %2178 = vrot.lane.b32.xlu0 %v2084, 8
  %v2179 = vpop.permute.xlu0 %2178
  %2180 = vrot.lane.b32.xlu0 %v2085, 8
  %v2181 = vpop.permute.xlu0 %2180
  %2214 = vst.msk [vmem:[#allocation2] sm:$0xff] %vm429, %v2119
  %2215 = vst.msk [vmem:[#allocation2 + $0x8] sm:$0xff] %vm429, %v2121
  %2216 = vst.msk [vmem:[#allocation2 + $0x10] sm:$0xff] %vm429, %v2123
  %2217 = vst.msk [vmem:[#allocation2 + $0x18] sm:$0xff] %vm429, %v2125
  %2218 = vst.msk [vmem:[#allocation2 + $0x20] sm:$0xff] %vm429, %v2127
  %2219 = vst.msk [vmem:[#allocation2 + $0x28] sm:$0xff] %vm429, %v2129
  %2220 = vst.msk [vmem:[#allocation2 + $0x30] sm:$0xff] %vm429, %v2131
  %2221 = vst.msk [vmem:[#allocation2 + $0x38] sm:$0xff] %vm429, %v2133
  %2222 = vst.msk [vmem:[#allocation2 + $0x40] sm:$0xff] %vm429, %v2135
  %2223 = vst.msk [vmem:[#allocation2 + $0x48] sm:$0xff] %vm429, %v2137
  %2224 = vst.msk [vmem:[#allocation2 + $0x50] sm:$0xff] %vm429, %v2139
  %2225 = vst.msk [vmem:[#allocation2 + $0x58] sm:$0xff] %vm429, %v2141
  %2226 = vst.msk [vmem:[#allocation2 + $0x60] sm:$0xff] %vm429, %v2143
  %2227 = vst.msk [vmem:[#allocation2 + $0x68] sm:$0xff] %vm429, %v2145
  %2228 = vst.msk [vmem:[#allocation2 + $0x70] sm:$0xff] %vm429, %v2147
  %2229 = vst.msk [vmem:[#allocation2 + $0x78] sm:$0xff] %vm429, %v2149
  %2230 = vst.msk [vmem:[#allocation2 + $0x80] sm:$0xff] %vm429, %v2151
  %2231 = vst.msk [vmem:[#allocation2 + $0x88] sm:$0xff] %vm429, %v2153
  %2232 = vst.msk [vmem:[#allocation2 + $0x90] sm:$0xff] %vm429, %v2155
  %2233 = vst.msk [vmem:[#allocation2 + $0x98] sm:$0xff] %vm429, %v2157
  %2234 = vst.msk [vmem:[#allocation2 + $0xa0] sm:$0xff] %vm429, %v2159
  %2235 = vst.msk [vmem:[#allocation2 + $0xa8] sm:$0xff] %vm429, %v2161
  %2236 = vst.msk [vmem:[#allocation2 + $0xb0] sm:$0xff] %vm429, %v2163
  %2237 = vst.msk [vmem:[#allocation2 + $0xb8] sm:$0xff] %vm429, %v2165
  %2238 = vst.msk [vmem:[#allocation2 + $0xc0] sm:$0xff] %vm429, %v2167
  %2239 = vst.msk [vmem:[#allocation2 + $0xc8] sm:$0xff] %vm429, %v2169
  %2240 = vst.msk [vmem:[#allocation2 + $0xd0] sm:$0xff] %vm429, %v2171
  %2241 = vst.msk [vmem:[#allocation2 + $0xd8] sm:$0xff] %vm429, %v2173
  %2242 = vst.msk [vmem:[#allocation2 + $0xe0] sm:$0xff] %vm429, %v2175
  %2243 = vst.msk [vmem:[#allocation2 + $0xe8] sm:$0xff] %vm429, %v2177
  %2244 = vst.msk [vmem:[#allocation2 + $0xf0] sm:$0xff] %vm429, %v2179
  %2245 = vst.msk [vmem:[#allocation2 + $0xf8] sm:$0xff] %vm429, %v2181
  %s2246 = scalar_lea.vmem %s0, 456
  %v2247 = vld [vmem:[%s2246] sm:$0xff]
  %v2248 = vld [vmem:[%s2246 + $0x8] sm:$0xff]
  %v2249 = vld [vmem:[%s2246 + $0x18] sm:$0xff]
  %v2250 = vld [vmem:[%s2246 + $0x20] sm:$0xff]
  %v2251 = vld [vmem:[%s2246 + $0x30] sm:$0xff]
  %v2252 = vld [vmem:[%s2246 + $0x38] sm:$0xff]
  %v2253 = vld [vmem:[%s2246 + $0x48] sm:$0xff]
  %v2254 = vld [vmem:[%s2246 + $0x50] sm:$0xff]
  %v2255 = vld [vmem:[%s2246 + $0x60] sm:$0xff]
  %v2256 = vld [vmem:[%s2246 + $0x68] sm:$0xff]
  %v2257 = vld [vmem:[%s2246 + $0x78] sm:$0xff]
  %v2258 = vld [vmem:[%s2246 + $0x80] sm:$0xff]
  %v2259 = vld [vmem:[%s2246 + $0x90] sm:$0xff]
  %v2260 = vld [vmem:[%s2246 + $0x98] sm:$0xff]
  %v2261 = vld [vmem:[%s2246 + $0xa8] sm:$0xff]
  %v2262 = vld [vmem:[%s2246 + $0xb0] sm:$0xff]
  %v2263 = vld [vmem:[%s2246 + $0xc0] sm:$0xff]
  %v2264 = vld [vmem:[%s2246 + $0xc8] sm:$0xff]
  %v2265 = vld [vmem:[%s2246 + $0xd8] sm:$0xff]
  %v2266 = vld [vmem:[%s2246 + $0xe0] sm:$0xff]
  %v2267 = vld [vmem:[%s2246 + $0xf0] sm:$0xff]
  %v2268 = vld [vmem:[%s2246 + $0xf8] sm:$0xff]
  %v2269 = vld [vmem:[%s2246 + $0x108] sm:$0xff]
  %v2270 = vld [vmem:[%s2246 + $0x110] sm:$0xff]
  %v2271 = vld [vmem:[%s2246 + $0x120] sm:$0xff]
  %v2272 = vld [vmem:[%s2246 + $0x128] sm:$0xff]
  %v2273 = vld [vmem:[%s2246 + $0x138] sm:$0xff]
  %v2274 = vld [vmem:[%s2246 + $0x140] sm:$0xff]
  %v2275 = vld [vmem:[%s2246 + $0x150] sm:$0xff]
  %v2276 = vld [vmem:[%s2246 + $0x158] sm:$0xff]
  %v2277 = vld [vmem:[%s2246 + $0x168] sm:$0xff]
  %v2278 = vld [vmem:[%s2246 + $0x170] sm:$0xff]
  %2311 = vrot.lane.b32.xlu0 %v2247, 12
  %v2312 = vpop.permute.xlu0 %2311
  %2313 = vrot.lane.b32.xlu0 %v2248, 12
  %v2314 = vpop.permute.xlu0 %2313
  %2315 = vrot.lane.b32.xlu0 %v2249, 12
  %v2316 = vpop.permute.xlu0 %2315
  %2317 = vrot.lane.b32.xlu0 %v2250, 12
  %v2318 = vpop.permute.xlu0 %2317
  %2319 = vrot.lane.b32.xlu0 %v2251, 12
  %v2320 = vpop.permute.xlu0 %2319
  %2321 = vrot.lane.b32.xlu0 %v2252, 12
  %v2322 = vpop.permute.xlu0 %2321
  %2323 = vrot.lane.b32.xlu0 %v2253, 12
  %v2324 = vpop.permute.xlu0 %2323
  %2325 = vrot.lane.b32.xlu0 %v2254, 12
  %v2326 = vpop.permute.xlu0 %2325
  %2327 = vrot.lane.b32.xlu0 %v2255, 12
  %v2328 = vpop.permute.xlu0 %2327
  %2329 = vrot.lane.b32.xlu0 %v2256, 12
  %v2330 = vpop.permute.xlu0 %2329
  %2331 = vrot.lane.b32.xlu0 %v2257, 12
  %v2332 = vpop.permute.xlu0 %2331
  %2333 = vrot.lane.b32.xlu0 %v2258, 12
  %v2334 = vpop.permute.xlu0 %2333
  %2335 = vrot.lane.b32.xlu0 %v2259, 12
  %v2336 = vpop.permute.xlu0 %2335
  %2337 = vrot.lane.b32.xlu0 %v2260, 12
  %v2338 = vpop.permute.xlu0 %2337
  %2339 = vrot.lane.b32.xlu0 %v2261, 12
  %v2340 = vpop.permute.xlu0 %2339
  %2341 = vrot.lane.b32.xlu0 %v2262, 12
  %v2342 = vpop.permute.xlu0 %2341
  %2343 = vrot.lane.b32.xlu0 %v2263, 12
  %v2344 = vpop.permute.xlu0 %2343
  %2345 = vrot.lane.b32.xlu0 %v2264, 12
  %v2346 = vpop.permute.xlu0 %2345
  %2347 = vrot.lane.b32.xlu0 %v2265, 12
  %v2348 = vpop.permute.xlu0 %2347
  %2349 = vrot.lane.b32.xlu0 %v2266, 12
  %v2350 = vpop.permute.xlu0 %2349
  %2351 = vrot.lane.b32.xlu0 %v2267, 12
  %v2352 = vpop.permute.xlu0 %2351
  %2353 = vrot.lane.b32.xlu0 %v2268, 12
  %v2354 = vpop.permute.xlu0 %2353
  %2355 = vrot.lane.b32.xlu0 %v2269, 12
  %v2356 = vpop.permute.xlu0 %2355
  %2357 = vrot.lane.b32.xlu0 %v2270, 12
  %v2358 = vpop.permute.xlu0 %2357
  %2359 = vrot.lane.b32.xlu0 %v2271, 12
  %v2360 = vpop.permute.xlu0 %2359
  %2361 = vrot.lane.b32.xlu0 %v2272, 12
  %v2362 = vpop.permute.xlu0 %2361
  %2363 = vrot.lane.b32.xlu0 %v2273, 12
  %v2364 = vpop.permute.xlu0 %2363
  %2365 = vrot.lane.b32.xlu0 %v2274, 12
  %v2366 = vpop.permute.xlu0 %2365
  %2367 = vrot.lane.b32.xlu0 %v2275, 12
  %v2368 = vpop.permute.xlu0 %2367
  %2369 = vrot.lane.b32.xlu0 %v2276, 12
  %v2370 = vpop.permute.xlu0 %2369
  %2371 = vrot.lane.b32.xlu0 %v2277, 12
  %v2372 = vpop.permute.xlu0 %2371
  %2373 = vrot.lane.b32.xlu0 %v2278, 12
  %v2374 = vpop.permute.xlu0 %2373
  %2407 = vst.msk [vmem:[#allocation2] sm:$0xff] %vm623, %v2312
  %2408 = vst.msk [vmem:[#allocation2 + $0x8] sm:$0xff] %vm623, %v2314
  %2409 = vst.msk [vmem:[#allocation2 + $0x10] sm:$0xff] %vm623, %v2316
  %2410 = vst.msk [vmem:[#allocation2 + $0x18] sm:$0xff] %vm623, %v2318
  %2411 = vst.msk [vmem:[#allocation2 + $0x20] sm:$0xff] %vm623, %v2320
  %2412 = vst.msk [vmem:[#allocation2 + $0x28] sm:$0xff] %vm623, %v2322
  %2413 = vst.msk [vmem:[#allocation2 + $0x30] sm:$0xff] %vm623, %v2324
  %2414 = vst.msk [vmem:[#allocation2 + $0x38] sm:$0xff] %vm623, %v2326
  %2415 = vst.msk [vmem:[#allocation2 + $0x40] sm:$0xff] %vm623, %v2328
  %2416 = vst.msk [vmem:[#allocation2 + $0x48] sm:$0xff] %vm623, %v2330
  %2417 = vst.msk [vmem:[#allocation2 + $0x50] sm:$0xff] %vm623, %v2332
  %2418 = vst.msk [vmem:[#allocation2 + $0x58] sm:$0xff] %vm623, %v2334
  %2419 = vst.msk [vmem:[#allocation2 + $0x60] sm:$0xff] %vm623, %v2336
  %2420 = vst.msk [vmem:[#allocation2 + $0x68] sm:$0xff] %vm623, %v2338
  %2421 = vst.msk [vmem:[#allocation2 + $0x70] sm:$0xff] %vm623, %v2340
  %2422 = vst.msk [vmem:[#allocation2 + $0x78] sm:$0xff] %vm623, %v2342
  %2423 = vst.msk [vmem:[#allocation2 + $0x80] sm:$0xff] %vm623, %v2344
  %2424 = vst.msk [vmem:[#allocation2 + $0x88] sm:$0xff] %vm623, %v2346
  %2425 = vst.msk [vmem:[#allocation2 + $0x90] sm:$0xff] %vm623, %v2348
  %2426 = vst.msk [vmem:[#allocation2 + $0x98] sm:$0xff] %vm623, %v2350
  %2427 = vst.msk [vmem:[#allocation2 + $0xa0] sm:$0xff] %vm623, %v2352
  %2428 = vst.msk [vmem:[#allocation2 + $0xa8] sm:$0xff] %vm623, %v2354
  %2429 = vst.msk [vmem:[#allocation2 + $0xb0] sm:$0xff] %vm623, %v2356
  %2430 = vst.msk [vmem:[#allocation2 + $0xb8] sm:$0xff] %vm623, %v2358
  %2431 = vst.msk [vmem:[#allocation2 + $0xc0] sm:$0xff] %vm623, %v2360
  %2432 = vst.msk [vmem:[#allocation2 + $0xc8] sm:$0xff] %vm623, %v2362
  %2433 = vst.msk [vmem:[#allocation2 + $0xd0] sm:$0xff] %vm623, %v2364
  %2434 = vst.msk [vmem:[#allocation2 + $0xd8] sm:$0xff] %vm623, %v2366
  %2435 = vst.msk [vmem:[#allocation2 + $0xe0] sm:$0xff] %vm623, %v2368
  %2436 = vst.msk [vmem:[#allocation2 + $0xe8] sm:$0xff] %vm623, %v2370
  %2437 = vst.msk [vmem:[#allocation2 + $0xf0] sm:$0xff] %vm623, %v2372
  %2438 = vst.msk [vmem:[#allocation2 + $0xf8] sm:$0xff] %vm623, %v2374
  %v2439 = vld [vmem:[%s2246 + $0x1] sm:$0xff]
  %v2440 = vld [vmem:[%s2246 + $0x9] sm:$0xff]
  %v2441 = vld [vmem:[%s2246 + $0x19] sm:$0xff]
  %v2442 = vld [vmem:[%s2246 + $0x21] sm:$0xff]
  %v2443 = vld [vmem:[%s2246 + $0x31] sm:$0xff]
  %v2444 = vld [vmem:[%s2246 + $0x39] sm:$0xff]
  %v2445 = vld [vmem:[%s2246 + $0x49] sm:$0xff]
  %v2446 = vld [vmem:[%s2246 + $0x51] sm:$0xff]
  %v2447 = vld [vmem:[%s2246 + $0x61] sm:$0xff]
  %v2448 = vld [vmem:[%s2246 + $0x69] sm:$0xff]
  %v2449 = vld [vmem:[%s2246 + $0x79] sm:$0xff]
  %v2450 = vld [vmem:[%s2246 + $0x81] sm:$0xff]
  %v2451 = vld [vmem:[%s2246 + $0x91] sm:$0xff]
  %v2452 = vld [vmem:[%s2246 + $0x99] sm:$0xff]
  %v2453 = vld [vmem:[%s2246 + $0xa9] sm:$0xff]
  %v2454 = vld [vmem:[%s2246 + $0xb1] sm:$0xff]
  %v2455 = vld [vmem:[%s2246 + $0xc1] sm:$0xff]
  %v2456 = vld [vmem:[%s2246 + $0xc9] sm:$0xff]
  %v2457 = vld [vmem:[%s2246 + $0xd9] sm:$0xff]
  %v2458 = vld [vmem:[%s2246 + $0xe1] sm:$0xff]
  %v2459 = vld [vmem:[%s2246 + $0xf1] sm:$0xff]
  %v2460 = vld [vmem:[%s2246 + $0xf9] sm:$0xff]
  %v2461 = vld [vmem:[%s2246 + $0x109] sm:$0xff]
  %v2462 = vld [vmem:[%s2246 + $0x111] sm:$0xff]
  %v2463 = vld [vmem:[%s2246 + $0x121] sm:$0xff]
  %v2464 = vld [vmem:[%s2246 + $0x129] sm:$0xff]
  %v2465 = vld [vmem:[%s2246 + $0x139] sm:$0xff]
  %v2466 = vld [vmem:[%s2246 + $0x141] sm:$0xff]
  %v2467 = vld [vmem:[%s2246 + $0x151] sm:$0xff]
  %v2468 = vld [vmem:[%s2246 + $0x159] sm:$0xff]
  %v2469 = vld [vmem:[%s2246 + $0x169] sm:$0xff]
  %v2470 = vld [vmem:[%s2246 + $0x171] sm:$0xff]
  %2503 = vrot.lane.b32.xlu0 %v2439, 16
  %v2504 = vpop.permute.xlu0 %2503
  %2505 = vrot.lane.b32.xlu0 %v2440, 16
  %v2506 = vpop.permute.xlu0 %2505
  %2507 = vrot.lane.b32.xlu0 %v2441, 16
  %v2508 = vpop.permute.xlu0 %2507
  %2509 = vrot.lane.b32.xlu0 %v2442, 16
  %v2510 = vpop.permute.xlu0 %2509
  %2511 = vrot.lane.b32.xlu0 %v2443, 16
  %v2512 = vpop.permute.xlu0 %2511
  %2513 = vrot.lane.b32.xlu0 %v2444, 16
  %v2514 = vpop.permute.xlu0 %2513
  %2515 = vrot.lane.b32.xlu0 %v2445, 16
  %v2516 = vpop.permute.xlu0 %2515
  %2517 = vrot.lane.b32.xlu0 %v2446, 16
  %v2518 = vpop.permute.xlu0 %2517
  %2519 = vrot.lane.b32.xlu0 %v2447, 16
  %v2520 = vpop.permute.xlu0 %2519
  %2521 = vrot.lane.b32.xlu0 %v2448, 16
  %v2522 = vpop.permute.xlu0 %2521
  %2523 = vrot.lane.b32.xlu0 %v2449, 16
  %v2524 = vpop.permute.xlu0 %2523
  %2525 = vrot.lane.b32.xlu0 %v2450, 16
  %v2526 = vpop.permute.xlu0 %2525
  %2527 = vrot.lane.b32.xlu0 %v2451, 16
  %v2528 = vpop.permute.xlu0 %2527
  %2529 = vrot.lane.b32.xlu0 %v2452, 16
  %v2530 = vpop.permute.xlu0 %2529
  %2531 = vrot.lane.b32.xlu0 %v2453, 16
  %v2532 = vpop.permute.xlu0 %2531
  %2533 = vrot.lane.b32.xlu0 %v2454, 16
  %v2534 = vpop.permute.xlu0 %2533
  %2535 = vrot.lane.b32.xlu0 %v2455, 16
  %v2536 = vpop.permute.xlu0 %2535
  %2537 = vrot.lane.b32.xlu0 %v2456, 16
  %v2538 = vpop.permute.xlu0 %2537
  %2539 = vrot.lane.b32.xlu0 %v2457, 16
  %v2540 = vpop.permute.xlu0 %2539
  %2541 = vrot.lane.b32.xlu0 %v2458, 16
  %v2542 = vpop.permute.xlu0 %2541
  %2543 = vrot.lane.b32.xlu0 %v2459, 16
  %v2544 = vpop.permute.xlu0 %2543
  %2545 = vrot.lane.b32.xlu0 %v2460, 16
  %v2546 = vpop.permute.xlu0 %2545
  %2547 = vrot.lane.b32.xlu0 %v2461, 16
  %v2548 = vpop.permute.xlu0 %2547
  %2549 = vrot.lane.b32.xlu0 %v2462, 16
  %v2550 = vpop.permute.xlu0 %2549
  %2551 = vrot.lane.b32.xlu0 %v2463, 16
  %v2552 = vpop.permute.xlu0 %2551
  %2553 = vrot.lane.b32.xlu0 %v2464, 16
  %v2554 = vpop.permute.xlu0 %2553
  %2555 = vrot.lane.b32.xlu0 %v2465, 16
  %v2556 = vpop.permute.xlu0 %2555
  %2557 = vrot.lane.b32.xlu0 %v2466, 16
  %v2558 = vpop.permute.xlu0 %2557
  %2559 = vrot.lane.b32.xlu0 %v2467, 16
  %v2560 = vpop.permute.xlu0 %2559
  %2561 = vrot.lane.b32.xlu0 %v2468, 16
  %v2562 = vpop.permute.xlu0 %2561
  %2563 = vrot.lane.b32.xlu0 %v2469, 16
  %v2564 = vpop.permute.xlu0 %2563
  %2565 = vrot.lane.b32.xlu0 %v2470, 16
  %v2566 = vpop.permute.xlu0 %2565
  %2599 = vst.msk [vmem:[#allocation2] sm:$0xff] %vm816, %v2504
  %2600 = vst.msk [vmem:[#allocation2 + $0x8] sm:$0xff] %vm816, %v2506
  %2601 = vst.msk [vmem:[#allocation2 + $0x10] sm:$0xff] %vm816, %v2508
  %2602 = vst.msk [vmem:[#allocation2 + $0x18] sm:$0xff] %vm816, %v2510
  %2603 = vst.msk [vmem:[#allocation2 + $0x20] sm:$0xff] %vm816, %v2512
  %2604 = vst.msk [vmem:[#allocation2 + $0x28] sm:$0xff] %vm816, %v2514
  %2605 = vst.msk [vmem:[#allocation2 + $0x30] sm:$0xff] %vm816, %v2516
  %2606 = vst.msk [vmem:[#allocation2 + $0x38] sm:$0xff] %vm816, %v2518
  %2607 = vst.msk [vmem:[#allocation2 + $0x40] sm:$0xff] %vm816, %v2520
  %2608 = vst.msk [vmem:[#allocation2 + $0x48] sm:$0xff] %vm816, %v2522
  %2609 = vst.msk [vmem:[#allocation2 + $0x50] sm:$0xff] %vm816, %v2524
  %2610 = vst.msk [vmem:[#allocation2 + $0x58] sm:$0xff] %vm816, %v2526
  %2611 = vst.msk [vmem:[#allocation2 + $0x60] sm:$0xff] %vm816, %v2528
  %2612 = vst.msk [vmem:[#allocation2 + $0x68] sm:$0xff] %vm816, %v2530
  %2613 = vst.msk [vmem:[#allocation2 + $0x70] sm:$0xff] %vm816, %v2532
  %2614 = vst.msk [vmem:[#allocation2 + $0x78] sm:$0xff] %vm816, %v2534
  %2615 = vst.msk [vmem:[#allocation2 + $0x80] sm:$0xff] %vm816, %v2536
  %2616 = vst.msk [vmem:[#allocation2 + $0x88] sm:$0xff] %vm816, %v2538
  %2617 = vst.msk [vmem:[#allocation2 + $0x90] sm:$0xff] %vm816, %v2540
  %2618 = vst.msk [vmem:[#allocation2 + $0x98] sm:$0xff] %vm816, %v2542
  %2619 = vst.msk [vmem:[#allocation2 + $0xa0] sm:$0xff] %vm816, %v2544
  %2620 = vst.msk [vmem:[#allocation2 + $0xa8] sm:$0xff] %vm816, %v2546
  %2621 = vst.msk [vmem:[#allocation2 + $0xb0] sm:$0xff] %vm816, %v2548
  %2622 = vst.msk [vmem:[#allocation2 + $0xb8] sm:$0xff] %vm816, %v2550
  %2623 = vst.msk [vmem:[#allocation2 + $0xc0] sm:$0xff] %vm816, %v2552
  %2624 = vst.msk [vmem:[#allocation2 + $0xc8] sm:$0xff] %vm816, %v2554
  %2625 = vst.msk [vmem:[#allocation2 + $0xd0] sm:$0xff] %vm816, %v2556
  %2626 = vst.msk [vmem:[#allocation2 + $0xd8] sm:$0xff] %vm816, %v2558
  %2627 = vst.msk [vmem:[#allocation2 + $0xe0] sm:$0xff] %vm816, %v2560
  %2628 = vst.msk [vmem:[#allocation2 + $0xe8] sm:$0xff] %vm816, %v2562
  %2629 = vst.msk [vmem:[#allocation2 + $0xf0] sm:$0xff] %vm816, %v2564
  %2630 = vst.msk [vmem:[#allocation2 + $0xf8] sm:$0xff] %vm816, %v2566
  %v2631 = vld [vmem:[%s2246 + $0x2] sm:$0xff]
  %v2632 = vld [vmem:[%s2246 + $0xa] sm:$0xff]
  %v2633 = vld [vmem:[%s2246 + $0x1a] sm:$0xff]
  %v2634 = vld [vmem:[%s2246 + $0x22] sm:$0xff]
  %v2635 = vld [vmem:[%s2246 + $0x32] sm:$0xff]
  %v2636 = vld [vmem:[%s2246 + $0x3a] sm:$0xff]
  %v2637 = vld [vmem:[%s2246 + $0x4a] sm:$0xff]
  %v2638 = vld [vmem:[%s2246 + $0x52] sm:$0xff]
  %v2639 = vld [vmem:[%s2246 + $0x62] sm:$0xff]
  %v2640 = vld [vmem:[%s2246 + $0x6a] sm:$0xff]
  %v2641 = vld [vmem:[%s2246 + $0x7a] sm:$0xff]
  %v2642 = vld [vmem:[%s2246 + $0x82] sm:$0xff]
  %v2643 = vld [vmem:[%s2246 + $0x92] sm:$0xff]
  %v2644 = vld [vmem:[%s2246 + $0x9a] sm:$0xff]
  %v2645 = vld [vmem:[%s2246 + $0xaa] sm:$0xff]
  %v2646 = vld [vmem:[%s2246 + $0xb2] sm:$0xff]
  %v2647 = vld [vmem:[%s2246 + $0xc2] sm:$0xff]
  %v2648 = vld [vmem:[%s2246 + $0xca] sm:$0xff]
  %v2649 = vld [vmem:[%s2246 + $0xda] sm:$0xff]
  %v2650 = vld [vmem:[%s2246 + $0xe2] sm:$0xff]
  %v2651 = vld [vmem:[%s2246 + $0xf2] sm:$0xff]
  %v2652 = vld [vmem:[%s2246 + $0xfa] sm:$0xff]
  %v2653 = vld [vmem:[%s2246 + $0x10a] sm:$0xff]
  %v2654 = vld [vmem:[%s2246 + $0x112] sm:$0xff]
  %v2655 = vld [vmem:[%s2246 + $0x122] sm:$0xff]
  %v2656 = vld [vmem:[%s2246 + $0x12a] sm:$0xff]
  %v2657 = vld [vmem:[%s2246 + $0x13a] sm:$0xff]
  %v2658 = vld [vmem:[%s2246 + $0x142] sm:$0xff]
  %v2659 = vld [vmem:[%s2246 + $0x152] sm:$0xff]
  %v2660 = vld [vmem:[%s2246 + $0x15a] sm:$0xff]
  %v2661 = vld [vmem:[%s2246 + $0x16a] sm:$0xff]
  %v2662 = vld [vmem:[%s2246 + $0x172] sm:$0xff]
  %2695 = vrot.lane.b32.xlu0 %v2631, 20
  %v2696 = vpop.permute.xlu0 %2695
  %2697 = vrot.lane.b32.xlu0 %v2632, 20
  %v2698 = vpop.permute.xlu0 %2697
  %2699 = vrot.lane.b32.xlu0 %v2633, 20
  %v2700 = vpop.permute.xlu0 %2699
  %2701 = vrot.lane.b32.xlu0 %v2634, 20
  %v2702 = vpop.permute.xlu0 %2701
  %2703 = vrot.lane.b32.xlu0 %v2635, 20
  %v2704 = vpop.permute.xlu0 %2703
  %2705 = vrot.lane.b32.xlu0 %v2636, 20
  %v2706 = vpop.permute.xlu0 %2705
  %2707 = vrot.lane.b32.xlu0 %v2637, 20
  %v2708 = vpop.permute.xlu0 %2707
  %2709 = vrot.lane.b32.xlu0 %v2638, 20
  %v2710 = vpop.permute.xlu0 %2709
  %2711 = vrot.lane.b32.xlu0 %v2639, 20
  %v2712 = vpop.permute.xlu0 %2711
  %2713 = vrot.lane.b32.xlu0 %v2640, 20
  %v2714 = vpop.permute.xlu0 %2713
  %2715 = vrot.lane.b32.xlu0 %v2641, 20
  %v2716 = vpop.permute.xlu0 %2715
  %2717 = vrot.lane.b32.xlu0 %v2642, 20
  %v2718 = vpop.permute.xlu0 %2717
  %2719 = vrot.lane.b32.xlu0 %v2643, 20
  %v2720 = vpop.permute.xlu0 %2719
  %2721 = vrot.lane.b32.xlu0 %v2644, 20
  %v2722 = vpop.permute.xlu0 %2721
  %2723 = vrot.lane.b32.xlu0 %v2645, 20
  %v2724 = vpop.permute.xlu0 %2723
  %2725 = vrot.lane.b32.xlu0 %v2646, 20
  %v2726 = vpop.permute.xlu0 %2725
  %2727 = vrot.lane.b32.xlu0 %v2647, 20
  %v2728 = vpop.permute.xlu0 %2727
  %2729 = vrot.lane.b32.xlu0 %v2648, 20
  %v2730 = vpop.permute.xlu0 %2729
  %2731 = vrot.lane.b32.xlu0 %v2649, 20
  %v2732 = vpop.permute.xlu0 %2731
  %2733 = vrot.lane.b32.xlu0 %v2650, 20
  %v2734 = vpop.permute.xlu0 %2733
  %2735 = vrot.lane.b32.xlu0 %v2651, 20
  %v2736 = vpop.permute.xlu0 %2735
  %2737 = vrot.lane.b32.xlu0 %v2652, 20
  %v2738 = vpop.permute.xlu0 %2737
  %2739 = vrot.lane.b32.xlu0 %v2653, 20
  %v2740 = vpop.permute.xlu0 %2739
  %2741 = vrot.lane.b32.xlu0 %v2654, 20
  %v2742 = vpop.permute.xlu0 %2741
  %2743 = vrot.lane.b32.xlu0 %v2655, 20
  %v2744 = vpop.permute.xlu0 %2743
  %2745 = vrot.lane.b32.xlu0 %v2656, 20
  %v2746 = vpop.permute.xlu0 %2745
  %2747 = vrot.lane.b32.xlu0 %v2657, 20
  %v2748 = vpop.permute.xlu0 %2747
  %2749 = vrot.lane.b32.xlu0 %v2658, 20
  %v2750 = vpop.permute.xlu0 %2749
  %2751 = vrot.lane.b32.xlu0 %v2659, 20
  %v2752 = vpop.permute.xlu0 %2751
  %2753 = vrot.lane.b32.xlu0 %v2660, 20
  %v2754 = vpop.permute.xlu0 %2753
  %2755 = vrot.lane.b32.xlu0 %v2661, 20
  %v2756 = vpop.permute.xlu0 %2755
  %2757 = vrot.lane.b32.xlu0 %v2662, 20
  %v2758 = vpop.permute.xlu0 %2757
  %2791 = vst.msk [vmem:[#allocation2] sm:$0xff] %vm1009, %v2696
  %2792 = vst.msk [vmem:[#allocation2 + $0x8] sm:$0xff] %vm1009, %v2698
  %2793 = vst.msk [vmem:[#allocation2 + $0x10] sm:$0xff] %vm1009, %v2700
  %2794 = vst.msk [vmem:[#allocation2 + $0x18] sm:$0xff] %vm1009, %v2702
  %2795 = vst.msk [vmem:[#allocation2 + $0x20] sm:$0xff] %vm1009, %v2704
  %2796 = vst.msk [vmem:[#allocation2 + $0x28] sm:$0xff] %vm1009, %v2706
  %2797 = vst.msk [vmem:[#allocation2 + $0x30] sm:$0xff] %vm1009, %v2708
  %2798 = vst.msk [vmem:[#allocation2 + $0x38] sm:$0xff] %vm1009, %v2710
  %2799 = vst.msk [vmem:[#allocation2 + $0x40] sm:$0xff] %vm1009, %v2712
  %2800 = vst.msk [vmem:[#allocation2 + $0x48] sm:$0xff] %vm1009, %v2714
  %2801 = vst.msk [vmem:[#allocation2 + $0x50] sm:$0xff] %vm1009, %v2716
  %2802 = vst.msk [vmem:[#allocation2 + $0x58] sm:$0xff] %vm1009, %v2718
  %2803 = vst.msk [vmem:[#allocation2 + $0x60] sm:$0xff] %vm1009, %v2720
  %2804 = vst.msk [vmem:[#allocation2 + $0x68] sm:$0xff] %vm1009, %v2722
  %2805 = vst.msk [vmem:[#allocation2 + $0x70] sm:$0xff] %vm1009, %v2724
  %2806 = vst.msk [vmem:[#allocation2 + $0x78] sm:$0xff] %vm1009, %v2726
  %2807 = vst.msk [vmem:[#allocation2 + $0x80] sm:$0xff] %vm1009, %v2728
  %2808 = vst.msk [vmem:[#allocation2 + $0x88] sm:$0xff] %vm1009, %v2730
  %2809 = vst.msk [vmem:[#allocation2 + $0x90] sm:$0xff] %vm1009, %v2732
  %2810 = vst.msk [vmem:[#allocation2 + $0x98] sm:$0xff] %vm1009, %v2734
  %2811 = vst.msk [vmem:[#allocation2 + $0xa0] sm:$0xff] %vm1009, %v2736
  %2812 = vst.msk [vmem:[#allocation2 + $0xa8] sm:$0xff] %vm1009, %v2738
  %2813 = vst.msk [vmem:[#allocation2 + $0xb0] sm:$0xff] %vm1009, %v2740
  %2814 = vst.msk [vmem:[#allocation2 + $0xb8] sm:$0xff] %vm1009, %v2742
  %2815 = vst.msk [vmem:[#allocation2 + $0xc0] sm:$0xff] %vm1009, %v2744
  %2816 = vst.msk [vmem:[#allocation2 + $0xc8] sm:$0xff] %vm1009, %v2746
  %2817 = vst.msk [vmem:[#allocation2 + $0xd0] sm:$0xff] %vm1009, %v2748
  %2818 = vst.msk [vmem:[#allocation2 + $0xd8] sm:$0xff] %vm1009, %v2750
  %2819 = vst.msk [vmem:[#allocation2 + $0xe0] sm:$0xff] %vm1009, %v2752
  %2820 = vst.msk [vmem:[#allocation2 + $0xe8] sm:$0xff] %vm1009, %v2754
  %2821 = vst.msk [vmem:[#allocation2 + $0xf0] sm:$0xff] %vm1009, %v2756
  %2822 = vst.msk [vmem:[#allocation2 + $0xf8] sm:$0xff] %vm1009, %v2758
  %s2823 = scalar_lea.vmem %s0, 480
  %v2824 = vld [vmem:[%s2823] sm:$0xff]
  %v2825 = vld [vmem:[%s2823 + $0x8] sm:$0xff]
  %v2826 = vld [vmem:[%s2823 + $0x18] sm:$0xff]
  %v2827 = vld [vmem:[%s2823 + $0x20] sm:$0xff]
  %v2828 = vld [vmem:[%s2823 + $0x30] sm:$0xff]
  %v2829 = vld [vmem:[%s2823 + $0x38] sm:$0xff]
  %v2830 = vld [vmem:[%s2823 + $0x48] sm:$0xff]
  %v2831 = vld [vmem:[%s2823 + $0x50] sm:$0xff]
  %v2832 = vld [vmem:[%s2823 + $0x60] sm:$0xff]
  %v2833 = vld [vmem:[%s2823 + $0x68] sm:$0xff]
  %v2834 = vld [vmem:[%s2823 + $0x78] sm:$0xff]
  %v2835 = vld [vmem:[%s2823 + $0x80] sm:$0xff]
  %v2836 = vld [vmem:[%s2823 + $0x90] sm:$0xff]
  %v2837 = vld [vmem:[%s2823 + $0x98] sm:$0xff]
  %v2838 = vld [vmem:[%s2823 + $0xa8] sm:$0xff]
  %v2839 = vld [vmem:[%s2823 + $0xb0] sm:$0xff]
  %v2840 = vld [vmem:[%s2823 + $0xc0] sm:$0xff]
  %v2841 = vld [vmem:[%s2823 + $0xc8] sm:$0xff]
  %v2842 = vld [vmem:[%s2823 + $0xd8] sm:$0xff]
  %v2843 = vld [vmem:[%s2823 + $0xe0] sm:$0xff]
  %v2844 = vld [vmem:[%s2823 + $0xf0] sm:$0xff]
  %v2845 = vld [vmem:[%s2823 + $0xf8] sm:$0xff]
  %v2846 = vld [vmem:[%s2823 + $0x108] sm:$0xff]
  %v2847 = vld [vmem:[%s2823 + $0x110] sm:$0xff]
  %v2848 = vld [vmem:[%s2823 + $0x120] sm:$0xff]
  %v2849 = vld [vmem:[%s2823 + $0x128] sm:$0xff]
  %v2850 = vld [vmem:[%s2823 + $0x138] sm:$0xff]
  %v2851 = vld [vmem:[%s2823 + $0x140] sm:$0xff]
  %v2852 = vld [vmem:[%s2823 + $0x150] sm:$0xff]
  %v2853 = vld [vmem:[%s2823 + $0x158] sm:$0xff]
  %v2854 = vld [vmem:[%s2823 + $0x168] sm:$0xff]
  %v2855 = vld [vmem:[%s2823 + $0x170] sm:$0xff]
  %2888 = vrot.lane.b32.xlu0 %v2824, 24
  %v2889 = vpop.permute.xlu0 %2888
  %2890 = vrot.lane.b32.xlu0 %v2825, 24
  %v2891 = vpop.permute.xlu0 %2890
  %2892 = vrot.lane.b32.xlu0 %v2826, 24
  %v2893 = vpop.permute.xlu0 %2892
  %2894 = vrot.lane.b32.xlu0 %v2827, 24
  %v2895 = vpop.permute.xlu0 %2894
  %2896 = vrot.lane.b32.xlu0 %v2828, 24
  %v2897 = vpop.permute.xlu0 %2896
  %2898 = vrot.lane.b32.xlu0 %v2829, 24
  %v2899 = vpop.permute.xlu0 %2898
  %2900 = vrot.lane.b32.xlu0 %v2830, 24
  %v2901 = vpop.permute.xlu0 %2900
  %2902 = vrot.lane.b32.xlu0 %v2831, 24
  %v2903 = vpop.permute.xlu0 %2902
  %2904 = vrot.lane.b32.xlu0 %v2832, 24
  %v2905 = vpop.permute.xlu0 %2904
  %2906 = vrot.lane.b32.xlu0 %v2833, 24
  %v2907 = vpop.permute.xlu0 %2906
  %2908 = vrot.lane.b32.xlu0 %v2834, 24
  %v2909 = vpop.permute.xlu0 %2908
  %2910 = vrot.lane.b32.xlu0 %v2835, 24
  %v2911 = vpop.permute.xlu0 %2910
  %2912 = vrot.lane.b32.xlu0 %v2836, 24
  %v2913 = vpop.permute.xlu0 %2912
  %2914 = vrot.lane.b32.xlu0 %v2837, 24
  %v2915 = vpop.permute.xlu0 %2914
  %2916 = vrot.lane.b32.xlu0 %v2838, 24
  %v2917 = vpop.permute.xlu0 %2916
  %2918 = vrot.lane.b32.xlu0 %v2839, 24
  %v2919 = vpop.permute.xlu0 %2918
  %2920 = vrot.lane.b32.xlu0 %v2840, 24
  %v2921 = vpop.permute.xlu0 %2920
  %2922 = vrot.lane.b32.xlu0 %v2841, 24
  %v2923 = vpop.permute.xlu0 %2922
  %2924 = vrot.lane.b32.xlu0 %v2842, 24
  %v2925 = vpop.permute.xlu0 %2924
  %2926 = vrot.lane.b32.xlu0 %v2843, 24
  %v2927 = vpop.permute.xlu0 %2926
  %2928 = vrot.lane.b32.xlu0 %v2844, 24
  %v2929 = vpop.permute.xlu0 %2928
  %2930 = vrot.lane.b32.xlu0 %v2845, 24
  %v2931 = vpop.permute.xlu0 %2930
  %2932 = vrot.lane.b32.xlu0 %v2846, 24
  %v2933 = vpop.permute.xlu0 %2932
  %2934 = vrot.lane.b32.xlu0 %v2847, 24
  %v2935 = vpop.permute.xlu0 %2934
  %2936 = vrot.lane.b32.xlu0 %v2848, 24
  %v2937 = vpop.permute.xlu0 %2936
  %2938 = vrot.lane.b32.xlu0 %v2849, 24
  %v2939 = vpop.permute.xlu0 %2938
  %2940 = vrot.lane.b32.xlu0 %v2850, 24
  %v2941 = vpop.permute.xlu0 %2940
  %2942 = vrot.lane.b32.xlu0 %v2851, 24
  %v2943 = vpop.permute.xlu0 %2942
  %2944 = vrot.lane.b32.xlu0 %v2852, 24
  %v2945 = vpop.permute.xlu0 %2944
  %2946 = vrot.lane.b32.xlu0 %v2853, 24
  %v2947 = vpop.permute.xlu0 %2946
  %2948 = vrot.lane.b32.xlu0 %v2854, 24
  %v2949 = vpop.permute.xlu0 %2948
  %2950 = vrot.lane.b32.xlu0 %v2855, 24
  %v2951 = vpop.permute.xlu0 %2950
  %2984 = vst.msk [vmem:[#allocation2] sm:$0xff] %vm1203, %v2889
  %2985 = vst.msk [vmem:[#allocation2 + $0x8] sm:$0xff] %vm1203, %v2891
  %2986 = vst.msk [vmem:[#allocation2 + $0x10] sm:$0xff] %vm1203, %v2893
  %2987 = vst.msk [vmem:[#allocation2 + $0x18] sm:$0xff] %vm1203, %v2895
  %2988 = vst.msk [vmem:[#allocation2 + $0x20] sm:$0xff] %vm1203, %v2897
  %2989 = vst.msk [vmem:[#allocation2 + $0x28] sm:$0xff] %vm1203, %v2899
  %2990 = vst.msk [vmem:[#allocation2 + $0x30] sm:$0xff] %vm1203, %v2901
  %2991 = vst.msk [vmem:[#allocation2 + $0x38] sm:$0xff] %vm1203, %v2903
  %2992 = vst.msk [vmem:[#allocation2 + $0x40] sm:$0xff] %vm1203, %v2905
  %2993 = vst.msk [vmem:[#allocation2 + $0x48] sm:$0xff] %vm1203, %v2907
  %2994 = vst.msk [vmem:[#allocation2 + $0x50] sm:$0xff] %vm1203, %v2909
  %2995 = vst.msk [vmem:[#allocation2 + $0x58] sm:$0xff] %vm1203, %v2911
  %2996 = vst.msk [vmem:[#allocation2 + $0x60] sm:$0xff] %vm1203, %v2913
  %2997 = vst.msk [vmem:[#allocation2 + $0x68] sm:$0xff] %vm1203, %v2915
  %2998 = vst.msk [vmem:[#allocation2 + $0x70] sm:$0xff] %vm1203, %v2917
  %2999 = vst.msk [vmem:[#allocation2 + $0x78] sm:$0xff] %vm1203, %v2919
  %3000 = vst.msk [vmem:[#allocation2 + $0x80] sm:$0xff] %vm1203, %v2921
  %3001 = vst.msk [vmem:[#allocation2 + $0x88] sm:$0xff] %vm1203, %v2923
  %3002 = vst.msk [vmem:[#allocation2 + $0x90] sm:$0xff] %vm1203, %v2925
  %3003 = vst.msk [vmem:[#allocation2 + $0x98] sm:$0xff] %vm1203, %v2927
  %3004 = vst.msk [vmem:[#allocation2 + $0xa0] sm:$0xff] %vm1203, %v2929
  %3005 = vst.msk [vmem:[#allocation2 + $0xa8] sm:$0xff] %vm1203, %v2931
  %3006 = vst.msk [vmem:[#allocation2 + $0xb0] sm:$0xff] %vm1203, %v2933
  %3007 = vst.msk [vmem:[#allocation2 + $0xb8] sm:$0xff] %vm1203, %v2935
  %3008 = vst.msk [vmem:[#allocation2 + $0xc0] sm:$0xff] %vm1203, %v2937
  %3009 = vst.msk [vmem:[#allocation2 + $0xc8] sm:$0xff] %vm1203, %v2939
  %3010 = vst.msk [vmem:[#allocation2 + $0xd0] sm:$0xff] %vm1203, %v2941
  %3011 = vst.msk [vmem:[#allocation2 + $0xd8] sm:$0xff] %vm1203, %v2943
  %3012 = vst.msk [vmem:[#allocation2 + $0xe0] sm:$0xff] %vm1203, %v2945
  %3013 = vst.msk [vmem:[#allocation2 + $0xe8] sm:$0xff] %vm1203, %v2947
  %3014 = vst.msk [vmem:[#allocation2 + $0xf0] sm:$0xff] %vm1203, %v2949
  %3015 = vst.msk [vmem:[#allocation2 + $0xf8] sm:$0xff] %vm1203, %v2951
  %v3016 = vld [vmem:[%s2823 + $0x1] sm:$0xff]
  %v3017 = vld [vmem:[%s2823 + $0x9] sm:$0xff]
  %v3018 = vld [vmem:[%s2823 + $0x19] sm:$0xff]
  %v3019 = vld [vmem:[%s2823 + $0x21] sm:$0xff]
  %v3020 = vld [vmem:[%s2823 + $0x31] sm:$0xff]
  %v3021 = vld [vmem:[%s2823 + $0x39] sm:$0xff]
  %v3022 = vld [vmem:[%s2823 + $0x49] sm:$0xff]
  %v3023 = vld [vmem:[%s2823 + $0x51] sm:$0xff]
  %v3024 = vld [vmem:[%s2823 + $0x61] sm:$0xff]
  %v3025 = vld [vmem:[%s2823 + $0x69] sm:$0xff]
  %v3026 = vld [vmem:[%s2823 + $0x79] sm:$0xff]
  %v3027 = vld [vmem:[%s2823 + $0x81] sm:$0xff]
  %v3028 = vld [vmem:[%s2823 + $0x91] sm:$0xff]
  %v3029 = vld [vmem:[%s2823 + $0x99] sm:$0xff]
  %v3030 = vld [vmem:[%s2823 + $0xa9] sm:$0xff]
  %v3031 = vld [vmem:[%s2823 + $0xb1] sm:$0xff]
  %v3032 = vld [vmem:[%s2823 + $0xc1] sm:$0xff]
  %v3033 = vld [vmem:[%s2823 + $0xc9] sm:$0xff]
  %v3034 = vld [vmem:[%s2823 + $0xd9] sm:$0xff]
  %v3035 = vld [vmem:[%s2823 + $0xe1] sm:$0xff]
  %v3036 = vld [vmem:[%s2823 + $0xf1] sm:$0xff]
  %v3037 = vld [vmem:[%s2823 + $0xf9] sm:$0xff]
  %v3038 = vld [vmem:[%s2823 + $0x109] sm:$0xff]
  %v3039 = vld [vmem:[%s2823 + $0x111] sm:$0xff]
  %v3040 = vld [vmem:[%s2823 + $0x121] sm:$0xff]
  %v3041 = vld [vmem:[%s2823 + $0x129] sm:$0xff]
  %v3042 = vld [vmem:[%s2823 + $0x139] sm:$0xff]
  %v3043 = vld [vmem:[%s2823 + $0x141] sm:$0xff]
  %v3044 = vld [vmem:[%s2823 + $0x151] sm:$0xff]
  %v3045 = vld [vmem:[%s2823 + $0x159] sm:$0xff]
  %v3046 = vld [vmem:[%s2823 + $0x169] sm:$0xff]
  %v3047 = vld [vmem:[%s2823 + $0x171] sm:$0xff]
  %3080 = vrot.lane.b32.xlu0 %v3016, 28
  %v3081 = vpop.permute.xlu0 %3080
  %3082 = vrot.lane.b32.xlu0 %v3017, 28
  %v3083 = vpop.permute.xlu0 %3082
  %3084 = vrot.lane.b32.xlu0 %v3018, 28
  %v3085 = vpop.permute.xlu0 %3084
  %3086 = vrot.lane.b32.xlu0 %v3019, 28
  %v3087 = vpop.permute.xlu0 %3086
  %3088 = vrot.lane.b32.xlu0 %v3020, 28
  %v3089 = vpop.permute.xlu0 %3088
  %3090 = vrot.lane.b32.xlu0 %v3021, 28
  %v3091 = vpop.permute.xlu0 %3090
  %3092 = vrot.lane.b32.xlu0 %v3022, 28
  %v3093 = vpop.permute.xlu0 %3092
  %3094 = vrot.lane.b32.xlu0 %v3023, 28
  %v3095 = vpop.permute.xlu0 %3094
  %3096 = vrot.lane.b32.xlu0 %v3024, 28
  %v3097 = vpop.permute.xlu0 %3096
  %3098 = vrot.lane.b32.xlu0 %v3025, 28
  %v3099 = vpop.permute.xlu0 %3098
  %3100 = vrot.lane.b32.xlu0 %v3026, 28
  %v3101 = vpop.permute.xlu0 %3100
  %3102 = vrot.lane.b32.xlu0 %v3027, 28
  %v3103 = vpop.permute.xlu0 %3102
  %3104 = vrot.lane.b32.xlu0 %v3028, 28
  %v3105 = vpop.permute.xlu0 %3104
  %3106 = vrot.lane.b32.xlu0 %v3029, 28
  %v3107 = vpop.permute.xlu0 %3106
  %3108 = vrot.lane.b32.xlu0 %v3030, 28
  %v3109 = vpop.permute.xlu0 %3108
  %3110 = vrot.lane.b32.xlu0 %v3031, 28
  %v3111 = vpop.permute.xlu0 %3110
  %3112 = vrot.lane.b32.xlu0 %v3032, 28
  %v3113 = vpop.permute.xlu0 %3112
  %3114 = vrot.lane.b32.xlu0 %v3033, 28
  %v3115 = vpop.permute.xlu0 %3114
  %3116 = vrot.lane.b32.xlu0 %v3034, 28
  %v3117 = vpop.permute.xlu0 %3116
  %3118 = vrot.lane.b32.xlu0 %v3035, 28
  %v3119 = vpop.permute.xlu0 %3118
  %3120 = vrot.lane.b32.xlu0 %v3036, 28
  %v3121 = vpop.permute.xlu0 %3120
  %3122 = vrot.lane.b32.xlu0 %v3037, 28
  %v3123 = vpop.permute.xlu0 %3122
  %3124 = vrot.lane.b32.xlu0 %v3038, 28
  %v3125 = vpop.permute.xlu0 %3124
  %3126 = vrot.lane.b32.xlu0 %v3039, 28
  %v3127 = vpop.permute.xlu0 %3126
  %3128 = vrot.lane.b32.xlu0 %v3040, 28
  %v3129 = vpop.permute.xlu0 %3128
  %3130 = vrot.lane.b32.xlu0 %v3041, 28
  %v3131 = vpop.permute.xlu0 %3130
  %3132 = vrot.lane.b32.xlu0 %v3042, 28
  %v3133 = vpop.permute.xlu0 %3132
  %3134 = vrot.lane.b32.xlu0 %v3043, 28
  %v3135 = vpop.permute.xlu0 %3134
  %3136 = vrot.lane.b32.xlu0 %v3044, 28
  %v3137 = vpop.permute.xlu0 %3136
  %3138 = vrot.lane.b32.xlu0 %v3045, 28
  %v3139 = vpop.permute.xlu0 %3138
  %3140 = vrot.lane.b32.xlu0 %v3046, 28
  %v3141 = vpop.permute.xlu0 %3140
  %3142 = vrot.lane.b32.xlu0 %v3047, 28
  %v3143 = vpop.permute.xlu0 %3142
  %3176 = vst.msk [vmem:[#allocation2] sm:$0xff] %vm1396, %v3081
  %3177 = vst.msk [vmem:[#allocation2 + $0x8] sm:$0xff] %vm1396, %v3083
  %3178 = vst.msk [vmem:[#allocation2 + $0x10] sm:$0xff] %vm1396, %v3085
  %3179 = vst.msk [vmem:[#allocation2 + $0x18] sm:$0xff] %vm1396, %v3087
  %3180 = vst.msk [vmem:[#allocation2 + $0x20] sm:$0xff] %vm1396, %v3089
  %3181 = vst.msk [vmem:[#allocation2 + $0x28] sm:$0xff] %vm1396, %v3091
  %3182 = vst.msk [vmem:[#allocation2 + $0x30] sm:$0xff] %vm1396, %v3093
  %3183 = vst.msk [vmem:[#allocation2 + $0x38] sm:$0xff] %vm1396, %v3095
  %3184 = vst.msk [vmem:[#allocation2 + $0x40] sm:$0xff] %vm1396, %v3097
  %3185 = vst.msk [vmem:[#allocation2 + $0x48] sm:$0xff] %vm1396, %v3099
  %3186 = vst.msk [vmem:[#allocation2 + $0x50] sm:$0xff] %vm1396, %v3101
  %3187 = vst.msk [vmem:[#allocation2 + $0x58] sm:$0xff] %vm1396, %v3103
  %3188 = vst.msk [vmem:[#allocation2 + $0x60] sm:$0xff] %vm1396, %v3105
  %3189 = vst.msk [vmem:[#allocation2 + $0x68] sm:$0xff] %vm1396, %v3107
  %3190 = vst.msk [vmem:[#allocation2 + $0x70] sm:$0xff] %vm1396, %v3109
  %3191 = vst.msk [vmem:[#allocation2 + $0x78] sm:$0xff] %vm1396, %v3111
  %3192 = vst.msk [vmem:[#allocation2 + $0x80] sm:$0xff] %vm1396, %v3113
  %3193 = vst.msk [vmem:[#allocation2 + $0x88] sm:$0xff] %vm1396, %v3115
  %3194 = vst.msk [vmem:[#allocation2 + $0x90] sm:$0xff] %vm1396, %v3117
  %3195 = vst.msk [vmem:[#allocation2 + $0x98] sm:$0xff] %vm1396, %v3119
  %3196 = vst.msk [vmem:[#allocation2 + $0xa0] sm:$0xff] %vm1396, %v3121
  %3197 = vst.msk [vmem:[#allocation2 + $0xa8] sm:$0xff] %vm1396, %v3123
  %3198 = vst.msk [vmem:[#allocation2 + $0xb0] sm:$0xff] %vm1396, %v3125
  %3199 = vst.msk [vmem:[#allocation2 + $0xb8] sm:$0xff] %vm1396, %v3127
  %3200 = vst.msk [vmem:[#allocation2 + $0xc0] sm:$0xff] %vm1396, %v3129
  %3201 = vst.msk [vmem:[#allocation2 + $0xc8] sm:$0xff] %vm1396, %v3131
  %3202 = vst.msk [vmem:[#allocation2 + $0xd0] sm:$0xff] %vm1396, %v3133
  %3203 = vst.msk [vmem:[#allocation2 + $0xd8] sm:$0xff] %vm1396, %v3135
  %3204 = vst.msk [vmem:[#allocation2 + $0xe0] sm:$0xff] %vm1396, %v3137
  %3205 = vst.msk [vmem:[#allocation2 + $0xe8] sm:$0xff] %vm1396, %v3139
  %3206 = vst.msk [vmem:[#allocation2 + $0xf0] sm:$0xff] %vm1396, %v3141
  %3207 = vst.msk [vmem:[#allocation2 + $0xf8] sm:$0xff] %vm1396, %v3143
  %v3208 = vld [vmem:[%s2823 + $0x2] sm:$0xff]
  %v3209 = vld [vmem:[%s2823 + $0xa] sm:$0xff]
  %v3210 = vld [vmem:[%s2823 + $0x1a] sm:$0xff]
  %v3211 = vld [vmem:[%s2823 + $0x22] sm:$0xff]
  %v3212 = vld [vmem:[%s2823 + $0x32] sm:$0xff]
  %v3213 = vld [vmem:[%s2823 + $0x3a] sm:$0xff]
  %v3214 = vld [vmem:[%s2823 + $0x4a] sm:$0xff]
  %v3215 = vld [vmem:[%s2823 + $0x52] sm:$0xff]
  %v3216 = vld [vmem:[%s2823 + $0x62] sm:$0xff]
  %v3217 = vld [vmem:[%s2823 + $0x6a] sm:$0xff]
  %v3218 = vld [vmem:[%s2823 + $0x7a] sm:$0xff]
  %v3219 = vld [vmem:[%s2823 + $0x82] sm:$0xff]
  %v3220 = vld [vmem:[%s2823 + $0x92] sm:$0xff]
  %v3221 = vld [vmem:[%s2823 + $0x9a] sm:$0xff]
  %v3222 = vld [vmem:[%s2823 + $0xaa] sm:$0xff]
  %v3223 = vld [vmem:[%s2823 + $0xb2] sm:$0xff]
  %v3224 = vld [vmem:[%s2823 + $0xc2] sm:$0xff]
  %v3225 = vld [vmem:[%s2823 + $0xca] sm:$0xff]
  %v3226 = vld [vmem:[%s2823 + $0xda] sm:$0xff]
  %v3227 = vld [vmem:[%s2823 + $0xe2] sm:$0xff]
  %v3228 = vld [vmem:[%s2823 + $0xf2] sm:$0xff]
  %v3229 = vld [vmem:[%s2823 + $0xfa] sm:$0xff]
  %v3230 = vld [vmem:[%s2823 + $0x10a] sm:$0xff]
  %v3231 = vld [vmem:[%s2823 + $0x112] sm:$0xff]
  %v3232 = vld [vmem:[%s2823 + $0x122] sm:$0xff]
  %v3233 = vld [vmem:[%s2823 + $0x12a] sm:$0xff]
  %v3234 = vld [vmem:[%s2823 + $0x13a] sm:$0xff]
  %v3235 = vld [vmem:[%s2823 + $0x142] sm:$0xff]
  %v3236 = vld [vmem:[%s2823 + $0x152] sm:$0xff]
  %v3237 = vld [vmem:[%s2823 + $0x15a] sm:$0xff]
  %v3238 = vld [vmem:[%s2823 + $0x16a] sm:$0xff]
  %v3239 = vld [vmem:[%s2823 + $0x172] sm:$0xff]
  %3272 = vrot.lane.b32.xlu0 %v3208, 32
  %v3273 = vpop.permute.xlu0 %3272
  %3274 = vrot.lane.b32.xlu0 %v3209, 32
  %v3275 = vpop.permute.xlu0 %3274
  %3276 = vrot.lane.b32.xlu0 %v3210, 32
  %v3277 = vpop.permute.xlu0 %3276
  %3278 = vrot.lane.b32.xlu0 %v3211, 32
  %v3279 = vpop.permute.xlu0 %3278
  %3280 = vrot.lane.b32.xlu0 %v3212, 32
  %v3281 = vpop.permute.xlu0 %3280
  %3282 = vrot.lane.b32.xlu0 %v3213, 32
  %v3283 = vpop.permute.xlu0 %3282
  %3284 = vrot.lane.b32.xlu0 %v3214, 32
  %v3285 = vpop.permute.xlu0 %3284
  %3286 = vrot.lane.b32.xlu0 %v3215, 32
  %v3287 = vpop.permute.xlu0 %3286
  %3288 = vrot.lane.b32.xlu0 %v3216, 32
  %v3289 = vpop.permute.xlu0 %3288
  %3290 = vrot.lane.b32.xlu0 %v3217, 32
  %v3291 = vpop.permute.xlu0 %3290
  %3292 = vrot.lane.b32.xlu0 %v3218, 32
  %v3293 = vpop.permute.xlu0 %3292
  %3294 = vrot.lane.b32.xlu0 %v3219, 32
  %v3295 = vpop.permute.xlu0 %3294
  %3296 = vrot.lane.b32.xlu0 %v3220, 32
  %v3297 = vpop.permute.xlu0 %3296
  %3298 = vrot.lane.b32.xlu0 %v3221, 32
  %v3299 = vpop.permute.xlu0 %3298
  %3300 = vrot.lane.b32.xlu0 %v3222, 32
  %v3301 = vpop.permute.xlu0 %3300
  %3302 = vrot.lane.b32.xlu0 %v3223, 32
  %v3303 = vpop.permute.xlu0 %3302
  %3304 = vrot.lane.b32.xlu0 %v3224, 32
  %v3305 = vpop.permute.xlu0 %3304
  %3306 = vrot.lane.b32.xlu0 %v3225, 32
  %v3307 = vpop.permute.xlu0 %3306
  %3308 = vrot.lane.b32.xlu0 %v3226, 32
  %v3309 = vpop.permute.xlu0 %3308
  %3310 = vrot.lane.b32.xlu0 %v3227, 32
  %v3311 = vpop.permute.xlu0 %3310
  %3312 = vrot.lane.b32.xlu0 %v3228, 32
  %v3313 = vpop.permute.xlu0 %3312
  %3314 = vrot.lane.b32.xlu0 %v3229, 32
  %v3315 = vpop.permute.xlu0 %3314
  %3316 = vrot.lane.b32.xlu0 %v3230, 32
  %v3317 = vpop.permute.xlu0 %3316
  %3318 = vrot.lane.b32.xlu0 %v3231, 32
  %v3319 = vpop.permute.xlu0 %3318
  %3320 = vrot.lane.b32.xlu0 %v3232, 32
  %v3321 = vpop.permute.xlu0 %3320
  %3322 = vrot.lane.b32.xlu0 %v3233, 32
  %v3323 = vpop.permute.xlu0 %3322
  %3324 = vrot.lane.b32.xlu0 %v3234, 32
  %v3325 = vpop.permute.xlu0 %3324
  %3326 = vrot.lane.b32.xlu0 %v3235, 32
  %v3327 = vpop.permute.xlu0 %3326
  %3328 = vrot.lane.b32.xlu0 %v3236, 32
  %v3329 = vpop.permute.xlu0 %3328
  %3330 = vrot.lane.b32.xlu0 %v3237, 32
  %v3331 = vpop.permute.xlu0 %3330
  %3332 = vrot.lane.b32.xlu0 %v3238, 32
  %v3333 = vpop.permute.xlu0 %3332
  %3334 = vrot.lane.b32.xlu0 %v3239, 32
  %v3335 = vpop.permute.xlu0 %3334
  %3368 = vst.msk [vmem:[#allocation2] sm:$0xff] %vm1589, %v3273
  %3369 = vst.msk [vmem:[#allocation2 + $0x8] sm:$0xff] %vm1589, %v3275
  %3370 = vst.msk [vmem:[#allocation2 + $0x10] sm:$0xff] %vm1589, %v3277
  %3371 = vst.msk [vmem:[#allocation2 + $0x18] sm:$0xff] %vm1589, %v3279
  %3372 = vst.msk [vmem:[#allocation2 + $0x20] sm:$0xff] %vm1589, %v3281
  %3373 = vst.msk [vmem:[#allocation2 + $0x28] sm:$0xff] %vm1589, %v3283
  %3374 = vst.msk [vmem:[#allocation2 + $0x30] sm:$0xff] %vm1589, %v3285
  %3375 = vst.msk [vmem:[#allocation2 + $0x38] sm:$0xff] %vm1589, %v3287
  %3376 = vst.msk [vmem:[#allocation2 + $0x40] sm:$0xff] %vm1589, %v3289
  %3377 = vst.msk [vmem:[#allocation2 + $0x48] sm:$0xff] %vm1589, %v3291
  %3378 = vst.msk [vmem:[#allocation2 + $0x50] sm:$0xff] %vm1589, %v3293
  %3379 = vst.msk [vmem:[#allocation2 + $0x58] sm:$0xff] %vm1589, %v3295
  %3380 = vst.msk [vmem:[#allocation2 + $0x60] sm:$0xff] %vm1589, %v3297
  %3381 = vst.msk [vmem:[#allocation2 + $0x68] sm:$0xff] %vm1589, %v3299
  %3382 = vst.msk [vmem:[#allocation2 + $0x70] sm:$0xff] %vm1589, %v3301
  %3383 = vst.msk [vmem:[#allocation2 + $0x78] sm:$0xff] %vm1589, %v3303
  %3384 = vst.msk [vmem:[#allocation2 + $0x80] sm:$0xff] %vm1589, %v3305
  %3385 = vst.msk [vmem:[#allocation2 + $0x88] sm:$0xff] %vm1589, %v3307
  %3386 = vst.msk [vmem:[#allocation2 + $0x90] sm:$0xff] %vm1589, %v3309
  %3387 = vst.msk [vmem:[#allocation2 + $0x98] sm:$0xff] %vm1589, %v3311
  %3388 = vst.msk [vmem:[#allocation2 + $0xa0] sm:$0xff] %vm1589, %v3313
  %3389 = vst.msk [vmem:[#allocation2 + $0xa8] sm:$0xff] %vm1589, %v3315
  %3390 = vst.msk [vmem:[#allocation2 + $0xb0] sm:$0xff] %vm1589, %v3317
  %3391 = vst.msk [vmem:[#allocation2 + $0xb8] sm:$0xff] %vm1589, %v3319
  %3392 = vst.msk [vmem:[#allocation2 + $0xc0] sm:$0xff] %vm1589, %v3321
  %3393 = vst.msk [vmem:[#allocation2 + $0xc8] sm:$0xff] %vm1589, %v3323
  %3394 = vst.msk [vmem:[#allocation2 + $0xd0] sm:$0xff] %vm1589, %v3325
  %3395 = vst.msk [vmem:[#allocation2 + $0xd8] sm:$0xff] %vm1589, %v3327
  %3396 = vst.msk [vmem:[#allocation2 + $0xe0] sm:$0xff] %vm1589, %v3329
  %3397 = vst.msk [vmem:[#allocation2 + $0xe8] sm:$0xff] %vm1589, %v3331
  %3398 = vst.msk [vmem:[#allocation2 + $0xf0] sm:$0xff] %vm1589, %v3333
  %3399 = vst.msk [vmem:[#allocation2 + $0xf8] sm:$0xff] %vm1589, %v3335
  %v3400 = vld [vmem:[%s1] sm:$0xff]
  %v3401 = vld [vmem:[#allocation2] sm:$0xff]
  %v3402 = vld [vmem:[#allocation2 + $0x8] sm:$0xff]
  %v3403 = vld [vmem:[#allocation2 + $0x10] sm:$0xff]
  %v3404 = vld [vmem:[#allocation2 + $0x18] sm:$0xff]
  %v3405 = vld [vmem:[#allocation2 + $0x20] sm:$0xff]
  %v3406 = vld [vmem:[#allocation2 + $0x28] sm:$0xff]
  %v3407 = vld [vmem:[#allocation2 + $0x30] sm:$0xff]
  %v3408 = vld [vmem:[#allocation2 + $0x38] sm:$0xff]
  %v3409 = vld [vmem:[#allocation2 + $0x40] sm:$0xff]
  %v3410 = vld [vmem:[#allocation2 + $0x48] sm:$0xff]
  %v3411 = vld [vmem:[#allocation2 + $0x50] sm:$0xff]
  %v3412 = vld [vmem:[#allocation2 + $0x58] sm:$0xff]
  %v3413 = vld [vmem:[#allocation2 + $0x60] sm:$0xff]
  %v3414 = vld [vmem:[#allocation2 + $0x68] sm:$0xff]
  %v3415 = vld [vmem:[#allocation2 + $0x70] sm:$0xff]
  %v3416 = vld [vmem:[#allocation2 + $0x78] sm:$0xff]
  %v3417 = vld [vmem:[#allocation2 + $0x80] sm:$0xff]
  %v3418 = vld [vmem:[#allocation2 + $0x88] sm:$0xff]
  %v3419 = vld [vmem:[#allocation2 + $0x90] sm:$0xff]
  %v3420 = vld [vmem:[#allocation2 + $0x98] sm:$0xff]
  %v3421 = vld [vmem:[#allocation2 + $0xa0] sm:$0xff]
  %v3422 = vld [vmem:[#allocation2 + $0xa8] sm:$0xff]
  %v3423 = vld [vmem:[#allocation2 + $0xb0] sm:$0xff]
  %v3424 = vld [vmem:[#allocation2 + $0xb8] sm:$0xff]
  %v3425 = vld [vmem:[#allocation2 + $0xc0] sm:$0xff]
  %v3426 = vld [vmem:[#allocation2 + $0xc8] sm:$0xff]
  %v3427 = vld [vmem:[#allocation2 + $0xd0] sm:$0xff]
  %v3428 = vld [vmem:[#allocation2 + $0xd8] sm:$0xff]
  %v3429 = vld [vmem:[#allocation2 + $0xe0] sm:$0xff]
  %v3430 = vld [vmem:[#allocation2 + $0xe8] sm:$0xff]
  %v3431 = vld [vmem:[#allocation2 + $0xf0] sm:$0xff]
  %v3432 = vld [vmem:[#allocation2 + $0xf8] sm:$0xff]
  %v3434 = vsel %vm1655, %v3400, 0
  %v3437 = vsel %vm1655, %v3401, 0
  %v3440 = vsel %vm1655, %v3402, 0
  %v3443 = vsel %vm1655, %v3403, 0
  %v3446 = vsel %vm1655, %v3404, 0
  %v3449 = vsel %vm1655, %v3405, 0
  %v3452 = vsel %vm1655, %v3406, 0
  %v3455 = vsel %vm1655, %v3407, 0
  %v3458 = vsel %vm1655, %v3408, 0
  %v3461 = vsel %vm1655, %v3409, 0
  %v3464 = vsel %vm1655, %v3410, 0
  %v3467 = vsel %vm1655, %v3411, 0
  %v3470 = vsel %vm1655, %v3412, 0
  %v3473 = vsel %vm1655, %v3413, 0
  %v3476 = vsel %vm1655, %v3414, 0
  %v3479 = vsel %vm1655, %v3415, 0
  %v3482 = vsel %vm1655, %v3416, 0
  %v3485 = vsel %vm1655, %v3417, 0
  %v3488 = vsel %vm1655, %v3418, 0
  %v3491 = vsel %vm1655, %v3419, 0
  %v3494 = vsel %vm1655, %v3420, 0
  %v3497 = vsel %vm1655, %v3421, 0
  %v3500 = vsel %vm1655, %v3422, 0
  %v3503 = vsel %vm1655, %v3423, 0
  %v3506 = vsel %vm1655, %v3424, 0
  %v3509 = vsel %vm1655, %v3425, 0
  %v3512 = vsel %vm1655, %v3426, 0
  %v3515 = vsel %vm1655, %v3427, 0
  %v3518 = vsel %vm1655, %v3428, 0
  %v3521 = vsel %vm1655, %v3429, 0
  %v3524 = vsel %vm1655, %v3430, 0
  %v3527 = vsel %vm1655, %v3431, 0
  %v3530 = vsel %vm1655, %v3432, 0
  %3532 = vmatpush.xpose.msra.mxu0 %v3482
  %3533 = vmatpush.xpose.msra.mxu0 %v3479
  %3534 = vmatpush.xpose.msra.mxu0 %v3476
  %3535 = vmatpush.xpose.msra.mxu0 %v3473
  %3536 = vmatpush.xpose.msra.mxu0 %v3470
  %3537 = vmatpush.xpose.msra.mxu0 %v3467
  %3538 = vmatpush.xpose.msra.mxu0 %v3464
  %3539 = vmatpush.xpose.msra.mxu0 %v3461
  %3540 = vmatpush.xpose.msra.mxu0 %v3458
  %3541 = vmatpush.xpose.msra.mxu0 %v3455
  %3542 = vmatpush.xpose.msra.mxu0 %v3452
  %3543 = vmatpush.xpose.msra.mxu0 %v3449
  %3544 = vmatpush.xpose.msra.mxu0 %v3446
  %3545 = vmatpush.xpose.msra.mxu0 %v3443
  %3546 = vmatpush.xpose.msra.mxu0 %v3440
  %3547 = vmatpush.xpose.msra.mxu0 %v3437
  %3548 = vmatmul.f32.gmra.mxu0 %v3434
  %v3549 = vpop.f32.mrf.mxu0
  %v3550 = vadd.f32 0.0, %v3549
  %3551 = vdwg.mxu0
  %3552 = vmatpush.xpose.msra.mxu0 %v3530
  %3553 = vmatpush.xpose.msra.mxu0 %v3527
  %3554 = vmatpush.xpose.msra.mxu0 %v3524
  %3555 = vmatpush.xpose.msra.mxu0 %v3521
  %3556 = vmatpush.xpose.msra.mxu0 %v3518
  %3557 = vmatpush.xpose.msra.mxu0 %v3515
  %3558 = vmatpush.xpose.msra.mxu0 %v3512
  %3559 = vmatpush.xpose.msra.mxu0 %v3509
  %3560 = vmatpush.xpose.msra.mxu0 %v3506
  %3561 = vmatpush.xpose.msra.mxu0 %v3503
  %3562 = vmatpush.xpose.msra.mxu0 %v3500
  %3563 = vmatpush.xpose.msra.mxu0 %v3497
  %3564 = vmatpush.xpose.msra.mxu0 %v3494
  %3565 = vmatpush.xpose.msra.mxu0 %v3491
  %3566 = vmatpush.xpose.msra.mxu0 %v3488
  %3567 = vmatpush.xpose.msra.mxu0 %v3485
  %3568 = vmatmul.f32.gmra.mxu0 %v3434
  %v3569 = vpop.f32.mrf.mxu0
  %v3570 = vadd.f32 0.0, %v3569
  %3571 = vdwg.mxu0
  %3572 = vst [vmem:[%s2 + $0x10] sm:$0xff] %v3550
  %3573 = vst [vmem:[%s2 + $0x18] sm:$0xff] %v3570
  // Predicated region
  $region10: #{periodic_conv2d.1} parent=0 // pred_check
    _
  $region11: #{periodic_conv2d.1} parent=0 // pred_check_branch
    %3575 = sbr.rel (0) target = $region13
  $region12: #{periodic_conv2d.1} parent=0 // pred_region
    _
  $region13: #{periodic_conv2d.1} parent=0 // pred_fallthru
    _
  // Predicated region
  $region14: #{periodic_conv2d.1} parent=0 // pred_check
    _
  $region15: #{periodic_conv2d.1} parent=0 // pred_check_branch
    %3577 = sbr.rel (0) target = $region17
  $region16: #{periodic_conv2d.1} parent=0 // pred_region
    _
  $region17: #{periodic_conv2d.1} parent=0 // pred_fallthru
    _

</llo_original>
